<compile_context>
chip_gen: v6e
topology: v6e:2x2x1
jax: 0.10.0
libtpu: 0.0.40
codegen_flags: <defaults>
</compile_context>

<pallas_src>
import functools
import math

import jax
import jax.numpy as jnp
from jax import lax
from jax.experimental import pallas as pl
from jax.experimental.pallas import tpu as pltpu


_SQRT_2_OVER_PI = 0.7978845608028654


def _gelu_tanh(x):
    # tanh-approx GELU -> transcendental goes to the EUP slot (VPU stays free).
    return 0.5 * x * (1.0 + jnp.tanh(_SQRT_2_OVER_PI * (x + 0.044715 * (x * x * x))))


def _gelu_exact(x):
    # nn.GELU default (erf-based) -- used only by the pure-JAX reference.
    return 0.5 * x * (1.0 + lax.erf(x * (1.0 / math.sqrt(2.0))))


def leff_kernel(x_ref, w1_ref, b1_ref, wdw_ref, bdw_ref, w2_ref, b2_ref,
                out_ref, pad_ref, *, hh, block_bs):
    """Fused LeFF forward for one block of `block_bs` batch elements.

    x_ref:   (block_bs, HW, dim_pad)  bf16  (columns >= dim are zero)
    w1_ref:  (dim_pad, hidden)        bf16  (rows    >= dim are zero)
    b1_ref:  (1, hidden)              f32
    wdw_ref: (9, hidden)              f32, wdw[k, c] = conv_w[c, 0, k//3, k%3]
    bdw_ref: (1, hidden)              f32
    w2_ref:  (hidden, dim_pad)        bf16  (columns >= dim are zero)
    b2_ref:  (1, dim_pad)             f32
    out_ref: (block_bs, HW, dim_pad)  bf16
    pad_ref: VMEM scratch (block_bs, hh+2, hh+2, hidden) f32 zero-padded images
    """
    hidden = w1_ref.shape[1]
    hw = hh * hh
    dim_pad = w2_ref.shape[-1]
    m = block_bs * hw

    # ---- linear1 + GELU: bf16 MXU matmul (K = dim_pad, lane-dense), f32 acc ----
    x = x_ref[...].reshape(m, dim_pad)
    h1 = jnp.dot(x, w1_ref[...], preferred_element_type=jnp.float32) + b1_ref[...]
    h1 = _gelu_tanh(h1)                                             # (m, hidden) f32

    # ---- depthwise 3x3 conv, padding=1, channels-last, batched over the block ----
    # Zero only the 1-pixel border once per grid step; the interior is fully
    # rewritten below, so the border stays zero regardless of prior steps.
    pad_ref[:, 0:1, :, :] = jnp.zeros((block_bs, 1, hh + 2, hidden), jnp.float32)
    pad_ref[:, hh + 1:hh + 2, :, :] = jnp.zeros((block_bs, 1, hh + 2, hidden), jnp.float32)
    pad_ref[:, 1:hh + 1, 0:1, :] = jnp.zeros((block_bs, hh, 1, hidden), jnp.float32)
    pad_ref[:, 1:hh + 1, hh + 1:hh + 2, :] = jnp.zeros((block_bs, hh, 1, hidden), jnp.float32)
    pad_ref[:, 1:hh + 1, 1:hh + 1, :] = h1.reshape(block_bs, hh, hh, hidden)

    wdw = wdw_ref[...]                                              # (9, hidden), hoisted
    acc = jnp.broadcast_to(bdw_ref[...], (block_bs, hh, hh, hidden))
    for k in range(9):                                              # unrolled 3x3 taps
        di, dj = k // 3, k % 3
        # TODO(synk): dj in {1,2} slices the sublane axis at unaligned offsets;
        # if the Mosaic dump shows per-tap sublane-shift copies, route the shift
        # through pltpu.roll (XLU slot is idle here) instead.
        acc = acc + wdw[k] * pad_ref[:, di:di + hh, dj:dj + hh, :]
    # TODO(synk): on v6e/v7x (bf16 VPUs) the taps above could run in bf16 to halve
    # VALU ops / scratch bytes; kept f32 for v5e portability and accuracy budget.
    h2 = _gelu_tanh(acc).reshape(m, hidden).astype(jnp.bfloat16)    # conv GELU, bf16 for MXU

    # ---- linear2: bf16 MXU matmul into a lane-dense (dim_pad) bf16 output ----
    out = jnp.dot(h2, w2_ref[...], preferred_element_type=jnp.float32) + b2_ref[...]
    out_ref[...] = out.reshape(block_bs, hw, dim_pad).astype(out_ref.dtype)


def _tensorcores_per_chip():
    """Best-effort TC-per-chip detection (v7x has 2; v5e/v6e have 1)."""
    try:
        kind = jax.devices()[0].device_kind.lower()
    except Exception:
        return 1
    return 2 if ("v7" in kind or "7x" in kind) else 1


def _pick_block_bs(bs, hw, multi_tc):
    # Fold batches so the matmul M dim (block_bs*hw) is decent while bounding the
    # per-step VMEM/vreg footprint; on multi-TC chips keep >= 2 grid steps so both
    # TensorCores get work, on single-TC chips prefer one big step (the grid is a
    # serial loop there and each extra step costs ~0.35 us of pipeline overhead).
    max_rows = 1024
    best = 1
    for d in range(1, bs + 1):
        if bs % d:
            continue
        if d * hw > max_rows:
            continue
        if multi_tc and bs >= 2 and bs // d < 2:
            continue
        best = d
    # NOTE: falls back to block_bs=1 (grid=bs) when hw>max_rows or bs is prime --
    # correct but a perf cliff; production shapes should tile hidden/hh instead.
    return best


def leff_forward(x, params, *, block_bs=None):
    bs, hw, dim = x.shape
    hh = int(math.sqrt(hw))
    assert hh * hh == hw, "sequence length must be a perfect square"
    hidden = params["w1"].shape[1]

    tc_per_chip = _tensorcores_per_chip()
    if block_bs is None:
        block_bs = _pick_block_bs(bs, hw, multi_tc=(tc_per_chip > 1))
    assert bs % block_bs == 0
    num_steps = bs // block_bs

    dim_pad = ((dim + 127) // 128) * 128          # lane-dense input + output paths

    # bf16 MXU operands, zero-padded to dim_pad on the x/w1 (K) and w2/b2/out (N)
    # paths (exact no-op on the math); biases / conv weights stay f32.
    xb = jnp.pad(x.astype(jnp.bfloat16), ((0, 0), (0, 0), (0, dim_pad - dim)))
    w1 = jnp.pad(params["w1"].astype(jnp.bfloat16), ((0, dim_pad - dim), (0, 0)))
    b1 = params["b1"].astype(jnp.float32)
    wdw = params["wdw"].astype(jnp.float32)
    bdw = params["bdw"].astype(jnp.float32)
    w2 = jnp.pad(params["w2"].astype(jnp.bfloat16), ((0, 0), (0, dim_pad - dim)))
    b2 = jnp.pad(params["b2"].astype(jnp.float32), ((0, 0), (0, dim_pad - dim)))

    if num_steps == 1:
        semantics = ("arbitrary",)
    elif tc_per_chip > 1 and num_steps == tc_per_chip:
        semantics = (pltpu.CORE_PARALLEL,)        # pin one step per TensorCore (v7x)
    else:
        semantics = ("parallel",)

    # TODO(synk): for production sizes (hh >= 32, hidden >= 1024) add a hidden-
    # channel grid axis (parallel for conv/GELU, arbitrary K-reduction for
    # linear2) so scratch + blocks fit v7x's 64 MiB VMEM.
    kernel = functools.partial(leff_kernel, hh=hh, block_bs=block_bs)
    out_padded = pl.pallas_call(
        kernel,
        out_shape=jax.ShapeDtypeStruct((bs, hw, dim_pad), jnp.bfloat16),
        grid_spec=pltpu.PrefetchScalarGridSpec(
            num_scalar_prefetch=0,
            grid=(num_steps,),
            in_specs=[
                pl.BlockSpec((block_bs, hw, dim_pad), lambda g: (g, 0, 0)),   # x (padded)
                pl.BlockSpec((dim_pad, hidden), lambda g: (0, 0)),            # w1 (padded)
                pl.BlockSpec((1, hidden), lambda g: (0, 0)),                  # b1
                pl.BlockSpec((9, hidden), lambda g: (0, 0)),                  # wdw
                pl.BlockSpec((1, hidden), lambda g: (0, 0)),                  # bdw
                pl.BlockSpec((hidden, dim_pad), lambda g: (0, 0)),            # w2 (padded)
                pl.BlockSpec((1, dim_pad), lambda g: (0, 0)),                 # b2 (padded)
            ],
            out_specs=pl.BlockSpec((block_bs, hw, dim_pad), lambda g: (g, 0, 0)),
            scratch_shapes=[
                pltpu.VMEM((block_bs, hh + 2, hh + 2, hidden), jnp.float32)],
        ),
        compiler_params=pltpu.CompilerParams(dimension_semantics=semantics),
    )(xb, w1, b1, wdw, bdw, w2, b2)

    return out_padded[:, :, :dim].astype(x.dtype)


def leff_reference(x, params):
    """Pure-JAX f32 reference (mirrors the PyTorch forward, exact erf GELU)."""
    bs, hw, dim = x.shape
    hh = int(math.sqrt(hw))
    hidden = params["w1"].shape[1]

    h1 = _gelu_exact(x @ params["w1"] + params["b1"])                 # (B, HW, hidden)
    img = h1.reshape(bs, hh, hh, hidden)                              # NHWC
    w_hwio = params["wdw"].reshape(3, 3, 1, hidden)                   # depthwise HWIO
    conv = lax.conv_general_dilated(
        img, w_hwio, window_strides=(1, 1), padding="SAME",
        dimension_numbers=("NHWC", "HWIO", "NHWC"),
        feature_group_count=hidden,
    ) + params["bdw"][0]
    h2 = _gelu_exact(conv).reshape(bs, hw, hidden)
    return h2 @ params["w2"] + params["b2"]


if __name__ == "__main__":
    # LeFF module defaults: dim=32, hidden=128; 8x8 windows (hw=64), batch 8.
    # Single-TC chips: block_bs=8 -> grid=(1,), M=512 rows per matmul.
    # v7x: block_bs=4 -> grid=(2,) core-parallel, M=256 rows per matmul per core.
    bs, hw, dim, hidden = 8, 64, 32, 128   # hh = 8

    key = jax.random.PRNGKey(0)
    ks = jax.random.split(key, 7)
    params = {
        "w1": 0.05 * jax.random.normal(ks[0], (dim, hidden), jnp.float32),
        "b1": 0.05 * jax.random.normal(ks[1], (1, hidden), jnp.float32),
        "wdw": 0.10 * jax.random.normal(ks[2], (9, hidden), jnp.float32),
        "bdw": 0.05 * jax.random.normal(ks[3], (1, hidden), jnp.float32),
        "w2": 0.05 * jax.random.normal(ks[4], (hidden, dim), jnp.float32),
        "b2": 0.05 * jax.random.normal(ks[5], (1, dim), jnp.float32),
    }
    x = jax.random.normal(ks[6], (bs, hw, dim), jnp.float32)

    out = jax.block_until_ready(leff_forward(x, params))
    ref = jax.block_until_ready(leff_reference(x, params))

    assert out.shape == (bs, hw, dim)
    # Tolerance budget vs the all-f32 exact-erf reference:
    #   bf16 x/w1/w2 operands (~few e-3), tanh-approx GELU (<~5e-4 propagated),
    #   bf16 h2 cast + bf16 output store (~few e-4).  Expected max err ~5e-3.
    max_err = float(jnp.max(jnp.abs(out - ref)))
    if max_err < 2e-2:
        print("KERNEL_OK")
    else:
        raise SystemExit(f"mismatch vs reference, max_err={max_err}")
</pallas_src>

<mosaic_0001>
module attributes {stable_mosaic.version = 11 : i64} {
  func.func @leff_kernel(%arg0: i32, %arg1: memref<8x64x128xbf16, #tpu.memory_space<vmem>>, %arg2: memref<128x128xbf16, #tpu.memory_space<vmem>>, %arg3: memref<1x128xf32, #tpu.memory_space<vmem>>, %arg4: memref<9x128xf32, #tpu.memory_space<vmem>>, %arg5: memref<1x128xf32, #tpu.memory_space<vmem>>, %arg6: memref<128x128xbf16, #tpu.memory_space<vmem>>, %arg7: memref<1x128xf32, #tpu.memory_space<vmem>>, %arg8: memref<8x64x128xbf16, #tpu.memory_space<vmem>>, %arg9: memref<8x10x10x128xf32, #tpu.memory_space<vmem>>) attributes {dimension_semantics = [#tpu.dimension_semantics<arbitrary>], iteration_bounds = array<i64: 1>, scalar_prefetch = 0 : i64, scratch_operands = 1 : i64, tpu.core_type = #tpu.core_type<tc>, window_params = [{transform_indices = @transform_0, window_bounds = array<i64: 8, 64, 128>}, {pipeline_mode = #tpu.pipeline_mode<synchronous>, transform_indices = @transform_1, window_bounds = array<i64: 128, 128>}, {pipeline_mode = #tpu.pipeline_mode<synchronous>, transform_indices = @transform_2, window_bounds = array<i64: 1, 128>}, {pipeline_mode = #tpu.pipeline_mode<synchronous>, transform_indices = @transform_3, window_bounds = array<i64: 9, 128>}, {pipeline_mode = #tpu.pipeline_mode<synchronous>, transform_indices = @transform_4, window_bounds = array<i64: 1, 128>}, {pipeline_mode = #tpu.pipeline_mode<synchronous>, transform_indices = @transform_5, window_bounds = array<i64: 128, 128>}, {pipeline_mode = #tpu.pipeline_mode<synchronous>, transform_indices = @transform_6, window_bounds = array<i64: 1, 128>}, {transform_indices = @transform_7, window_bounds = array<i64: 8, 64, 128>}]} {
    %c0 = arith.constant 0 : index
    %c0_0 = arith.constant 0 : index
    %c0_1 = arith.constant 0 : index
    %0 = vector.load %arg1[%c0, %c0_0, %c0_1] : memref<8x64x128xbf16, #tpu.memory_space<vmem>>, vector<8x64x128xbf16>
    %1 = vector.shape_cast %0 : vector<8x64x128xbf16> to vector<512x128xbf16>
    %c0_2 = arith.constant 0 : index
    %c0_3 = arith.constant 0 : index
    %2 = vector.load %arg2[%c0_2, %c0_3] : memref<128x128xbf16, #tpu.memory_space<vmem>>, vector<128x128xbf16>
    %cst = arith.constant dense<0.000000e+00> : vector<512x128xf32>
    %3 = tpu.matmul %1, %2, %cst {dimension_numbers = #tpu.dot_dimension_numbers<[1], [0], [0], [1], [0, 0, 1, 1], [], []>} : vector<512x128xbf16>, vector<128x128xbf16>, vector<512x128xf32> -> vector<512x128xf32>
    %c0_4 = arith.constant 0 : index
    %c0_5 = arith.constant 0 : index
    %4 = vector.load %arg3[%c0_4, %c0_5] : memref<1x128xf32, #tpu.memory_space<vmem>>, vector<1x128xf32>
    %5 = vector.broadcast %4 : vector<1x128xf32> to vector<512x128xf32>
    %6 = arith.addf %3, %5 : vector<512x128xf32>
    %cst_6 = arith.constant 5.000000e-01 : f32
    %7 = vector.broadcast %cst_6 : f32 to vector<512x128xf32>
    %8 = arith.mulf %7, %6 : vector<512x128xf32>
    %9 = arith.mulf %6, %6 : vector<512x128xf32>
    %10 = arith.mulf %9, %6 : vector<512x128xf32>
    %cst_7 = arith.constant 4.471500e-02 : f32
    %11 = vector.broadcast %cst_7 : f32 to vector<512x128xf32>
    %12 = arith.mulf %11, %10 : vector<512x128xf32>
    %13 = arith.addf %6, %12 : vector<512x128xf32>
    %cst_8 = arith.constant 0.797884583 : f32
    %14 = vector.broadcast %cst_8 : f32 to vector<512x128xf32>
    %15 = arith.mulf %14, %13 : vector<512x128xf32>
    %16 = math.tanh %15 : vector<512x128xf32>
    %cst_9 = arith.constant 1.000000e+00 : f32
    %17 = vector.broadcast %cst_9 : f32 to vector<512x128xf32>
    %18 = arith.addf %17, %16 : vector<512x128xf32>
    %19 = arith.mulf %8, %18 : vector<512x128xf32>
    %cst_10 = arith.constant 0.000000e+00 : f32
    %20 = vector.broadcast %cst_10 : f32 to vector<8x1x10x128xf32>
    %c0_11 = arith.constant 0 : index
    %c0_12 = arith.constant 0 : index
    %c0_13 = arith.constant 0 : index
    %c0_14 = arith.constant 0 : index
    %21 = vector.load %arg9[%c0_11, %c0_12, %c0_13, %c0_14] : memref<8x10x10x128xf32, #tpu.memory_space<vmem>>, vector<8x1x10x128xf32>
    tpu.vector_store %arg9[%c0_11, %c0_12, %c0_13, %c0_14], %20 {strides = array<i32>} : memref<8x10x10x128xf32, #tpu.memory_space<vmem>>, vector<8x1x10x128xf32>,
    %cst_15 = arith.constant 0.000000e+00 : f32
    %22 = vector.broadcast %cst_15 : f32 to vector<8x1x10x128xf32>
    %c0_16 = arith.constant 0 : index
    %c9 = arith.constant 9 : index
    %c0_17 = arith.constant 0 : index
    %c0_18 = arith.constant 0 : index
    %23 = vector.load %arg9[%c0_16, %c9, %c0_17, %c0_18] : memref<8x10x10x128xf32, #tpu.memory_space<vmem>>, vector<8x1x10x128xf32>
    tpu.vector_store %arg9[%c0_16, %c9, %c0_17, %c0_18], %22 {strides = array<i32>} : memref<8x10x10x128xf32, #tpu.memory_space<vmem>>, vector<8x1x10x128xf32>,
    %cst_19 = arith.constant 0.000000e+00 : f32
    %24 = vector.broadcast %cst_19 : f32 to vector<8x8x1x128xf32>
    %c0_20 = arith.constant 0 : index
    %c1 = arith.constant 1 : index
    %c0_21 = arith.constant 0 : index
    %c0_22 = arith.constant 0 : index
    %25 = vector.load %arg9[%c0_20, %c1, %c0_21, %c0_22] : memref<8x10x10x128xf32, #tpu.memory_space<vmem>>, vector<8x8x1x128xf32>
    tpu.vector_store %arg9[%c0_20, %c1, %c0_21, %c0_22], %24 {strides = array<i32>} : memref<8x10x10x128xf32, #tpu.memory_space<vmem>>, vector<8x8x1x128xf32>,
    %cst_23 = arith.constant 0.000000e+00 : f32
    %26 = vector.broadcast %cst_23 : f32 to vector<8x8x1x128xf32>
    %c0_24 = arith.constant 0 : index
    %c1_25 = arith.constant 1 : index
    %c9_26 = arith.constant 9 : index
    %c0_27 = arith.constant 0 : index
    %27 = vector.load %arg9[%c0_24, %c1_25, %c9_26, %c0_27] : memref<8x10x10x128xf32, #tpu.memory_space<vmem>>, vector<8x8x1x128xf32>
    tpu.vector_store %arg9[%c0_24, %c1_25, %c9_26, %c0_27], %26 {strides = array<i32>} : memref<8x10x10x128xf32, #tpu.memory_space<vmem>>, vector<8x8x1x128xf32>,
    %28 = vector.shape_cast %19 : vector<512x128xf32> to vector<8x8x8x128xf32>
    %c0_28 = arith.constant 0 : index
    %c1_29 = arith.constant 1 : index
    %c1_30 = arith.constant 1 : index
    %c0_31 = arith.constant 0 : index
    %29 = vector.load %arg9[%c0_28, %c1_29, %c1_30, %c0_31] : memref<8x10x10x128xf32, #tpu.memory_space<vmem>>, vector<8x8x8x128xf32>
    tpu.vector_store %arg9[%c0_28, %c1_29, %c1_30, %c0_31], %28 {strides = array<i32>} : memref<8x10x10x128xf32, #tpu.memory_space<vmem>>, vector<8x8x8x128xf32>,
    %c0_32 = arith.constant 0 : index
    %c0_33 = arith.constant 0 : index
    %30 = vector.load %arg4[%c0_32, %c0_33] : memref<9x128xf32, #tpu.memory_space<vmem>>, vector<9x128xf32>
    %c0_34 = arith.constant 0 : index
    %c0_35 = arith.constant 0 : index
    %31 = vector.load %arg5[%c0_34, %c0_35] : memref<1x128xf32, #tpu.memory_space<vmem>>, vector<1x128xf32>
    %32 = vector.shape_cast %31 : vector<1x128xf32> to vector<1x1x1x128xf32>
    %33 = vector.broadcast %32 : vector<1x1x1x128xf32> to vector<8x8x8x128xf32>
    %34 = vector.extract_strided_slice %30 {offsets = [0, 0], sizes = [1, 128], strides = [1, 1]} : vector<9x128xf32> to vector<1x128xf32>
    %35 = vector.shape_cast %34 : vector<1x128xf32> to vector<128xf32>
    %c0_36 = arith.constant 0 : index
    %c0_37 = arith.constant 0 : index
    %c0_38 = arith.constant 0 : index
    %c0_39 = arith.constant 0 : index
    %36 = vector.load %arg9[%c0_36, %c0_37, %c0_38, %c0_39] : memref<8x10x10x128xf32, #tpu.memory_space<vmem>>, vector<8x8x8x128xf32>
    %37 = vector.shape_cast %35 : vector<128xf32> to vector<1x1x1x128xf32>
    %38 = vector.broadcast %37 : vector<1x1x1x128xf32> to vector<8x8x8x128xf32>
    %39 = arith.mulf %38, %36 : vector<8x8x8x128xf32>
    %40 = arith.addf %33, %39 : vector<8x8x8x128xf32>
    %41 = vector.extract_strided_slice %30 {offsets = [1, 0], sizes = [1, 128], strides = [1, 1]} : vector<9x128xf32> to vector<1x128xf32>
    %42 = vector.shape_cast %41 : vector<1x128xf32> to vector<128xf32>
    %c0_40 = arith.constant 0 : index
    %c0_41 = arith.constant 0 : index
    %c1_42 = arith.constant 1 : index
    %c0_43 = arith.constant 0 : index
    %43 = vector.load %arg9[%c0_40, %c0_41, %c1_42, %c0_43] : memref<8x10x10x128xf32, #tpu.memory_space<vmem>>, vector<8x8x8x128xf32>
    %44 = vector.shape_cast %42 : vector<128xf32> to vector<1x1x1x128xf32>
    %45 = vector.broadcast %44 : vector<1x1x1x128xf32> to vector<8x8x8x128xf32>
    %46 = arith.mulf %45, %43 : vector<8x8x8x128xf32>
    %47 = arith.addf %40, %46 : vector<8x8x8x128xf32>
    %48 = vector.extract_strided_slice %30 {offsets = [2, 0], sizes = [1, 128], strides = [1, 1]} : vector<9x128xf32> to vector<1x128xf32>
    %49 = vector.shape_cast %48 : vector<1x128xf32> to vector<128xf32>
    %c0_44 = arith.constant 0 : index
    %c0_45 = arith.constant 0 : index
    %c2 = arith.constant 2 : index
    %c0_46 = arith.constant 0 : index
    %50 = vector.load %arg9[%c0_44, %c0_45, %c2, %c0_46] : memref<8x10x10x128xf32, #tpu.memory_space<vmem>>, vector<8x8x8x128xf32>
    %51 = vector.shape_cast %49 : vector<128xf32> to vector<1x1x1x128xf32>
    %52 = vector.broadcast %51 : vector<1x1x1x128xf32> to vector<8x8x8x128xf32>
    %53 = arith.mulf %52, %50 : vector<8x8x8x128xf32>
    %54 = arith.addf %47, %53 : vector<8x8x8x128xf32>
    %55 = vector.extract_strided_slice %30 {offsets = [3, 0], sizes = [1, 128], strides = [1, 1]} : vector<9x128xf32> to vector<1x128xf32>
    %56 = vector.shape_cast %55 : vector<1x128xf32> to vector<128xf32>
    %c0_47 = arith.constant 0 : index
    %c1_48 = arith.constant 1 : index
    %c0_49 = arith.constant 0 : index
    %c0_50 = arith.constant 0 : index
    %57 = vector.load %arg9[%c0_47, %c1_48, %c0_49, %c0_50] : memref<8x10x10x128xf32, #tpu.memory_space<vmem>>, vector<8x8x8x128xf32>
    %58 = vector.shape_cast %56 : vector<128xf32> to vector<1x1x1x128xf32>
    %59 = vector.broadcast %58 : vector<1x1x1x128xf32> to vector<8x8x8x128xf32>
    %60 = arith.mulf %59, %57 : vector<8x8x8x128xf32>
    %61 = arith.addf %54, %60 : vector<8x8x8x128xf32>
    %62 = vector.extract_strided_slice %30 {offsets = [4, 0], sizes = [1, 128], strides = [1, 1]} : vector<9x128xf32> to vector<1x128xf32>
    %63 = vector.shape_cast %62 : vector<1x128xf32> to vector<128xf32>
    %c0_51 = arith.constant 0 : index
    %c1_52 = arith.constant 1 : index
    %c1_53 = arith.constant 1 : index
    %c0_54 = arith.constant 0 : index
    %64 = vector.load %arg9[%c0_51, %c1_52, %c1_53, %c0_54] : memref<8x10x10x128xf32, #tpu.memory_space<vmem>>, vector<8x8x8x128xf32>
    %65 = vector.shape_cast %63 : vector<128xf32> to vector<1x1x1x128xf32>
    %66 = vector.broadcast %65 : vector<1x1x1x128xf32> to vector<8x8x8x128xf32>
    %67 = arith.mulf %66, %64 : vector<8x8x8x128xf32>
    %68 = arith.addf %61, %67 : vector<8x8x8x128xf32>
    %69 = vector.extract_strided_slice %30 {offsets = [5, 0], sizes = [1, 128], strides = [1, 1]} : vector<9x128xf32> to vector<1x128xf32>
    %70 = vector.shape_cast %69 : vector<1x128xf32> to vector<128xf32>
    %c0_55 = arith.constant 0 : index
    %c1_56 = arith.constant 1 : index
    %c2_57 = arith.constant 2 : index
    %c0_58 = arith.constant 0 : index
    %71 = vector.load %arg9[%c0_55, %c1_56, %c2_57, %c0_58] : memref<8x10x10x128xf32, #tpu.memory_space<vmem>>, vector<8x8x8x128xf32>
    %72 = vector.shape_cast %70 : vector<128xf32> to vector<1x1x1x128xf32>
    %73 = vector.broadcast %72 : vector<1x1x1x128xf32> to vector<8x8x8x128xf32>
    %74 = arith.mulf %73, %71 : vector<8x8x8x128xf32>
    %75 = arith.addf %68, %74 : vector<8x8x8x128xf32>
    %76 = vector.extract_strided_slice %30 {offsets = [6, 0], sizes = [1, 128], strides = [1, 1]} : vector<9x128xf32> to vector<1x128xf32>
    %77 = vector.shape_cast %76 : vector<1x128xf32> to vector<128xf32>
    %c0_59 = arith.constant 0 : index
    %c2_60 = arith.constant 2 : index
    %c0_61 = arith.constant 0 : index
    %c0_62 = arith.constant 0 : index
    %78 = vector.load %arg9[%c0_59, %c2_60, %c0_61, %c0_62] : memref<8x10x10x128xf32, #tpu.memory_space<vmem>>, vector<8x8x8x128xf32>
    %79 = vector.shape_cast %77 : vector<128xf32> to vector<1x1x1x128xf32>
    %80 = vector.broadcast %79 : vector<1x1x1x128xf32> to vector<8x8x8x128xf32>
    %81 = arith.mulf %80, %78 : vector<8x8x8x128xf32>
    %82 = arith.addf %75, %81 : vector<8x8x8x128xf32>
    %83 = vector.extract_strided_slice %30 {offsets = [7, 0], sizes = [1, 128], strides = [1, 1]} : vector<9x128xf32> to vector<1x128xf32>
    %84 = vector.shape_cast %83 : vector<1x128xf32> to vector<128xf32>
    %c0_63 = arith.constant 0 : index
    %c2_64 = arith.constant 2 : index
    %c1_65 = arith.constant 1 : index
    %c0_66 = arith.constant 0 : index
    %85 = vector.load %arg9[%c0_63, %c2_64, %c1_65, %c0_66] : memref<8x10x10x128xf32, #tpu.memory_space<vmem>>, vector<8x8x8x128xf32>
    %86 = vector.shape_cast %84 : vector<128xf32> to vector<1x1x1x128xf32>
    %87 = vector.broadcast %86 : vector<1x1x1x128xf32> to vector<8x8x8x128xf32>
    %88 = arith.mulf %87, %85 : vector<8x8x8x128xf32>
    %89 = arith.addf %82, %88 : vector<8x8x8x128xf32>
    %90 = vector.extract_strided_slice %30 {offsets = [8, 0], sizes = [1, 128], strides = [1, 1]} : vector<9x128xf32> to vector<1x128xf32>
    %91 = vector.shape_cast %90 : vector<1x128xf32> to vector<128xf32>
    %c0_67 = arith.constant 0 : index
    %c2_68 = arith.constant 2 : index
    %c2_69 = arith.constant 2 : index
    %c0_70 = arith.constant 0 : index
    %92 = vector.load %arg9[%c0_67, %c2_68, %c2_69, %c0_70] : memref<8x10x10x128xf32, #tpu.memory_space<vmem>>, vector<8x8x8x128xf32>
    %93 = vector.shape_cast %91 : vector<128xf32> to vector<1x1x1x128xf32>
    %94 = vector.broadcast %93 : vector<1x1x1x128xf32> to vector<8x8x8x128xf32>
    %95 = arith.mulf %94, %92 : vector<8x8x8x128xf32>
    %96 = arith.addf %89, %95 : vector<8x8x8x128xf32>
    %cst_71 = arith.constant 5.000000e-01 : f32
    %97 = vector.broadcast %cst_71 : f32 to vector<8x8x8x128xf32>
    %98 = arith.mulf %97, %96 : vector<8x8x8x128xf32>
    %99 = arith.mulf %96, %96 : vector<8x8x8x128xf32>
    %100 = arith.mulf %99, %96 : vector<8x8x8x128xf32>
    %cst_72 = arith.constant 4.471500e-02 : f32
    %101 = vector.broadcast %cst_72 : f32 to vector<8x8x8x128xf32>
    %102 = arith.mulf %101, %100 : vector<8x8x8x128xf32>
    %103 = arith.addf %96, %102 : vector<8x8x8x128xf32>
    %cst_73 = arith.constant 0.797884583 : f32
    %104 = vector.broadcast %cst_73 : f32 to vector<8x8x8x128xf32>
    %105 = arith.mulf %104, %103 : vector<8x8x8x128xf32>
    %106 = math.tanh %105 : vector<8x8x8x128xf32>
    %cst_74 = arith.constant 1.000000e+00 : f32
    %107 = vector.broadcast %cst_74 : f32 to vector<8x8x8x128xf32>
    %108 = arith.addf %107, %106 : vector<8x8x8x128xf32>
    %109 = arith.mulf %98, %108 : vector<8x8x8x128xf32>
    %110 = vector.shape_cast %109 : vector<8x8x8x128xf32> to vector<512x128xf32>
    %111 = arith.truncf %110 : vector<512x128xf32> to vector<512x128xbf16>
    %c0_75 = arith.constant 0 : index
    %c0_76 = arith.constant 0 : index
    %112 = vector.load %arg6[%c0_75, %c0_76] : memref<128x128xbf16, #tpu.memory_space<vmem>>, vector<128x128xbf16>
    %cst_77 = arith.constant dense<0.000000e+00> : vector<512x128xf32>
    %113 = tpu.matmul %111, %112, %cst_77 {dimension_numbers = #tpu.dot_dimension_numbers<[1], [0], [0], [1], [0, 0, 1, 1], [], []>} : vector<512x128xbf16>, vector<128x128xbf16>, vector<512x128xf32> -> vector<512x128xf32>
    %c0_78 = arith.constant 0 : index
    %c0_79 = arith.constant 0 : index
    %114 = vector.load %arg7[%c0_78, %c0_79] : memref<1x128xf32, #tpu.memory_space<vmem>>, vector<1x128xf32>
    %115 = vector.broadcast %114 : vector<1x128xf32> to vector<512x128xf32>
    %116 = arith.addf %113, %115 : vector<512x128xf32>
    %117 = vector.shape_cast %116 : vector<512x128xf32> to vector<8x64x128xf32>
    %118 = arith.truncf %117 : vector<8x64x128xf32> to vector<8x64x128xbf16>
    %c0_80 = arith.constant 0 : index
    %c0_81 = arith.constant 0 : index
    %c0_82 = arith.constant 0 : index
    %119 = vector.load %arg8[%c0_80, %c0_81, %c0_82] : memref<8x64x128xbf16, #tpu.memory_space<vmem>>, vector<8x64x128xbf16>
    tpu.vector_store %arg8[%c0_80, %c0_81, %c0_82], %118 {strides = array<i32>} : memref<8x64x128xbf16, #tpu.memory_space<vmem>>, vector<8x64x128xbf16>,
    return
  }
  func.func @transform_0(%arg0: i32) -> (i32, i32, i32) {
    %c0_i32 = arith.constant 0 : i32
    %c0_i32_0 = arith.constant 0 : i32
    %c0_i32_1 = arith.constant 0 : i32
    return %arg0, %c0_i32, %c0_i32_0 : i32, i32, i32
  }
  func.func @transform_1(%arg0: i32) -> (i32, i32) {
    %c0_i32 = arith.constant 0 : i32
    %c0_i32_0 = arith.constant 0 : i32
    %c0_i32_1 = arith.constant 0 : i32
    return %c0_i32, %c0_i32_0 : i32, i32
  }
  func.func @transform_2(%arg0: i32) -> (i32, i32) {
    %c0_i32 = arith.constant 0 : i32
    %c0_i32_0 = arith.constant 0 : i32
    %c0_i32_1 = arith.constant 0 : i32
    return %c0_i32, %c0_i32_0 : i32, i32
  }
  func.func @transform_3(%arg0: i32) -> (i32, i32) {
    %c0_i32 = arith.constant 0 : i32
    %c0_i32_0 = arith.constant 0 : i32
    %c0_i32_1 = arith.constant 0 : i32
    return %c0_i32, %c0_i32_0 : i32, i32
  }
  func.func @transform_4(%arg0: i32) -> (i32, i32) {
    %c0_i32 = arith.constant 0 : i32
    %c0_i32_0 = arith.constant 0 : i32
    %c0_i32_1 = arith.constant 0 : i32
    return %c0_i32, %c0_i32_0 : i32, i32
  }
  func.func @transform_5(%arg0: i32) -> (i32, i32) {
    %c0_i32 = arith.constant 0 : i32
    %c0_i32_0 = arith.constant 0 : i32
    %c0_i32_1 = arith.constant 0 : i32
    return %c0_i32, %c0_i32_0 : i32, i32
  }
  func.func @transform_6(%arg0: i32) -> (i32, i32) {
    %c0_i32 = arith.constant 0 : i32
    %c0_i32_0 = arith.constant 0 : i32
    %c0_i32_1 = arith.constant 0 : i32
    return %c0_i32, %c0_i32_0 : i32, i32
  }
  func.func @transform_7(%arg0: i32) -> (i32, i32, i32) {
    %c0_i32 = arith.constant 0 : i32
    %c0_i32_0 = arith.constant 0 : i32
    %c0_i32_1 = arith.constant 0 : i32
    return %arg0, %c0_i32, %c0_i32_0 : i32, i32, i32
  }
}

</mosaic_0001>

<llo_original>
// kernel: tpu_custom_call.1
$region0: #{tpu_custom_call.1}
  #allocation0 [shape = 'u32[]', space=smem, size = 0x4, offset = 0x4, fixed_abs, tag = 'smem constant byte address 0x4 - core index']
  #allocation1 [shape = 'u32[144,128]{1,0:T(1,128)}', space=vmem, size = 0x12000, scoped, tag = 'internal scratch']
  #allocation2 [shape = 'f32[8,10,10,128]{3,2,1,0:T(8,128)}', space=vmem, size = 0xa0000, scoped, tag = 'scratch operand']
  %s0 = inlined_call_operand.hbm [shape: bf16[8,64,128], index: 0, kind: input, shape index: {}]
  %s1 = inlined_call_operand.hbm [shape: bf16[128,128], index: 1, kind: input, shape index: {}]
  %s2 = inlined_call_operand.vmem [shape: f32[1,128], index: 2, kind: input, shape index: {}]
  %s3 = inlined_call_operand.hbm [shape: f32[9,128], index: 3, kind: input, shape index: {}]
  %s4 = inlined_call_operand.vmem [shape: f32[1,128], index: 4, kind: input, shape index: {}]
  %s5 = inlined_call_operand.hbm [shape: bf16[128,128], index: 5, kind: input, shape index: {}]
  %s6 = inlined_call_operand.vmem [shape: f32[1,128], index: 6, kind: input, shape index: {}]
  %s7 = inlined_call_operand.hbm [shape: bf16[8,64,128], index: 7, kind: output, shape index: {}]
  %s8 = sld [smem:[#allocation0]]
  $region54: #{tpu_custom_call.1} parent=0
    _
  %s10 = ssub.s32 1, %s8
  %s11 = scalar_select 0, %s10, %s8
  $region1: #{tpu_custom_call.1} parent=0
    #allocation3 [shape = 'u8[131072]{0}', space=vmem, size = 0x20000, scoped, tag = 'input window, operand 0, single buffered']
    #allocation4 [shape = 's32[1]{0}', space=sflag, size = 0x4, scoped, tag = 'scoped memory for tpu_custom_call.1']
    #allocation5 [shape = 's32[1]{0}', space=sflag, size = 0x4, scoped, tag = 'scoped memory for tpu_custom_call.1']
    #allocation6 [shape = 'u8[32768]{0}', space=vmem, size = 0x8000, scoped, tag = 'input window, operand 1, single buffered']
    #allocation7 [shape = 's32[1]{0}', space=sflag, size = 0x4, scoped, tag = 'scoped memory for tpu_custom_call.1']
    #allocation8 [shape = 'u8[8192]{0}', space=vmem, size = 0x2000, scoped, tag = 'input window, operand 3, single buffered']
    #allocation9 [shape = 'u8[32768]{0}', space=vmem, size = 0x8000, scoped, tag = 'input window, operand 5, single buffered']
    #allocation10 [shape = 's32[1]{0}', space=sflag, size = 0x4, scoped, tag = 'scoped memory for tpu_custom_call.1']
    #allocation11 [shape = 'u8[131072]{0}', space=vmem, size = 0x20000, scoped, tag = 'output window, operand 0, single buffered']
    %12 = vsyncpa [#allocation4], 0
    %13 = vsyncpa [#allocation7], 0
    %14 = vsyncpa [#allocation10], 0
    %15 = vsyncpa [#allocation5], 0
    // Predicated region
    $region2: #{tpu_custom_call.1} parent=1 // pred_check
      _
    $region3: #{tpu_custom_call.1} parent=1 // pred_check_branch
      %17 = sbr.rel (0) target = $region5
    $region4: #{tpu_custom_call.1} parent=1 // pred_region
      %s19 = ssub.s32 4096, 4096
      %20 = vsyncadd [#allocation4], %s19
      %s21 = sshll.u32 [#allocation3], 4
      %s22 = int_to_ptr.vmem [resolvable:$true] %s21
      %27 = dma.hbm_to_vmem [thread:$0]  %s0, 4096, %s22, [#allocation4], 64, 64, 4
    $region5: #{tpu_custom_call.1} parent=1 // pred_fallthru
      _
    // Predicated region
    $region6: #{tpu_custom_call.1} parent=1 // pred_check
      _
    $region7: #{tpu_custom_call.1} parent=1 // pred_check_branch
      %29 = sbr.rel (0) target = $region9
    $region8: #{tpu_custom_call.1} parent=1 // pred_region
      %s31 = ssub.s32 1024, 1024
      %32 = vsyncadd [#allocation7], %s31
      %s33 = sshll.u32 [#allocation6], 4
      %s34 = int_to_ptr.vmem [resolvable:$true] %s33
      %39 = dma.hbm_to_vmem [thread:$0]  %s1, 1024, %s34, [#allocation7], 64, 64, 4
    $region9: #{tpu_custom_call.1} parent=1 // pred_fallthru
      _
    // Predicated region
    $region10: #{tpu_custom_call.1} parent=1 // pred_check
      _
    $region11: #{tpu_custom_call.1} parent=1 // pred_check_branch
      %41 = sbr.rel (0) target = $region13
    $region12: #{tpu_custom_call.1} parent=1 // pred_region
      _
    $region13: #{tpu_custom_call.1} parent=1 // pred_fallthru
      _
    // Predicated region
    $region14: #{tpu_custom_call.1} parent=1 // pred_check
      _
    $region15: #{tpu_custom_call.1} parent=1 // pred_check_branch
      %43 = sbr.rel (0) target = $region17
    $region16: #{tpu_custom_call.1} parent=1 // pred_region
      %s45 = ssub.s32 256, 256
      %46 = vsyncadd [#allocation7], %s45
      %s47 = sshll.u32 [#allocation8], 4
      %s48 = int_to_ptr.vmem [resolvable:$true] %s47
      %53 = dma.hbm_to_vmem [thread:$0]  %s3, 256, %s48, [#allocation7], 128, 128, 8
    $region17: #{tpu_custom_call.1} parent=1 // pred_fallthru
      _
    // Predicated region
    $region18: #{tpu_custom_call.1} parent=1 // pred_check
      _
    $region19: #{tpu_custom_call.1} parent=1 // pred_check_branch
      %55 = sbr.rel (0) target = $region21
    $region20: #{tpu_custom_call.1} parent=1 // pred_region
      _
    $region21: #{tpu_custom_call.1} parent=1 // pred_fallthru
      _
    // Predicated region
    $region22: #{tpu_custom_call.1} parent=1 // pred_check
      _
    $region23: #{tpu_custom_call.1} parent=1 // pred_check_branch
      %57 = sbr.rel (0) target = $region25
    $region24: #{tpu_custom_call.1} parent=1 // pred_region
      %s59 = ssub.s32 1024, 1024
      %60 = vsyncadd [#allocation10], %s59
      %s61 = sshll.u32 [#allocation9], 4
      %s62 = int_to_ptr.vmem [resolvable:$true] %s61
      %67 = dma.hbm_to_vmem [thread:$0]  %s5, 1024, %s62, [#allocation10], 64, 64, 4
    $region25: #{tpu_custom_call.1} parent=1 // pred_fallthru
      _
    // Predicated region
    $region26: #{tpu_custom_call.1} parent=1 // pred_check
      _
    $region27: #{tpu_custom_call.1} parent=1 // pred_check_branch
      %69 = sbr.rel (0) target = $region29
    $region28: #{tpu_custom_call.1} parent=1 // pred_region
      _
    $region29: #{tpu_custom_call.1} parent=1 // pred_fallthru
      _
    // Predicated region
    $region30: #{tpu_custom_call.1} parent=1 // pred_check
      _
    $region31: #{tpu_custom_call.1} parent=1 // pred_check_branch
      %71 = sbr.rel (0) target = $region33
    $region32: #{tpu_custom_call.1} parent=1 // pred_region
      %72 = dma.done [#allocation4], 4096
    $region33: #{tpu_custom_call.1} parent=1 // pred_fallthru
      _
    // Predicated region
    $region34: #{tpu_custom_call.1} parent=1 // pred_check
      _
    $region35: #{tpu_custom_call.1} parent=1 // pred_check_branch
      %74 = sbr.rel (0) target = $region37
    $region36: #{tpu_custom_call.1} parent=1 // pred_region
      %75 = dma.done [#allocation7], 1024
    $region37: #{tpu_custom_call.1} parent=1 // pred_fallthru
      _
    // Predicated region
    $region38: #{tpu_custom_call.1} parent=1 // pred_check
      _
    $region39: #{tpu_custom_call.1} parent=1 // pred_check_branch
      %77 = sbr.rel (0) target = $region41
    $region40: #{tpu_custom_call.1} parent=1 // pred_region
      %78 = dma.done [#allocation7], 256
    $region41: #{tpu_custom_call.1} parent=1 // pred_fallthru
      _
    // Predicated region
    $region42: #{tpu_custom_call.1} parent=1 // pred_check
      _
    $region43: #{tpu_custom_call.1} parent=1 // pred_check_branch
      %80 = sbr.rel (0) target = $region45
    $region44: #{tpu_custom_call.1} parent=1 // pred_region
      %81 = dma.done [#allocation10], 1024
    $region45: #{tpu_custom_call.1} parent=1 // pred_fallthru
      _
    %v83 = vld [vmem:[#allocation3] sm:$0xf]
    %v84 = vld [vmem:[#allocation3 + $0x4] sm:$0xf]
    %v85 = vld [vmem:[#allocation3 + $0x8] sm:$0xf]
    %v86 = vld [vmem:[#allocation3 + $0xc] sm:$0xf]
    %v87 = vld [vmem:[#allocation3 + $0x10] sm:$0xf]
    %v88 = vld [vmem:[#allocation3 + $0x14] sm:$0xf]
    %v89 = vld [vmem:[#allocation3 + $0x18] sm:$0xf]
    %v90 = vld [vmem:[#allocation3 + $0x1c] sm:$0xf]
    %v91 = vld [vmem:[#allocation3 + $0x20] sm:$0xf]
    %v92 = vld [vmem:[#allocation3 + $0x24] sm:$0xf]
    %v93 = vld [vmem:[#allocation3 + $0x28] sm:$0xf]
    %v94 = vld [vmem:[#allocation3 + $0x2c] sm:$0xf]
    %v95 = vld [vmem:[#allocation3 + $0x30] sm:$0xf]
    %v96 = vld [vmem:[#allocation3 + $0x34] sm:$0xf]
    %v97 = vld [vmem:[#allocation3 + $0x38] sm:$0xf]
    %v98 = vld [vmem:[#allocation3 + $0x3c] sm:$0xf]
    %v99 = vld [vmem:[#allocation3 + $0x40] sm:$0xf]
    %v100 = vld [vmem:[#allocation3 + $0x44] sm:$0xf]
    %v101 = vld [vmem:[#allocation3 + $0x48] sm:$0xf]
    %v102 = vld [vmem:[#allocation3 + $0x4c] sm:$0xf]
    %v103 = vld [vmem:[#allocation3 + $0x50] sm:$0xf]
    %v104 = vld [vmem:[#allocation3 + $0x54] sm:$0xf]
    %v105 = vld [vmem:[#allocation3 + $0x58] sm:$0xf]
    %v106 = vld [vmem:[#allocation3 + $0x5c] sm:$0xf]
    %v107 = vld [vmem:[#allocation3 + $0x60] sm:$0xf]
    %v108 = vld [vmem:[#allocation3 + $0x64] sm:$0xf]
    %v109 = vld [vmem:[#allocation3 + $0x68] sm:$0xf]
    %v110 = vld [vmem:[#allocation3 + $0x6c] sm:$0xf]
    %v111 = vld [vmem:[#allocation3 + $0x70] sm:$0xf]
    %v112 = vld [vmem:[#allocation3 + $0x74] sm:$0xf]
    %v113 = vld [vmem:[#allocation3 + $0x78] sm:$0xf]
    %v114 = vld [vmem:[#allocation3 + $0x7c] sm:$0xf]
    %v115 = vld [vmem:[#allocation3 + $0x80] sm:$0xf]
    %v116 = vld [vmem:[#allocation3 + $0x84] sm:$0xf]
    %v117 = vld [vmem:[#allocation3 + $0x88] sm:$0xf]
    %v118 = vld [vmem:[#allocation3 + $0x8c] sm:$0xf]
    %v119 = vld [vmem:[#allocation3 + $0x90] sm:$0xf]
    %v120 = vld [vmem:[#allocation3 + $0x94] sm:$0xf]
    %v121 = vld [vmem:[#allocation3 + $0x98] sm:$0xf]
    %v122 = vld [vmem:[#allocation3 + $0x9c] sm:$0xf]
    %v123 = vld [vmem:[#allocation3 + $0xa0] sm:$0xf]
    %v124 = vld [vmem:[#allocation3 + $0xa4] sm:$0xf]
    %v125 = vld [vmem:[#allocation3 + $0xa8] sm:$0xf]
    %v126 = vld [vmem:[#allocation3 + $0xac] sm:$0xf]
    %v127 = vld [vmem:[#allocation3 + $0xb0] sm:$0xf]
    %v128 = vld [vmem:[#allocation3 + $0xb4] sm:$0xf]
    %v129 = vld [vmem:[#allocation3 + $0xb8] sm:$0xf]
    %v130 = vld [vmem:[#allocation3 + $0xbc] sm:$0xf]
    %v131 = vld [vmem:[#allocation3 + $0xc0] sm:$0xf]
    %v132 = vld [vmem:[#allocation3 + $0xc4] sm:$0xf]
    %v133 = vld [vmem:[#allocation3 + $0xc8] sm:$0xf]
    %v134 = vld [vmem:[#allocation3 + $0xcc] sm:$0xf]
    %v135 = vld [vmem:[#allocation3 + $0xd0] sm:$0xf]
    %v136 = vld [vmem:[#allocation3 + $0xd4] sm:$0xf]
    %v137 = vld [vmem:[#allocation3 + $0xd8] sm:$0xf]
    %v138 = vld [vmem:[#allocation3 + $0xdc] sm:$0xf]
    %v139 = vld [vmem:[#allocation3 + $0xe0] sm:$0xf]
    %v140 = vld [vmem:[#allocation3 + $0xe4] sm:$0xf]
    %v141 = vld [vmem:[#allocation3 + $0xe8] sm:$0xf]
    %v142 = vld [vmem:[#allocation3 + $0xec] sm:$0xf]
    %v143 = vld [vmem:[#allocation3 + $0xf0] sm:$0xf]
    %v144 = vld [vmem:[#allocation3 + $0xf4] sm:$0xf]
    %v145 = vld [vmem:[#allocation3 + $0xf8] sm:$0xf]
    %v146 = vld [vmem:[#allocation3 + $0xfc] sm:$0xf]
    %v147 = vld [vmem:[#allocation6] sm:$0xf]
    %v148 = vld [vmem:[#allocation6 + $0x4] sm:$0xf]
    %v149 = vld [vmem:[#allocation6 + $0x8] sm:$0xf]
    %v150 = vld [vmem:[#allocation6 + $0xc] sm:$0xf]
    %v151 = vld [vmem:[#allocation6 + $0x10] sm:$0xf]
    %v152 = vld [vmem:[#allocation6 + $0x14] sm:$0xf]
    %v153 = vld [vmem:[#allocation6 + $0x18] sm:$0xf]
    %v154 = vld [vmem:[#allocation6 + $0x1c] sm:$0xf]
    %v155 = vld [vmem:[#allocation6 + $0x20] sm:$0xf]
    %v156 = vld [vmem:[#allocation6 + $0x24] sm:$0xf]
    %v157 = vld [vmem:[#allocation6 + $0x28] sm:$0xf]
    %v158 = vld [vmem:[#allocation6 + $0x2c] sm:$0xf]
    %v159 = vld [vmem:[#allocation6 + $0x30] sm:$0xf]
    %v160 = vld [vmem:[#allocation6 + $0x34] sm:$0xf]
    %v161 = vld [vmem:[#allocation6 + $0x38] sm:$0xf]
    %v162 = vld [vmem:[#allocation6 + $0x3c] sm:$0xf]
    %v163 = vld [vmem:[%s2] sm:$0x1]
    %v165 = vlaneseq
    %v166 = vshrl.u32 %v165, 7
    %v167 = vsub.s32 0, %v166
    %v168 = vrot.slane %v163, %v167
    %v234 = vunpack.c.l.b16 %v83
    %v235 = vunpack.c.l.b16 %v84
    %v236 = vunpack.c.l.b16 %v85
    %v237 = vunpack.c.l.b16 %v86
    %v238 = vunpack.c.l.b16 %v87
    %v239 = vunpack.c.l.b16 %v88
    %v240 = vunpack.c.l.b16 %v89
    %v241 = vunpack.c.l.b16 %v90
    %v242 = vunpack.c.l.b16 %v91
    %v243 = vunpack.c.l.b16 %v92
    %v244 = vunpack.c.l.b16 %v93
    %v245 = vunpack.c.l.b16 %v94
    %v246 = vunpack.c.l.b16 %v95
    %v247 = vunpack.c.l.b16 %v96
    %v248 = vunpack.c.l.b16 %v97
    %v249 = vunpack.c.l.b16 %v98
    %v250 = vunpack.c.l.b16 %v99
    %v251 = vunpack.c.l.b16 %v100
    %v252 = vunpack.c.l.b16 %v101
    %v253 = vunpack.c.l.b16 %v102
    %v254 = vunpack.c.l.b16 %v103
    %v255 = vunpack.c.l.b16 %v104
    %v256 = vunpack.c.l.b16 %v105
    %v257 = vunpack.c.l.b16 %v106
    %v258 = vunpack.c.l.b16 %v107
    %v259 = vunpack.c.l.b16 %v108
    %v260 = vunpack.c.l.b16 %v109
    %v261 = vunpack.c.l.b16 %v110
    %v262 = vunpack.c.l.b16 %v111
    %v263 = vunpack.c.l.b16 %v112
    %v264 = vunpack.c.l.b16 %v113
    %v265 = vunpack.c.l.b16 %v114
    %v266 = vunpack.c.l.b16 %v115
    %v267 = vunpack.c.l.b16 %v116
    %v268 = vunpack.c.l.b16 %v117
    %v269 = vunpack.c.l.b16 %v118
    %v270 = vunpack.c.l.b16 %v119
    %v271 = vunpack.c.l.b16 %v120
    %v272 = vunpack.c.l.b16 %v121
    %v273 = vunpack.c.l.b16 %v122
    %v274 = vunpack.c.l.b16 %v123
    %v275 = vunpack.c.l.b16 %v124
    %v276 = vunpack.c.l.b16 %v125
    %v277 = vunpack.c.l.b16 %v126
    %v278 = vunpack.c.l.b16 %v127
    %v279 = vunpack.c.l.b16 %v128
    %v280 = vunpack.c.l.b16 %v129
    %v281 = vunpack.c.l.b16 %v130
    %v282 = vunpack.c.l.b16 %v131
    %v283 = vunpack.c.l.b16 %v132
    %v284 = vunpack.c.l.b16 %v133
    %v285 = vunpack.c.l.b16 %v134
    %v286 = vunpack.c.l.b16 %v135
    %v287 = vunpack.c.l.b16 %v136
    %v288 = vunpack.c.l.b16 %v137
    %v289 = vunpack.c.l.b16 %v138
    %v290 = vunpack.c.l.b16 %v139
    %v291 = vunpack.c.l.b16 %v140
    %v292 = vunpack.c.l.b16 %v141
    %v293 = vunpack.c.l.b16 %v142
    %v294 = vunpack.c.l.b16 %v143
    %v295 = vunpack.c.l.b16 %v144
    %v296 = vunpack.c.l.b16 %v145
    %v297 = vunpack.c.l.b16 %v146
    %v298 = vpack.c.b16 %v235, %v234
    %v299 = vpack.c.b16 %v237, %v236
    %v300 = vpack.c.b16 %v239, %v238
    %v301 = vpack.c.b16 %v241, %v240
    %v302 = vpack.c.b16 %v243, %v242
    %v303 = vpack.c.b16 %v245, %v244
    %v304 = vpack.c.b16 %v247, %v246
    %v305 = vpack.c.b16 %v249, %v248
    %v306 = vpack.c.b16 %v251, %v250
    %v307 = vpack.c.b16 %v253, %v252
    %v308 = vpack.c.b16 %v255, %v254
    %v309 = vpack.c.b16 %v257, %v256
    %v310 = vpack.c.b16 %v259, %v258
    %v311 = vpack.c.b16 %v261, %v260
    %v312 = vpack.c.b16 %v263, %v262
    %v313 = vpack.c.b16 %v265, %v264
    %v314 = vpack.c.b16 %v267, %v266
    %v315 = vpack.c.b16 %v269, %v268
    %v316 = vpack.c.b16 %v271, %v270
    %v317 = vpack.c.b16 %v273, %v272
    %v318 = vpack.c.b16 %v275, %v274
    %v319 = vpack.c.b16 %v277, %v276
    %v320 = vpack.c.b16 %v279, %v278
    %v321 = vpack.c.b16 %v281, %v280
    %v322 = vpack.c.b16 %v283, %v282
    %v323 = vpack.c.b16 %v285, %v284
    %v324 = vpack.c.b16 %v287, %v286
    %v325 = vpack.c.b16 %v289, %v288
    %v326 = vpack.c.b16 %v291, %v290
    %v327 = vpack.c.b16 %v293, %v292
    %v328 = vpack.c.b16 %v295, %v294
    %v329 = vpack.c.b16 %v297, %v296
    %v378 = vunpack.c.l.b16 %v147
    %v379 = vunpack.c.l.b16 %v148
    %v380 = vunpack.c.l.b16 %v149
    %v381 = vunpack.c.l.b16 %v150
    %v382 = vunpack.c.l.b16 %v151
    %v383 = vunpack.c.l.b16 %v152
    %v384 = vunpack.c.l.b16 %v153
    %v385 = vunpack.c.l.b16 %v154
    %v386 = vunpack.c.l.b16 %v155
    %v387 = vunpack.c.l.b16 %v156
    %v388 = vunpack.c.l.b16 %v157
    %v389 = vunpack.c.l.b16 %v158
    %v390 = vunpack.c.l.b16 %v159
    %v391 = vunpack.c.l.b16 %v160
    %v392 = vunpack.c.l.b16 %v161
    %v393 = vunpack.c.l.b16 %v162
    %v394 = vpack.c.b16 %v379, %v378
    %v395 = vpack.c.b16 %v381, %v380
    %v396 = vpack.c.b16 %v383, %v382
    %v397 = vpack.c.b16 %v385, %v384
    %v398 = vpack.c.b16 %v387, %v386
    %v399 = vpack.c.b16 %v389, %v388
    %v400 = vpack.c.b16 %v391, %v390
    %v401 = vpack.c.b16 %v393, %v392
    %410 = vmatprep.subr.bf16.mxu0 0
    %411 = vmatpush1.bf16.msra.mxu0 %v401
    %412 = vmatprep.subr.bf16.mxu0 0
    %413 = vmatpush1.bf16.msra.mxu0 %v400
    %414 = vmatprep.subr.bf16.mxu0 0
    %415 = vmatpush1.bf16.msra.mxu0 %v399
    %416 = vmatprep.subr.bf16.mxu0 0
    %417 = vmatpush1.bf16.msra.mxu0 %v398
    %418 = vmatprep.subr.bf16.mxu0 0
    %419 = vmatpush1.bf16.msra.mxu0 %v397
    %420 = vmatprep.subr.bf16.mxu0 0
    %421 = vmatpush1.bf16.msra.mxu0 %v396
    %422 = vmatprep.subr.bf16.mxu0 0
    %423 = vmatpush1.bf16.msra.mxu0 %v395
    %424 = vmatprep.subr.bf16.mxu0 0
    %425 = vmatpush1.bf16.msra.mxu0 %v394
    %426 = vmatprep.subr.bf16.mxu0 0
    %427 = vmatpush2.bf16.msra.mxu0 0
    %428 = vmatprep.subr.bf16.mxu0 0
    %429 = vmatpush2.bf16.msra.mxu0 0
    %430 = vmatprep.subr.bf16.mxu0 0
    %431 = vmatpush2.bf16.msra.mxu0 0
    %432 = vmatprep.subr.bf16.mxu0 0
    %433 = vmatpush2.bf16.msra.mxu0 0
    %434 = vmatprep.subr.bf16.mxu0 0
    %435 = vmatpush2.bf16.msra.mxu0 0
    %436 = vmatprep.subr.bf16.mxu0 0
    %437 = vmatpush2.bf16.msra.mxu0 0
    %438 = vmatprep.subr.bf16.mxu0 0
    %439 = vmatpush2.bf16.msra.mxu0 0
    %440 = vmatprep.subr.bf16.mxu0 0
    %441 = vmatpush2.bf16.msra.mxu0 0
    %442 = vmatprep.mubr.bf16.mxu0 0
    %443 = vmatmul.mubr.bf16.gmra.mxu0 %v298
    %v444 = vpop.f32.mrf.mxu0
    %v445 = vadd.f32 %v168, %v444
    %v446 = vpop.f32.mrf.mxu0
    %v447 = vpop.f32.mrf.mxu0
    %v448 = vadd.f32 %v168, %v447
    %v449 = vpop.f32.mrf.mxu0
    %450 = vmatprep.mubr.bf16.mxu0 0
    %451 = vmatmul.mubr.bf16.gmra.mxu0 %v299
    %v452 = vpop.f32.mrf.mxu0
    %v453 = vadd.f32 %v168, %v452
    %v454 = vpop.f32.mrf.mxu0
    %v455 = vpop.f32.mrf.mxu0
    %v456 = vadd.f32 %v168, %v455
    %v457 = vpop.f32.mrf.mxu0
    %458 = vmatprep.mubr.bf16.mxu0 0
    %459 = vmatmul.mubr.bf16.gmra.mxu0 %v300
    %v460 = vpop.f32.mrf.mxu0
    %v461 = vadd.f32 %v168, %v460
    %v462 = vpop.f32.mrf.mxu0
    %v463 = vpop.f32.mrf.mxu0
    %v464 = vadd.f32 %v168, %v463
    %v465 = vpop.f32.mrf.mxu0
    %466 = vmatprep.mubr.bf16.mxu0 0
    %467 = vmatmul.mubr.bf16.gmra.mxu0 %v301
    %v468 = vpop.f32.mrf.mxu0
    %v469 = vadd.f32 %v168, %v468
    %v470 = vpop.f32.mrf.mxu0
    %v471 = vpop.f32.mrf.mxu0
    %v472 = vadd.f32 %v168, %v471
    %v473 = vpop.f32.mrf.mxu0
    %474 = vmatprep.mubr.bf16.mxu0 0
    %475 = vmatmul.mubr.bf16.gmra.mxu0 %v302
    %v476 = vpop.f32.mrf.mxu0
    %v477 = vadd.f32 %v168, %v476
    %v478 = vpop.f32.mrf.mxu0
    %v479 = vpop.f32.mrf.mxu0
    %v480 = vadd.f32 %v168, %v479
    %v481 = vpop.f32.mrf.mxu0
    %482 = vmatprep.mubr.bf16.mxu0 0
    %483 = vmatmul.mubr.bf16.gmra.mxu0 %v303
    %v484 = vpop.f32.mrf.mxu0
    %v485 = vadd.f32 %v168, %v484
    %v486 = vpop.f32.mrf.mxu0
    %v487 = vpop.f32.mrf.mxu0
    %v488 = vadd.f32 %v168, %v487
    %v489 = vpop.f32.mrf.mxu0
    %490 = vmatprep.mubr.bf16.mxu0 0
    %491 = vmatmul.mubr.bf16.gmra.mxu0 %v304
    %v492 = vpop.f32.mrf.mxu0
    %v493 = vadd.f32 %v168, %v492
    %v494 = vpop.f32.mrf.mxu0
    %v495 = vpop.f32.mrf.mxu0
    %v496 = vadd.f32 %v168, %v495
    %v497 = vpop.f32.mrf.mxu0
    %498 = vmatprep.mubr.bf16.mxu0 0
    %499 = vmatmul.mubr.bf16.gmra.mxu0 %v305
    %v500 = vpop.f32.mrf.mxu0
    %v501 = vadd.f32 %v168, %v500
    %v502 = vpop.f32.mrf.mxu0
    %v503 = vpop.f32.mrf.mxu0
    %v504 = vadd.f32 %v168, %v503
    %v505 = vpop.f32.mrf.mxu0
    %506 = vmatprep.mubr.bf16.mxu0 0
    %507 = vmatmul.mubr.bf16.gmra.mxu0 %v306
    %v508 = vpop.f32.mrf.mxu0
    %v509 = vadd.f32 %v168, %v508
    %v510 = vpop.f32.mrf.mxu0
    %v511 = vpop.f32.mrf.mxu0
    %v512 = vadd.f32 %v168, %v511
    %v513 = vpop.f32.mrf.mxu0
    %514 = vmatprep.mubr.bf16.mxu0 0
    %515 = vmatmul.mubr.bf16.gmra.mxu0 %v307
    %v516 = vpop.f32.mrf.mxu0
    %v517 = vadd.f32 %v168, %v516
    %v518 = vpop.f32.mrf.mxu0
    %v519 = vpop.f32.mrf.mxu0
    %v520 = vadd.f32 %v168, %v519
    %v521 = vpop.f32.mrf.mxu0
    %522 = vmatprep.mubr.bf16.mxu0 0
    %523 = vmatmul.mubr.bf16.gmra.mxu0 %v308
    %v524 = vpop.f32.mrf.mxu0
    %v525 = vadd.f32 %v168, %v524
    %v526 = vpop.f32.mrf.mxu0
    %v527 = vpop.f32.mrf.mxu0
    %v528 = vadd.f32 %v168, %v527
    %v529 = vpop.f32.mrf.mxu0
    %530 = vmatprep.mubr.bf16.mxu0 0
    %531 = vmatmul.mubr.bf16.gmra.mxu0 %v309
    %v532 = vpop.f32.mrf.mxu0
    %v533 = vadd.f32 %v168, %v532
    %v534 = vpop.f32.mrf.mxu0
    %v535 = vpop.f32.mrf.mxu0
    %v536 = vadd.f32 %v168, %v535
    %v537 = vpop.f32.mrf.mxu0
    %538 = vmatprep.mubr.bf16.mxu0 0
    %539 = vmatmul.mubr.bf16.gmra.mxu0 %v310
    %v540 = vpop.f32.mrf.mxu0
    %v541 = vadd.f32 %v168, %v540
    %v542 = vpop.f32.mrf.mxu0
    %v543 = vpop.f32.mrf.mxu0
    %v544 = vadd.f32 %v168, %v543
    %v545 = vpop.f32.mrf.mxu0
    %546 = vmatprep.mubr.bf16.mxu0 0
    %547 = vmatmul.mubr.bf16.gmra.mxu0 %v311
    %v548 = vpop.f32.mrf.mxu0
    %v549 = vadd.f32 %v168, %v548
    %v550 = vpop.f32.mrf.mxu0
    %v551 = vpop.f32.mrf.mxu0
    %v552 = vadd.f32 %v168, %v551
    %v553 = vpop.f32.mrf.mxu0
    %554 = vmatprep.mubr.bf16.mxu0 0
    %555 = vmatmul.mubr.bf16.gmra.mxu0 %v312
    %v556 = vpop.f32.mrf.mxu0
    %v557 = vadd.f32 %v168, %v556
    %v558 = vpop.f32.mrf.mxu0
    %v559 = vpop.f32.mrf.mxu0
    %v560 = vadd.f32 %v168, %v559
    %v561 = vpop.f32.mrf.mxu0
    %562 = vmatprep.mubr.bf16.mxu0 0
    %563 = vmatmul.mubr.bf16.gmra.mxu0 %v313
    %v564 = vpop.f32.mrf.mxu0
    %v565 = vadd.f32 %v168, %v564
    %v566 = vpop.f32.mrf.mxu0
    %v567 = vpop.f32.mrf.mxu0
    %v568 = vadd.f32 %v168, %v567
    %v569 = vpop.f32.mrf.mxu0
    %570 = vmatprep.mubr.bf16.mxu0 0
    %571 = vmatmul.mubr.bf16.gmra.mxu0 %v314
    %v572 = vpop.f32.mrf.mxu0
    %v573 = vadd.f32 %v168, %v572
    %v574 = vpop.f32.mrf.mxu0
    %v575 = vpop.f32.mrf.mxu0
    %v576 = vadd.f32 %v168, %v575
    %v577 = vpop.f32.mrf.mxu0
    %578 = vmatprep.mubr.bf16.mxu0 0
    %579 = vmatmul.mubr.bf16.gmra.mxu0 %v315
    %v580 = vpop.f32.mrf.mxu0
    %v581 = vadd.f32 %v168, %v580
    %v582 = vpop.f32.mrf.mxu0
    %v583 = vpop.f32.mrf.mxu0
    %v584 = vadd.f32 %v168, %v583
    %v585 = vpop.f32.mrf.mxu0
    %586 = vmatprep.mubr.bf16.mxu0 0
    %587 = vmatmul.mubr.bf16.gmra.mxu0 %v316
    %v588 = vpop.f32.mrf.mxu0
    %v589 = vadd.f32 %v168, %v588
    %v590 = vpop.f32.mrf.mxu0
    %v591 = vpop.f32.mrf.mxu0
    %v592 = vadd.f32 %v168, %v591
    %v593 = vpop.f32.mrf.mxu0
    %594 = vmatprep.mubr.bf16.mxu0 0
    %595 = vmatmul.mubr.bf16.gmra.mxu0 %v317
    %v596 = vpop.f32.mrf.mxu0
    %v597 = vadd.f32 %v168, %v596
    %v598 = vpop.f32.mrf.mxu0
    %v599 = vpop.f32.mrf.mxu0
    %v600 = vadd.f32 %v168, %v599
    %v601 = vpop.f32.mrf.mxu0
    %602 = vmatprep.mubr.bf16.mxu0 0
    %603 = vmatmul.mubr.bf16.gmra.mxu0 %v318
    %v604 = vpop.f32.mrf.mxu0
    %v605 = vadd.f32 %v168, %v604
    %v606 = vpop.f32.mrf.mxu0
    %v607 = vpop.f32.mrf.mxu0
    %v608 = vadd.f32 %v168, %v607
    %v609 = vpop.f32.mrf.mxu0
    %610 = vmatprep.mubr.bf16.mxu0 0
    %611 = vmatmul.mubr.bf16.gmra.mxu0 %v319
    %v612 = vpop.f32.mrf.mxu0
    %v613 = vadd.f32 %v168, %v612
    %v614 = vpop.f32.mrf.mxu0
    %v615 = vpop.f32.mrf.mxu0
    %v616 = vadd.f32 %v168, %v615
    %v617 = vpop.f32.mrf.mxu0
    %618 = vmatprep.mubr.bf16.mxu0 0
    %619 = vmatmul.mubr.bf16.gmra.mxu0 %v320
    %v620 = vpop.f32.mrf.mxu0
    %v621 = vadd.f32 %v168, %v620
    %v622 = vpop.f32.mrf.mxu0
    %v623 = vpop.f32.mrf.mxu0
    %v624 = vadd.f32 %v168, %v623
    %v625 = vpop.f32.mrf.mxu0
    %626 = vmatprep.mubr.bf16.mxu0 0
    %627 = vmatmul.mubr.bf16.gmra.mxu0 %v321
    %v628 = vpop.f32.mrf.mxu0
    %v629 = vadd.f32 %v168, %v628
    %v630 = vpop.f32.mrf.mxu0
    %v631 = vpop.f32.mrf.mxu0
    %v632 = vadd.f32 %v168, %v631
    %v633 = vpop.f32.mrf.mxu0
    %634 = vmatprep.mubr.bf16.mxu0 0
    %635 = vmatmul.mubr.bf16.gmra.mxu0 %v322
    %v636 = vpop.f32.mrf.mxu0
    %v637 = vadd.f32 %v168, %v636
    %v638 = vpop.f32.mrf.mxu0
    %v639 = vpop.f32.mrf.mxu0
    %v640 = vadd.f32 %v168, %v639
    %v641 = vpop.f32.mrf.mxu0
    %642 = vmatprep.mubr.bf16.mxu0 0
    %643 = vmatmul.mubr.bf16.gmra.mxu0 %v323
    %v644 = vpop.f32.mrf.mxu0
    %v645 = vadd.f32 %v168, %v644
    %v646 = vpop.f32.mrf.mxu0
    %v647 = vpop.f32.mrf.mxu0
    %v648 = vadd.f32 %v168, %v647
    %v649 = vpop.f32.mrf.mxu0
    %650 = vmatprep.mubr.bf16.mxu0 0
    %651 = vmatmul.mubr.bf16.gmra.mxu0 %v324
    %v652 = vpop.f32.mrf.mxu0
    %v653 = vadd.f32 %v168, %v652
    %v654 = vpop.f32.mrf.mxu0
    %v655 = vpop.f32.mrf.mxu0
    %v656 = vadd.f32 %v168, %v655
    %v657 = vpop.f32.mrf.mxu0
    %658 = vmatprep.mubr.bf16.mxu0 0
    %659 = vmatmul.mubr.bf16.gmra.mxu0 %v325
    %v660 = vpop.f32.mrf.mxu0
    %v661 = vadd.f32 %v168, %v660
    %v662 = vpop.f32.mrf.mxu0
    %v663 = vpop.f32.mrf.mxu0
    %v664 = vadd.f32 %v168, %v663
    %v665 = vpop.f32.mrf.mxu0
    %666 = vmatprep.mubr.bf16.mxu0 0
    %667 = vmatmul.mubr.bf16.gmra.mxu0 %v326
    %v668 = vpop.f32.mrf.mxu0
    %v669 = vadd.f32 %v168, %v668
    %v670 = vpop.f32.mrf.mxu0
    %v671 = vpop.f32.mrf.mxu0
    %v672 = vadd.f32 %v168, %v671
    %v673 = vpop.f32.mrf.mxu0
    %674 = vmatprep.mubr.bf16.mxu0 0
    %675 = vmatmul.mubr.bf16.gmra.mxu0 %v327
    %v676 = vpop.f32.mrf.mxu0
    %v677 = vadd.f32 %v168, %v676
    %v678 = vpop.f32.mrf.mxu0
    %v679 = vpop.f32.mrf.mxu0
    %v680 = vadd.f32 %v168, %v679
    %v681 = vpop.f32.mrf.mxu0
    %682 = vmatprep.mubr.bf16.mxu0 0
    %683 = vmatmul.mubr.bf16.gmra.mxu0 %v328
    %v684 = vpop.f32.mrf.mxu0
    %v685 = vadd.f32 %v168, %v684
    %v686 = vpop.f32.mrf.mxu0
    %v687 = vpop.f32.mrf.mxu0
    %v688 = vadd.f32 %v168, %v687
    %v689 = vpop.f32.mrf.mxu0
    %690 = vmatprep.mubr.bf16.mxu0 0
    %691 = vmatmul.mubr.bf16.gmra.mxu0 %v329
    %v692 = vpop.f32.mrf.mxu0
    %v693 = vadd.f32 %v168, %v692
    %v694 = vpop.f32.mrf.mxu0
    %v695 = vpop.f32.mrf.mxu0
    %v696 = vadd.f32 %v168, %v695
    %v697 = vpop.f32.mrf.mxu0
    %698 = vdwg.mxu0
    %v699 = vmul.f32 %v445, 0.5
    %v700 = vmul.f32 %v448, 0.5
    %v701 = vmul.f32 %v453, 0.5
    %v702 = vmul.f32 %v456, 0.5
    %v703 = vmul.f32 %v461, 0.5
    %v704 = vmul.f32 %v464, 0.5
    %v705 = vmul.f32 %v469, 0.5
    %v706 = vmul.f32 %v472, 0.5
    %v707 = vmul.f32 %v477, 0.5
    %v708 = vmul.f32 %v480, 0.5
    %v709 = vmul.f32 %v485, 0.5
    %v710 = vmul.f32 %v488, 0.5
    %v711 = vmul.f32 %v493, 0.5
    %v712 = vmul.f32 %v496, 0.5
    %v713 = vmul.f32 %v501, 0.5
    %v714 = vmul.f32 %v504, 0.5
    %v715 = vmul.f32 %v509, 0.5
    %v716 = vmul.f32 %v512, 0.5
    %v717 = vmul.f32 %v517, 0.5
    %v718 = vmul.f32 %v520, 0.5
    %v719 = vmul.f32 %v525, 0.5
    %v720 = vmul.f32 %v528, 0.5
    %v721 = vmul.f32 %v533, 0.5
    %v722 = vmul.f32 %v536, 0.5
    %v723 = vmul.f32 %v541, 0.5
    %v724 = vmul.f32 %v544, 0.5
    %v725 = vmul.f32 %v549, 0.5
    %v726 = vmul.f32 %v552, 0.5
    %v727 = vmul.f32 %v557, 0.5
    %v728 = vmul.f32 %v560, 0.5
    %v729 = vmul.f32 %v565, 0.5
    %v730 = vmul.f32 %v568, 0.5
    %v731 = vmul.f32 %v573, 0.5
    %v732 = vmul.f32 %v576, 0.5
    %v733 = vmul.f32 %v581, 0.5
    %v734 = vmul.f32 %v584, 0.5
    %v735 = vmul.f32 %v589, 0.5
    %v736 = vmul.f32 %v592, 0.5
    %v737 = vmul.f32 %v597, 0.5
    %v738 = vmul.f32 %v600, 0.5
    %v739 = vmul.f32 %v605, 0.5
    %v740 = vmul.f32 %v608, 0.5
    %v741 = vmul.f32 %v613, 0.5
    %v742 = vmul.f32 %v616, 0.5
    %v743 = vmul.f32 %v621, 0.5
    %v744 = vmul.f32 %v624, 0.5
    %v745 = vmul.f32 %v629, 0.5
    %v746 = vmul.f32 %v632, 0.5
    %v747 = vmul.f32 %v637, 0.5
    %v748 = vmul.f32 %v640, 0.5
    %v749 = vmul.f32 %v645, 0.5
    %v750 = vmul.f32 %v648, 0.5
    %v751 = vmul.f32 %v653, 0.5
    %v752 = vmul.f32 %v656, 0.5
    %v753 = vmul.f32 %v661, 0.5
    %v754 = vmul.f32 %v664, 0.5
    %v755 = vmul.f32 %v669, 0.5
    %v756 = vmul.f32 %v672, 0.5
    %v757 = vmul.f32 %v677, 0.5
    %v758 = vmul.f32 %v680, 0.5
    %v759 = vmul.f32 %v685, 0.5
    %v760 = vmul.f32 %v688, 0.5
    %v761 = vmul.f32 %v693, 0.5
    %v762 = vmul.f32 %v696, 0.5
    %v763 = vmul.f32 %v445, %v445
    %v764 = vmul.f32 %v448, %v448
    %v765 = vmul.f32 %v453, %v453
    %v766 = vmul.f32 %v456, %v456
    %v767 = vmul.f32 %v461, %v461
    %v768 = vmul.f32 %v464, %v464
    %v769 = vmul.f32 %v469, %v469
    %v770 = vmul.f32 %v472, %v472
    %v771 = vmul.f32 %v477, %v477
    %v772 = vmul.f32 %v480, %v480
    %v773 = vmul.f32 %v485, %v485
    %v774 = vmul.f32 %v488, %v488
    %v775 = vmul.f32 %v493, %v493
    %v776 = vmul.f32 %v496, %v496
    %v777 = vmul.f32 %v501, %v501
    %v778 = vmul.f32 %v504, %v504
    %v779 = vmul.f32 %v509, %v509
    %v780 = vmul.f32 %v512, %v512
    %v781 = vmul.f32 %v517, %v517
    %v782 = vmul.f32 %v520, %v520
    %v783 = vmul.f32 %v525, %v525
    %v784 = vmul.f32 %v528, %v528
    %v785 = vmul.f32 %v533, %v533
    %v786 = vmul.f32 %v536, %v536
    %v787 = vmul.f32 %v541, %v541
    %v788 = vmul.f32 %v544, %v544
    %v789 = vmul.f32 %v549, %v549
    %v790 = vmul.f32 %v552, %v552
    %v791 = vmul.f32 %v557, %v557
    %v792 = vmul.f32 %v560, %v560
    %v793 = vmul.f32 %v565, %v565
    %v794 = vmul.f32 %v568, %v568
    %v795 = vmul.f32 %v573, %v573
    %v796 = vmul.f32 %v576, %v576
    %v797 = vmul.f32 %v581, %v581
    %v798 = vmul.f32 %v584, %v584
    %v799 = vmul.f32 %v589, %v589
    %v800 = vmul.f32 %v592, %v592
    %v801 = vmul.f32 %v597, %v597
    %v802 = vmul.f32 %v600, %v600
    %v803 = vmul.f32 %v605, %v605
    %v804 = vmul.f32 %v608, %v608
    %v805 = vmul.f32 %v613, %v613
    %v806 = vmul.f32 %v616, %v616
    %v807 = vmul.f32 %v621, %v621
    %v808 = vmul.f32 %v624, %v624
    %v809 = vmul.f32 %v629, %v629
    %v810 = vmul.f32 %v632, %v632
    %v811 = vmul.f32 %v637, %v637
    %v812 = vmul.f32 %v640, %v640
    %v813 = vmul.f32 %v645, %v645
    %v814 = vmul.f32 %v648, %v648
    %v815 = vmul.f32 %v653, %v653
    %v816 = vmul.f32 %v656, %v656
    %v817 = vmul.f32 %v661, %v661
    %v818 = vmul.f32 %v664, %v664
    %v819 = vmul.f32 %v669, %v669
    %v820 = vmul.f32 %v672, %v672
    %v821 = vmul.f32 %v677, %v677
    %v822 = vmul.f32 %v680, %v680
    %v823 = vmul.f32 %v685, %v685
    %v824 = vmul.f32 %v688, %v688
    %v825 = vmul.f32 %v693, %v693
    %v826 = vmul.f32 %v696, %v696
    %v827 = vmul.f32 %v763, %v445
    %v828 = vmul.f32 %v764, %v448
    %v829 = vmul.f32 %v765, %v453
    %v830 = vmul.f32 %v766, %v456
    %v831 = vmul.f32 %v767, %v461
    %v832 = vmul.f32 %v768, %v464
    %v833 = vmul.f32 %v769, %v469
    %v834 = vmul.f32 %v770, %v472
    %v835 = vmul.f32 %v771, %v477
    %v836 = vmul.f32 %v772, %v480
    %v837 = vmul.f32 %v773, %v485
    %v838 = vmul.f32 %v774, %v488
    %v839 = vmul.f32 %v775, %v493
    %v840 = vmul.f32 %v776, %v496
    %v841 = vmul.f32 %v777, %v501
    %v842 = vmul.f32 %v778, %v504
    %v843 = vmul.f32 %v779, %v509
    %v844 = vmul.f32 %v780, %v512
    %v845 = vmul.f32 %v781, %v517
    %v846 = vmul.f32 %v782, %v520
    %v847 = vmul.f32 %v783, %v525
    %v848 = vmul.f32 %v784, %v528
    %v849 = vmul.f32 %v785, %v533
    %v850 = vmul.f32 %v786, %v536
    %v851 = vmul.f32 %v787, %v541
    %v852 = vmul.f32 %v788, %v544
    %v853 = vmul.f32 %v789, %v549
    %v854 = vmul.f32 %v790, %v552
    %v855 = vmul.f32 %v791, %v557
    %v856 = vmul.f32 %v792, %v560
    %v857 = vmul.f32 %v793, %v565
    %v858 = vmul.f32 %v794, %v568
    %v859 = vmul.f32 %v795, %v573
    %v860 = vmul.f32 %v796, %v576
    %v861 = vmul.f32 %v797, %v581
    %v862 = vmul.f32 %v798, %v584
    %v863 = vmul.f32 %v799, %v589
    %v864 = vmul.f32 %v800, %v592
    %v865 = vmul.f32 %v801, %v597
    %v866 = vmul.f32 %v802, %v600
    %v867 = vmul.f32 %v803, %v605
    %v868 = vmul.f32 %v804, %v608
    %v869 = vmul.f32 %v805, %v613
    %v870 = vmul.f32 %v806, %v616
    %v871 = vmul.f32 %v807, %v621
    %v872 = vmul.f32 %v808, %v624
    %v873 = vmul.f32 %v809, %v629
    %v874 = vmul.f32 %v810, %v632
    %v875 = vmul.f32 %v811, %v637
    %v876 = vmul.f32 %v812, %v640
    %v877 = vmul.f32 %v813, %v645
    %v878 = vmul.f32 %v814, %v648
    %v879 = vmul.f32 %v815, %v653
    %v880 = vmul.f32 %v816, %v656
    %v881 = vmul.f32 %v817, %v661
    %v882 = vmul.f32 %v818, %v664
    %v883 = vmul.f32 %v819, %v669
    %v884 = vmul.f32 %v820, %v672
    %v885 = vmul.f32 %v821, %v677
    %v886 = vmul.f32 %v822, %v680
    %v887 = vmul.f32 %v823, %v685
    %v888 = vmul.f32 %v824, %v688
    %v889 = vmul.f32 %v825, %v693
    %v890 = vmul.f32 %v826, %v696
    %v891 = vmul.f32 %v827, 0.044715
    %v892 = vmul.f32 %v828, 0.044715
    %v893 = vmul.f32 %v829, 0.044715
    %v894 = vmul.f32 %v830, 0.044715
    %v895 = vmul.f32 %v831, 0.044715
    %v896 = vmul.f32 %v832, 0.044715
    %v897 = vmul.f32 %v833, 0.044715
    %v898 = vmul.f32 %v834, 0.044715
    %v899 = vmul.f32 %v835, 0.044715
    %v900 = vmul.f32 %v836, 0.044715
    %v901 = vmul.f32 %v837, 0.044715
    %v902 = vmul.f32 %v838, 0.044715
    %v903 = vmul.f32 %v839, 0.044715
    %v904 = vmul.f32 %v840, 0.044715
    %v905 = vmul.f32 %v841, 0.044715
    %v906 = vmul.f32 %v842, 0.044715
    %v907 = vmul.f32 %v843, 0.044715
    %v908 = vmul.f32 %v844, 0.044715
    %v909 = vmul.f32 %v845, 0.044715
    %v910 = vmul.f32 %v846, 0.044715
    %v911 = vmul.f32 %v847, 0.044715
    %v912 = vmul.f32 %v848, 0.044715
    %v913 = vmul.f32 %v849, 0.044715
    %v914 = vmul.f32 %v850, 0.044715
    %v915 = vmul.f32 %v851, 0.044715
    %v916 = vmul.f32 %v852, 0.044715
    %v917 = vmul.f32 %v853, 0.044715
    %v918 = vmul.f32 %v854, 0.044715
    %v919 = vmul.f32 %v855, 0.044715
    %v920 = vmul.f32 %v856, 0.044715
    %v921 = vmul.f32 %v857, 0.044715
    %v922 = vmul.f32 %v858, 0.044715
    %v923 = vmul.f32 %v859, 0.044715
    %v924 = vmul.f32 %v860, 0.044715
    %v925 = vmul.f32 %v861, 0.044715
    %v926 = vmul.f32 %v862, 0.044715
    %v927 = vmul.f32 %v863, 0.044715
    %v928 = vmul.f32 %v864, 0.044715
    %v929 = vmul.f32 %v865, 0.044715
    %v930 = vmul.f32 %v866, 0.044715
    %v931 = vmul.f32 %v867, 0.044715
    %v932 = vmul.f32 %v868, 0.044715
    %v933 = vmul.f32 %v869, 0.044715
    %v934 = vmul.f32 %v870, 0.044715
    %v935 = vmul.f32 %v871, 0.044715
    %v936 = vmul.f32 %v872, 0.044715
    %v937 = vmul.f32 %v873, 0.044715
    %v938 = vmul.f32 %v874, 0.044715
    %v939 = vmul.f32 %v875, 0.044715
    %v940 = vmul.f32 %v876, 0.044715
    %v941 = vmul.f32 %v877, 0.044715
    %v942 = vmul.f32 %v878, 0.044715
    %v943 = vmul.f32 %v879, 0.044715
    %v944 = vmul.f32 %v880, 0.044715
    %v945 = vmul.f32 %v881, 0.044715
    %v946 = vmul.f32 %v882, 0.044715
    %v947 = vmul.f32 %v883, 0.044715
    %v948 = vmul.f32 %v884, 0.044715
    %v949 = vmul.f32 %v885, 0.044715
    %v950 = vmul.f32 %v886, 0.044715
    %v951 = vmul.f32 %v887, 0.044715
    %v952 = vmul.f32 %v888, 0.044715
    %v953 = vmul.f32 %v889, 0.044715
    %v954 = vmul.f32 %v890, 0.044715
    %v955 = vadd.f32 %v445, %v891
    %v956 = vadd.f32 %v448, %v892
    %v957 = vadd.f32 %v453, %v893
    %v958 = vadd.f32 %v456, %v894
    %v959 = vadd.f32 %v461, %v895
    %v960 = vadd.f32 %v464, %v896
    %v961 = vadd.f32 %v469, %v897
    %v962 = vadd.f32 %v472, %v898
    %v963 = vadd.f32 %v477, %v899
    %v964 = vadd.f32 %v480, %v900
    %v965 = vadd.f32 %v485, %v901
    %v966 = vadd.f32 %v488, %v902
    %v967 = vadd.f32 %v493, %v903
    %v968 = vadd.f32 %v496, %v904
    %v969 = vadd.f32 %v501, %v905
    %v970 = vadd.f32 %v504, %v906
    %v971 = vadd.f32 %v509, %v907
    %v972 = vadd.f32 %v512, %v908
    %v973 = vadd.f32 %v517, %v909
    %v974 = vadd.f32 %v520, %v910
    %v975 = vadd.f32 %v525, %v911
    %v976 = vadd.f32 %v528, %v912
    %v977 = vadd.f32 %v533, %v913
    %v978 = vadd.f32 %v536, %v914
    %v979 = vadd.f32 %v541, %v915
    %v980 = vadd.f32 %v544, %v916
    %v981 = vadd.f32 %v549, %v917
    %v982 = vadd.f32 %v552, %v918
    %v983 = vadd.f32 %v557, %v919
    %v984 = vadd.f32 %v560, %v920
    %v985 = vadd.f32 %v565, %v921
    %v986 = vadd.f32 %v568, %v922
    %v987 = vadd.f32 %v573, %v923
    %v988 = vadd.f32 %v576, %v924
    %v989 = vadd.f32 %v581, %v925
    %v990 = vadd.f32 %v584, %v926
    %v991 = vadd.f32 %v589, %v927
    %v992 = vadd.f32 %v592, %v928
    %v993 = vadd.f32 %v597, %v929
    %v994 = vadd.f32 %v600, %v930
    %v995 = vadd.f32 %v605, %v931
    %v996 = vadd.f32 %v608, %v932
    %v997 = vadd.f32 %v613, %v933
    %v998 = vadd.f32 %v616, %v934
    %v999 = vadd.f32 %v621, %v935
    %v1000 = vadd.f32 %v624, %v936
    %v1001 = vadd.f32 %v629, %v937
    %v1002 = vadd.f32 %v632, %v938
    %v1003 = vadd.f32 %v637, %v939
    %v1004 = vadd.f32 %v640, %v940
    %v1005 = vadd.f32 %v645, %v941
    %v1006 = vadd.f32 %v648, %v942
    %v1007 = vadd.f32 %v653, %v943
    %v1008 = vadd.f32 %v656, %v944
    %v1009 = vadd.f32 %v661, %v945
    %v1010 = vadd.f32 %v664, %v946
    %v1011 = vadd.f32 %v669, %v947
    %v1012 = vadd.f32 %v672, %v948
    %v1013 = vadd.f32 %v677, %v949
    %v1014 = vadd.f32 %v680, %v950
    %v1015 = vadd.f32 %v685, %v951
    %v1016 = vadd.f32 %v688, %v952
    %v1017 = vadd.f32 %v693, %v953
    %v1018 = vadd.f32 %v696, %v954
    %v1019 = vmul.f32 %v955, 0.7978846
    %v1020 = vmul.f32 %v956, 0.7978846
    %v1021 = vmul.f32 %v957, 0.7978846
    %v1022 = vmul.f32 %v958, 0.7978846
    %v1023 = vmul.f32 %v959, 0.7978846
    %v1024 = vmul.f32 %v960, 0.7978846
    %v1025 = vmul.f32 %v961, 0.7978846
    %v1026 = vmul.f32 %v962, 0.7978846
    %v1027 = vmul.f32 %v963, 0.7978846
    %v1028 = vmul.f32 %v964, 0.7978846
    %v1029 = vmul.f32 %v965, 0.7978846
    %v1030 = vmul.f32 %v966, 0.7978846
    %v1031 = vmul.f32 %v967, 0.7978846
    %v1032 = vmul.f32 %v968, 0.7978846
    %v1033 = vmul.f32 %v969, 0.7978846
    %v1034 = vmul.f32 %v970, 0.7978846
    %v1035 = vmul.f32 %v971, 0.7978846
    %v1036 = vmul.f32 %v972, 0.7978846
    %v1037 = vmul.f32 %v973, 0.7978846
    %v1038 = vmul.f32 %v974, 0.7978846
    %v1039 = vmul.f32 %v975, 0.7978846
    %v1040 = vmul.f32 %v976, 0.7978846
    %v1041 = vmul.f32 %v977, 0.7978846
    %v1042 = vmul.f32 %v978, 0.7978846
    %v1043 = vmul.f32 %v979, 0.7978846
    %v1044 = vmul.f32 %v980, 0.7978846
    %v1045 = vmul.f32 %v981, 0.7978846
    %v1046 = vmul.f32 %v982, 0.7978846
    %v1047 = vmul.f32 %v983, 0.7978846
    %v1048 = vmul.f32 %v984, 0.7978846
    %v1049 = vmul.f32 %v985, 0.7978846
    %v1050 = vmul.f32 %v986, 0.7978846
    %v1051 = vmul.f32 %v987, 0.7978846
    %v1052 = vmul.f32 %v988, 0.7978846
    %v1053 = vmul.f32 %v989, 0.7978846
    %v1054 = vmul.f32 %v990, 0.7978846
    %v1055 = vmul.f32 %v991, 0.7978846
    %v1056 = vmul.f32 %v992, 0.7978846
    %v1057 = vmul.f32 %v993, 0.7978846
    %v1058 = vmul.f32 %v994, 0.7978846
    %v1059 = vmul.f32 %v995, 0.7978846
    %v1060 = vmul.f32 %v996, 0.7978846
    %v1061 = vmul.f32 %v997, 0.7978846
    %v1062 = vmul.f32 %v998, 0.7978846
    %v1063 = vmul.f32 %v999, 0.7978846
    %v1064 = vmul.f32 %v1000, 0.7978846
    %v1065 = vmul.f32 %v1001, 0.7978846
    %v1066 = vmul.f32 %v1002, 0.7978846
    %v1067 = vmul.f32 %v1003, 0.7978846
    %v1068 = vmul.f32 %v1004, 0.7978846
    %v1069 = vmul.f32 %v1005, 0.7978846
    %v1070 = vmul.f32 %v1006, 0.7978846
    %v1071 = vmul.f32 %v1007, 0.7978846
    %v1072 = vmul.f32 %v1008, 0.7978846
    %v1073 = vmul.f32 %v1009, 0.7978846
    %v1074 = vmul.f32 %v1010, 0.7978846
    %v1075 = vmul.f32 %v1011, 0.7978846
    %v1076 = vmul.f32 %v1012, 0.7978846
    %v1077 = vmul.f32 %v1013, 0.7978846
    %v1078 = vmul.f32 %v1014, 0.7978846
    %v1079 = vmul.f32 %v1015, 0.7978846
    %v1080 = vmul.f32 %v1016, 0.7978846
    %v1081 = vmul.f32 %v1017, 0.7978846
    %v1082 = vmul.f32 %v1018, 0.7978846
    %v1083 = vtanh.pop %v1019
    %v1084 = vtanh.pop %v1020
    %v1085 = vtanh.pop %v1021
    %v1086 = vtanh.pop %v1022
    %v1087 = vtanh.pop %v1023
    %v1088 = vtanh.pop %v1024
    %v1089 = vtanh.pop %v1025
    %v1090 = vtanh.pop %v1026
    %v1091 = vtanh.pop %v1027
    %v1092 = vtanh.pop %v1028
    %v1093 = vtanh.pop %v1029
    %v1094 = vtanh.pop %v1030
    %v1095 = vtanh.pop %v1031
    %v1096 = vtanh.pop %v1032
    %v1097 = vtanh.pop %v1033
    %v1098 = vtanh.pop %v1034
    %v1099 = vtanh.pop %v1035
    %v1100 = vtanh.pop %v1036
    %v1101 = vtanh.pop %v1037
    %v1102 = vtanh.pop %v1038
    %v1103 = vtanh.pop %v1039
    %v1104 = vtanh.pop %v1040
    %v1105 = vtanh.pop %v1041
    %v1106 = vtanh.pop %v1042
    %v1107 = vtanh.pop %v1043
    %v1108 = vtanh.pop %v1044
    %v1109 = vtanh.pop %v1045
    %v1110 = vtanh.pop %v1046
    %v1111 = vtanh.pop %v1047
    %v1112 = vtanh.pop %v1048
    %v1113 = vtanh.pop %v1049
    %v1114 = vtanh.pop %v1050
    %v1115 = vtanh.pop %v1051
    %v1116 = vtanh.pop %v1052
    %v1117 = vtanh.pop %v1053
    %v1118 = vtanh.pop %v1054
    %v1119 = vtanh.pop %v1055
    %v1120 = vtanh.pop %v1056
    %v1121 = vtanh.pop %v1057
    %v1122 = vtanh.pop %v1058
    %v1123 = vtanh.pop %v1059
    %v1124 = vtanh.pop %v1060
    %v1125 = vtanh.pop %v1061
    %v1126 = vtanh.pop %v1062
    %v1127 = vtanh.pop %v1063
    %v1128 = vtanh.pop %v1064
    %v1129 = vtanh.pop %v1065
    %v1130 = vtanh.pop %v1066
    %v1131 = vtanh.pop %v1067
    %v1132 = vtanh.pop %v1068
    %v1133 = vtanh.pop %v1069
    %v1134 = vtanh.pop %v1070
    %v1135 = vtanh.pop %v1071
    %v1136 = vtanh.pop %v1072
    %v1137 = vtanh.pop %v1073
    %v1138 = vtanh.pop %v1074
    %v1139 = vtanh.pop %v1075
    %v1140 = vtanh.pop %v1076
    %v1141 = vtanh.pop %v1077
    %v1142 = vtanh.pop %v1078
    %v1143 = vtanh.pop %v1079
    %v1144 = vtanh.pop %v1080
    %v1145 = vtanh.pop %v1081
    %v1146 = vtanh.pop %v1082
    %v1147 = vadd.f32 %v1083, 1.0
    %v1148 = vadd.f32 %v1084, 1.0
    %v1149 = vadd.f32 %v1085, 1.0
    %v1150 = vadd.f32 %v1086, 1.0
    %v1151 = vadd.f32 %v1087, 1.0
    %v1152 = vadd.f32 %v1088, 1.0
    %v1153 = vadd.f32 %v1089, 1.0
    %v1154 = vadd.f32 %v1090, 1.0
    %v1155 = vadd.f32 %v1091, 1.0
    %v1156 = vadd.f32 %v1092, 1.0
    %v1157 = vadd.f32 %v1093, 1.0
    %v1158 = vadd.f32 %v1094, 1.0
    %v1159 = vadd.f32 %v1095, 1.0
    %v1160 = vadd.f32 %v1096, 1.0
    %v1161 = vadd.f32 %v1097, 1.0
    %v1162 = vadd.f32 %v1098, 1.0
    %v1163 = vadd.f32 %v1099, 1.0
    %v1164 = vadd.f32 %v1100, 1.0
    %v1165 = vadd.f32 %v1101, 1.0
    %v1166 = vadd.f32 %v1102, 1.0
    %v1167 = vadd.f32 %v1103, 1.0
    %v1168 = vadd.f32 %v1104, 1.0
    %v1169 = vadd.f32 %v1105, 1.0
    %v1170 = vadd.f32 %v1106, 1.0
    %v1171 = vadd.f32 %v1107, 1.0
    %v1172 = vadd.f32 %v1108, 1.0
    %v1173 = vadd.f32 %v1109, 1.0
    %v1174 = vadd.f32 %v1110, 1.0
    %v1175 = vadd.f32 %v1111, 1.0
    %v1176 = vadd.f32 %v1112, 1.0
    %v1177 = vadd.f32 %v1113, 1.0
    %v1178 = vadd.f32 %v1114, 1.0
    %v1179 = vadd.f32 %v1115, 1.0
    %v1180 = vadd.f32 %v1116, 1.0
    %v1181 = vadd.f32 %v1117, 1.0
    %v1182 = vadd.f32 %v1118, 1.0
    %v1183 = vadd.f32 %v1119, 1.0
    %v1184 = vadd.f32 %v1120, 1.0
    %v1185 = vadd.f32 %v1121, 1.0
    %v1186 = vadd.f32 %v1122, 1.0
    %v1187 = vadd.f32 %v1123, 1.0
    %v1188 = vadd.f32 %v1124, 1.0
    %v1189 = vadd.f32 %v1125, 1.0
    %v1190 = vadd.f32 %v1126, 1.0
    %v1191 = vadd.f32 %v1127, 1.0
    %v1192 = vadd.f32 %v1128, 1.0
    %v1193 = vadd.f32 %v1129, 1.0
    %v1194 = vadd.f32 %v1130, 1.0
    %v1195 = vadd.f32 %v1131, 1.0
    %v1196 = vadd.f32 %v1132, 1.0
    %v1197 = vadd.f32 %v1133, 1.0
    %v1198 = vadd.f32 %v1134, 1.0
    %v1199 = vadd.f32 %v1135, 1.0
    %v1200 = vadd.f32 %v1136, 1.0
    %v1201 = vadd.f32 %v1137, 1.0
    %v1202 = vadd.f32 %v1138, 1.0
    %v1203 = vadd.f32 %v1139, 1.0
    %v1204 = vadd.f32 %v1140, 1.0
    %v1205 = vadd.f32 %v1141, 1.0
    %v1206 = vadd.f32 %v1142, 1.0
    %v1207 = vadd.f32 %v1143, 1.0
    %v1208 = vadd.f32 %v1144, 1.0
    %v1209 = vadd.f32 %v1145, 1.0
    %v1210 = vadd.f32 %v1146, 1.0
    %v1211 = vmul.f32 %v699, %v1147
    %v1212 = vmul.f32 %v700, %v1148
    %v1213 = vmul.f32 %v701, %v1149
    %v1214 = vmul.f32 %v702, %v1150
    %v1215 = vmul.f32 %v703, %v1151
    %v1216 = vmul.f32 %v704, %v1152
    %v1217 = vmul.f32 %v705, %v1153
    %v1218 = vmul.f32 %v706, %v1154
    %v1219 = vmul.f32 %v707, %v1155
    %v1220 = vmul.f32 %v708, %v1156
    %v1221 = vmul.f32 %v709, %v1157
    %v1222 = vmul.f32 %v710, %v1158
    %v1223 = vmul.f32 %v711, %v1159
    %v1224 = vmul.f32 %v712, %v1160
    %v1225 = vmul.f32 %v713, %v1161
    %v1226 = vmul.f32 %v714, %v1162
    %v1227 = vmul.f32 %v715, %v1163
    %v1228 = vmul.f32 %v716, %v1164
    %v1229 = vmul.f32 %v717, %v1165
    %v1230 = vmul.f32 %v718, %v1166
    %v1231 = vmul.f32 %v719, %v1167
    %v1232 = vmul.f32 %v720, %v1168
    %v1233 = vmul.f32 %v721, %v1169
    %v1234 = vmul.f32 %v722, %v1170
    %v1235 = vmul.f32 %v723, %v1171
    %v1236 = vmul.f32 %v724, %v1172
    %v1237 = vmul.f32 %v725, %v1173
    %v1238 = vmul.f32 %v726, %v1174
    %v1239 = vmul.f32 %v727, %v1175
    %v1240 = vmul.f32 %v728, %v1176
    %v1241 = vmul.f32 %v729, %v1177
    %v1242 = vmul.f32 %v730, %v1178
    %v1243 = vmul.f32 %v731, %v1179
    %v1244 = vmul.f32 %v732, %v1180
    %v1245 = vmul.f32 %v733, %v1181
    %v1246 = vmul.f32 %v734, %v1182
    %v1247 = vmul.f32 %v735, %v1183
    %v1248 = vmul.f32 %v736, %v1184
    %v1249 = vmul.f32 %v737, %v1185
    %v1250 = vmul.f32 %v738, %v1186
    %v1251 = vmul.f32 %v739, %v1187
    %v1252 = vmul.f32 %v740, %v1188
    %v1253 = vmul.f32 %v741, %v1189
    %v1254 = vmul.f32 %v742, %v1190
    %v1255 = vmul.f32 %v743, %v1191
    %v1256 = vmul.f32 %v744, %v1192
    %v1257 = vmul.f32 %v745, %v1193
    %v1258 = vmul.f32 %v746, %v1194
    %v1259 = vmul.f32 %v747, %v1195
    %v1260 = vmul.f32 %v748, %v1196
    %v1261 = vmul.f32 %v749, %v1197
    %v1262 = vmul.f32 %v750, %v1198
    %v1263 = vmul.f32 %v751, %v1199
    %v1264 = vmul.f32 %v752, %v1200
    %v1265 = vmul.f32 %v753, %v1201
    %v1266 = vmul.f32 %v754, %v1202
    %v1267 = vmul.f32 %v755, %v1203
    %v1268 = vmul.f32 %v756, %v1204
    %v1269 = vmul.f32 %v757, %v1205
    %v1270 = vmul.f32 %v758, %v1206
    %v1271 = vmul.f32 %v759, %v1207
    %v1272 = vmul.f32 %v760, %v1208
    %v1273 = vmul.f32 %v761, %v1209
    %v1274 = vmul.f32 %v762, %v1210
    %1275 = vst [vmem:[#allocation2] sm:$0xff] 0.0
    %1276 = vst [vmem:[#allocation2 + $0x8] sm:$0x3] 0.0
    %1277 = vst [vmem:[#allocation2 + $0xa0] sm:$0xff] 0.0
    %1278 = vst [vmem:[#allocation2 + $0xa8] sm:$0x3] 0.0
    %1279 = vst [vmem:[#allocation2 + $0x140] sm:$0xff] 0.0
    %1280 = vst [vmem:[#allocation2 + $0x148] sm:$0x3] 0.0
    %1281 = vst [vmem:[#allocation2 + $0x1e0] sm:$0xff] 0.0
    %1282 = vst [vmem:[#allocation2 + $0x1e8] sm:$0x3] 0.0
    %1283 = vst [vmem:[#allocation2 + $0x280] sm:$0xff] 0.0
    %1284 = vst [vmem:[#allocation2 + $0x288] sm:$0x3] 0.0
    %1285 = vst [vmem:[#allocation2 + $0x320] sm:$0xff] 0.0
    %1286 = vst [vmem:[#allocation2 + $0x328] sm:$0x3] 0.0
    %1287 = vst [vmem:[#allocation2 + $0x3c0] sm:$0xff] 0.0
    %1288 = vst [vmem:[#allocation2 + $0x3c8] sm:$0x3] 0.0
    %1289 = vst [vmem:[#allocation2 + $0x460] sm:$0xff] 0.0
    %1290 = vst [vmem:[#allocation2 + $0x468] sm:$0x3] 0.0
    %s1291 = scalar_lea.vmem [#allocation2], 144
    %1292 = vst [vmem:[%s1291] sm:$0xff] 0.0
    %1293 = vst [vmem:[%s1291 + $0x8] sm:$0x3] 0.0
    %1294 = vst [vmem:[%s1291 + $0xa0] sm:$0xff] 0.0
    %1295 = vst [vmem:[%s1291 + $0xa8] sm:$0x3] 0.0
    %1296 = vst [vmem:[%s1291 + $0x140] sm:$0xff] 0.0
    %1297 = vst [vmem:[%s1291 + $0x148] sm:$0x3] 0.0
    %1298 = vst [vmem:[%s1291 + $0x1e0] sm:$0xff] 0.0
    %1299 = vst [vmem:[%s1291 + $0x1e8] sm:$0x3] 0.0
    %1300 = vst [vmem:[%s1291 + $0x280] sm:$0xff] 0.0
    %1301 = vst [vmem:[%s1291 + $0x288] sm:$0x3] 0.0
    %1302 = vst [vmem:[%s1291 + $0x320] sm:$0xff] 0.0
    %1303 = vst [vmem:[%s1291 + $0x328] sm:$0x3] 0.0
    %1304 = vst [vmem:[%s1291 + $0x3c0] sm:$0xff] 0.0
    %1305 = vst [vmem:[%s1291 + $0x3c8] sm:$0x3] 0.0
    %1306 = vst [vmem:[%s1291 + $0x460] sm:$0xff] 0.0
    %1307 = vst [vmem:[%s1291 + $0x468] sm:$0x3] 0.0
    %s1308 = scalar_lea.vmem [#allocation2], 16
    %1309 = vst [vmem:[%s1308] sm:$0x1] 0.0
    %1310 = vst [vmem:[%s1308 + $0x10] sm:$0x1] 0.0
    %1311 = vst [vmem:[%s1308 + $0x20] sm:$0x1] 0.0
    %1312 = vst [vmem:[%s1308 + $0x30] sm:$0x1] 0.0
    %1313 = vst [vmem:[%s1308 + $0x40] sm:$0x1] 0.0
    %1314 = vst [vmem:[%s1308 + $0x50] sm:$0x1] 0.0
    %1315 = vst [vmem:[%s1308 + $0x60] sm:$0x1] 0.0
    %1316 = vst [vmem:[%s1308 + $0x70] sm:$0x1] 0.0
    %1317 = vst [vmem:[%s1308 + $0xa0] sm:$0x1] 0.0
    %1318 = vst [vmem:[%s1308 + $0xb0] sm:$0x1] 0.0
    %1319 = vst [vmem:[%s1308 + $0xc0] sm:$0x1] 0.0
    %1320 = vst [vmem:[%s1308 + $0xd0] sm:$0x1] 0.0
    %1321 = vst [vmem:[%s1308 + $0xe0] sm:$0x1] 0.0
    %1322 = vst [vmem:[%s1308 + $0xf0] sm:$0x1] 0.0
    %1323 = vst [vmem:[%s1308 + $0x100] sm:$0x1] 0.0
    %1324 = vst [vmem:[%s1308 + $0x110] sm:$0x1] 0.0
    %1325 = vst [vmem:[%s1308 + $0x140] sm:$0x1] 0.0
    %1326 = vst [vmem:[%s1308 + $0x150] sm:$0x1] 0.0
    %1327 = vst [vmem:[%s1308 + $0x160] sm:$0x1] 0.0
    %1328 = vst [vmem:[%s1308 + $0x170] sm:$0x1] 0.0
    %1329 = vst [vmem:[%s1308 + $0x180] sm:$0x1] 0.0
    %1330 = vst [vmem:[%s1308 + $0x190] sm:$0x1] 0.0
    %1331 = vst [vmem:[%s1308 + $0x1a0] sm:$0x1] 0.0
    %1332 = vst [vmem:[%s1308 + $0x1b0] sm:$0x1] 0.0
    %1333 = vst [vmem:[%s1308 + $0x1e0] sm:$0x1] 0.0
    %1334 = vst [vmem:[%s1308 + $0x1f0] sm:$0x1] 0.0
    %1335 = vst [vmem:[%s1308 + $0x200] sm:$0x1] 0.0
    %1336 = vst [vmem:[%s1308 + $0x210] sm:$0x1] 0.0
    %1337 = vst [vmem:[%s1308 + $0x220] sm:$0x1] 0.0
    %1338 = vst [vmem:[%s1308 + $0x230] sm:$0x1] 0.0
    %1339 = vst [vmem:[%s1308 + $0x240] sm:$0x1] 0.0
    %1340 = vst [vmem:[%s1308 + $0x250] sm:$0x1] 0.0
    %1341 = vst [vmem:[%s1308 + $0x280] sm:$0x1] 0.0
    %1342 = vst [vmem:[%s1308 + $0x290] sm:$0x1] 0.0
    %1343 = vst [vmem:[%s1308 + $0x2a0] sm:$0x1] 0.0
    %1344 = vst [vmem:[%s1308 + $0x2b0] sm:$0x1] 0.0
    %1345 = vst [vmem:[%s1308 + $0x2c0] sm:$0x1] 0.0
    %1346 = vst [vmem:[%s1308 + $0x2d0] sm:$0x1] 0.0
    %1347 = vst [vmem:[%s1308 + $0x2e0] sm:$0x1] 0.0
    %1348 = vst [vmem:[%s1308 + $0x2f0] sm:$0x1] 0.0
    %1349 = vst [vmem:[%s1308 + $0x320] sm:$0x1] 0.0
    %1350 = vst [vmem:[%s1308 + $0x330] sm:$0x1] 0.0
    %1351 = vst [vmem:[%s1308 + $0x340] sm:$0x1] 0.0
    %1352 = vst [vmem:[%s1308 + $0x350] sm:$0x1] 0.0
    %1353 = vst [vmem:[%s1308 + $0x360] sm:$0x1] 0.0
    %1354 = vst [vmem:[%s1308 + $0x370] sm:$0x1] 0.0
    %1355 = vst [vmem:[%s1308 + $0x380] sm:$0x1] 0.0
    %1356 = vst [vmem:[%s1308 + $0x390] sm:$0x1] 0.0
    %1357 = vst [vmem:[%s1308 + $0x3c0] sm:$0x1] 0.0
    %1358 = vst [vmem:[%s1308 + $0x3d0] sm:$0x1] 0.0
    %1359 = vst [vmem:[%s1308 + $0x3e0] sm:$0x1] 0.0
    %1360 = vst [vmem:[%s1308 + $0x3f0] sm:$0x1] 0.0
    %1361 = vst [vmem:[%s1308 + $0x400] sm:$0x1] 0.0
    %1362 = vst [vmem:[%s1308 + $0x410] sm:$0x1] 0.0
    %1363 = vst [vmem:[%s1308 + $0x420] sm:$0x1] 0.0
    %1364 = vst [vmem:[%s1308 + $0x430] sm:$0x1] 0.0
    %1365 = vst [vmem:[%s1308 + $0x460] sm:$0x1] 0.0
    %1366 = vst [vmem:[%s1308 + $0x470] sm:$0x1] 0.0
    %1367 = vst [vmem:[%s1308 + $0x480] sm:$0x1] 0.0
    %1368 = vst [vmem:[%s1308 + $0x490] sm:$0x1] 0.0
    %1369 = vst [vmem:[%s1308 + $0x4a0] sm:$0x1] 0.0
    %1370 = vst [vmem:[%s1308 + $0x4b0] sm:$0x1] 0.0
    %1371 = vst [vmem:[%s1308 + $0x4c0] sm:$0x1] 0.0
    %1372 = vst [vmem:[%s1308 + $0x4d0] sm:$0x1] 0.0
    %1373 = vst [vmem:[%s1308 + $0x9] sm:$0x1] 0.0
    %1374 = vst [vmem:[%s1308 + $0x19] sm:$0x1] 0.0
    %1375 = vst [vmem:[%s1308 + $0x29] sm:$0x1] 0.0
    %1376 = vst [vmem:[%s1308 + $0x39] sm:$0x1] 0.0
    %1377 = vst [vmem:[%s1308 + $0x49] sm:$0x1] 0.0
    %1378 = vst [vmem:[%s1308 + $0x59] sm:$0x1] 0.0
    %1379 = vst [vmem:[%s1308 + $0x69] sm:$0x1] 0.0
    %1380 = vst [vmem:[%s1308 + $0x79] sm:$0x1] 0.0
    %1381 = vst [vmem:[%s1308 + $0xa9] sm:$0x1] 0.0
    %1382 = vst [vmem:[%s1308 + $0xb9] sm:$0x1] 0.0
    %1383 = vst [vmem:[%s1308 + $0xc9] sm:$0x1] 0.0
    %1384 = vst [vmem:[%s1308 + $0xd9] sm:$0x1] 0.0
    %1385 = vst [vmem:[%s1308 + $0xe9] sm:$0x1] 0.0
    %1386 = vst [vmem:[%s1308 + $0xf9] sm:$0x1] 0.0
    %1387 = vst [vmem:[%s1308 + $0x109] sm:$0x1] 0.0
    %1388 = vst [vmem:[%s1308 + $0x119] sm:$0x1] 0.0
    %1389 = vst [vmem:[%s1308 + $0x149] sm:$0x1] 0.0
    %1390 = vst [vmem:[%s1308 + $0x159] sm:$0x1] 0.0
    %1391 = vst [vmem:[%s1308 + $0x169] sm:$0x1] 0.0
    %1392 = vst [vmem:[%s1308 + $0x179] sm:$0x1] 0.0
    %1393 = vst [vmem:[%s1308 + $0x189] sm:$0x1] 0.0
    %1394 = vst [vmem:[%s1308 + $0x199] sm:$0x1] 0.0
    %1395 = vst [vmem:[%s1308 + $0x1a9] sm:$0x1] 0.0
    %1396 = vst [vmem:[%s1308 + $0x1b9] sm:$0x1] 0.0
    %1397 = vst [vmem:[%s1308 + $0x1e9] sm:$0x1] 0.0
    %1398 = vst [vmem:[%s1308 + $0x1f9] sm:$0x1] 0.0
    %1399 = vst [vmem:[%s1308 + $0x209] sm:$0x1] 0.0
    %1400 = vst [vmem:[%s1308 + $0x219] sm:$0x1] 0.0
    %1401 = vst [vmem:[%s1308 + $0x229] sm:$0x1] 0.0
    %1402 = vst [vmem:[%s1308 + $0x239] sm:$0x1] 0.0
    %1403 = vst [vmem:[%s1308 + $0x249] sm:$0x1] 0.0
    %1404 = vst [vmem:[%s1308 + $0x259] sm:$0x1] 0.0
    %1405 = vst [vmem:[%s1308 + $0x289] sm:$0x1] 0.0
    %1406 = vst [vmem:[%s1308 + $0x299] sm:$0x1] 0.0
    %1407 = vst [vmem:[%s1308 + $0x2a9] sm:$0x1] 0.0
    %1408 = vst [vmem:[%s1308 + $0x2b9] sm:$0x1] 0.0
    %1409 = vst [vmem:[%s1308 + $0x2c9] sm:$0x1] 0.0
    %1410 = vst [vmem:[%s1308 + $0x2d9] sm:$0x1] 0.0
    %1411 = vst [vmem:[%s1308 + $0x2e9] sm:$0x1] 0.0
    %1412 = vst [vmem:[%s1308 + $0x2f9] sm:$0x1] 0.0
    %1413 = vst [vmem:[%s1308 + $0x329] sm:$0x1] 0.0
    %1414 = vst [vmem:[%s1308 + $0x339] sm:$0x1] 0.0
    %1415 = vst [vmem:[%s1308 + $0x349] sm:$0x1] 0.0
    %1416 = vst [vmem:[%s1308 + $0x359] sm:$0x1] 0.0
    %1417 = vst [vmem:[%s1308 + $0x369] sm:$0x1] 0.0
    %1418 = vst [vmem:[%s1308 + $0x379] sm:$0x1] 0.0
    %1419 = vst [vmem:[%s1308 + $0x389] sm:$0x1] 0.0
    %1420 = vst [vmem:[%s1308 + $0x399] sm:$0x1] 0.0
    %1421 = vst [vmem:[%s1308 + $0x3c9] sm:$0x1] 0.0
    %1422 = vst [vmem:[%s1308 + $0x3d9] sm:$0x1] 0.0
    %1423 = vst [vmem:[%s1308 + $0x3e9] sm:$0x1] 0.0
    %1424 = vst [vmem:[%s1308 + $0x3f9] sm:$0x1] 0.0
    %1425 = vst [vmem:[%s1308 + $0x409] sm:$0x1] 0.0
    %1426 = vst [vmem:[%s1308 + $0x419] sm:$0x1] 0.0
    %1427 = vst [vmem:[%s1308 + $0x429] sm:$0x1] 0.0
    %1428 = vst [vmem:[%s1308 + $0x439] sm:$0x1] 0.0
    %1429 = vst [vmem:[%s1308 + $0x469] sm:$0x1] 0.0
    %1430 = vst [vmem:[%s1308 + $0x479] sm:$0x1] 0.0
    %1431 = vst [vmem:[%s1308 + $0x489] sm:$0x1] 0.0
    %1432 = vst [vmem:[%s1308 + $0x499] sm:$0x1] 0.0
    %1433 = vst [vmem:[%s1308 + $0x4a9] sm:$0x1] 0.0
    %1434 = vst [vmem:[%s1308 + $0x4b9] sm:$0x1] 0.0
    %1435 = vst [vmem:[%s1308 + $0x4c9] sm:$0x1] 0.0
    %1436 = vst [vmem:[%s1308 + $0x4d9] sm:$0x1] 0.0
    %1437 = vst [vmem:[%s1308 + $0x1] sm:$0xff] %v1211
    %1438 = vst [vmem:[%s1308 + $0x11] sm:$0xff] %v1212
    %1439 = vst [vmem:[%s1308 + $0x21] sm:$0xff] %v1213
    %1440 = vst [vmem:[%s1308 + $0x31] sm:$0xff] %v1214
    %1441 = vst [vmem:[%s1308 + $0x41] sm:$0xff] %v1215
    %1442 = vst [vmem:[%s1308 + $0x51] sm:$0xff] %v1216
    %1443 = vst [vmem:[%s1308 + $0x61] sm:$0xff] %v1217
    %1444 = vst [vmem:[%s1308 + $0x71] sm:$0xff] %v1218
    %1445 = vst [vmem:[%s1308 + $0xa1] sm:$0xff] %v1219
    %1446 = vst [vmem:[%s1308 + $0xb1] sm:$0xff] %v1220
    %1447 = vst [vmem:[%s1308 + $0xc1] sm:$0xff] %v1221
    %1448 = vst [vmem:[%s1308 + $0xd1] sm:$0xff] %v1222
    %1449 = vst [vmem:[%s1308 + $0xe1] sm:$0xff] %v1223
    %1450 = vst [vmem:[%s1308 + $0xf1] sm:$0xff] %v1224
    %1451 = vst [vmem:[%s1308 + $0x101] sm:$0xff] %v1225
    %1452 = vst [vmem:[%s1308 + $0x111] sm:$0xff] %v1226
    %1453 = vst [vmem:[%s1308 + $0x141] sm:$0xff] %v1227
    %1454 = vst [vmem:[%s1308 + $0x151] sm:$0xff] %v1228
    %1455 = vst [vmem:[%s1308 + $0x161] sm:$0xff] %v1229
    %1456 = vst [vmem:[%s1308 + $0x171] sm:$0xff] %v1230
    %1457 = vst [vmem:[%s1308 + $0x181] sm:$0xff] %v1231
    %1458 = vst [vmem:[%s1308 + $0x191] sm:$0xff] %v1232
    %1459 = vst [vmem:[%s1308 + $0x1a1] sm:$0xff] %v1233
    %1460 = vst [vmem:[%s1308 + $0x1b1] sm:$0xff] %v1234
    %1461 = vst [vmem:[%s1308 + $0x1e1] sm:$0xff] %v1235
    %1462 = vst [vmem:[%s1308 + $0x1f1] sm:$0xff] %v1236
    %1463 = vst [vmem:[%s1308 + $0x201] sm:$0xff] %v1237
    %1464 = vst [vmem:[%s1308 + $0x211] sm:$0xff] %v1238
    %1465 = vst [vmem:[%s1308 + $0x221] sm:$0xff] %v1239
    %1466 = vst [vmem:[%s1308 + $0x231] sm:$0xff] %v1240
    %1467 = vst [vmem:[%s1308 + $0x241] sm:$0xff] %v1241
    %1468 = vst [vmem:[%s1308 + $0x251] sm:$0xff] %v1242
    %1469 = vst [vmem:[%s1308 + $0x281] sm:$0xff] %v1243
    %1470 = vst [vmem:[%s1308 + $0x291] sm:$0xff] %v1244
    %1471 = vst [vmem:[%s1308 + $0x2a1] sm:$0xff] %v1245
    %1472 = vst [vmem:[%s1308 + $0x2b1] sm:$0xff] %v1246
    %1473 = vst [vmem:[%s1308 + $0x2c1] sm:$0xff] %v1247
    %1474 = vst [vmem:[%s1308 + $0x2d1] sm:$0xff] %v1248
    %1475 = vst [vmem:[%s1308 + $0x2e1] sm:$0xff] %v1249
    %1476 = vst [vmem:[%s1308 + $0x2f1] sm:$0xff] %v1250
    %1477 = vst [vmem:[%s1308 + $0x321] sm:$0xff] %v1251
    %1478 = vst [vmem:[%s1308 + $0x331] sm:$0xff] %v1252
    %1479 = vst [vmem:[%s1308 + $0x341] sm:$0xff] %v1253
    %1480 = vst [vmem:[%s1308 + $0x351] sm:$0xff] %v1254
    %1481 = vst [vmem:[%s1308 + $0x361] sm:$0xff] %v1255
    %1482 = vst [vmem:[%s1308 + $0x371] sm:$0xff] %v1256
    %1483 = vst [vmem:[%s1308 + $0x381] sm:$0xff] %v1257
    %1484 = vst [vmem:[%s1308 + $0x391] sm:$0xff] %v1258
    %1485 = vst [vmem:[%s1308 + $0x3c1] sm:$0xff] %v1259
    %1486 = vst [vmem:[%s1308 + $0x3d1] sm:$0xff] %v1260
    %1487 = vst [vmem:[%s1308 + $0x3e1] sm:$0xff] %v1261
    %1488 = vst [vmem:[%s1308 + $0x3f1] sm:$0xff] %v1262
    %1489 = vst [vmem:[%s1308 + $0x401] sm:$0xff] %v1263
    %1490 = vst [vmem:[%s1308 + $0x411] sm:$0xff] %v1264
    %1491 = vst [vmem:[%s1308 + $0x421] sm:$0xff] %v1265
    %1492 = vst [vmem:[%s1308 + $0x431] sm:$0xff] %v1266
    %1493 = vst [vmem:[%s1308 + $0x461] sm:$0xff] %v1267
    %1494 = vst [vmem:[%s1308 + $0x471] sm:$0xff] %v1268
    %1495 = vst [vmem:[%s1308 + $0x481] sm:$0xff] %v1269
    %1496 = vst [vmem:[%s1308 + $0x491] sm:$0xff] %v1270
    %1497 = vst [vmem:[%s1308 + $0x4a1] sm:$0xff] %v1271
    %1498 = vst [vmem:[%s1308 + $0x4b1] sm:$0xff] %v1272
    %1499 = vst [vmem:[%s1308 + $0x4c1] sm:$0xff] %v1273
    %1500 = vst [vmem:[%s1308 + $0x4d1] sm:$0xff] %v1274
    %v1501 = vld [vmem:[#allocation8] sm:$0xff]
    %v1502 = vld [vmem:[#allocation8 + $0x8] sm:$0x1]
    %v1503 = vld [vmem:[%s4] sm:$0x1]
    %v1505 = vlaneseq
    %v1506 = vshrl.u32 %v1505, 7
    %v1507 = vsub.s32 0, %v1506
    %v1508 = vrot.slane %v1503, %v1507
    %v1510 = vld [vmem:[#allocation2] sm:$0xff]
    %v1511 = vld [vmem:[#allocation2 + $0x10] sm:$0xff]
    %v1512 = vld [vmem:[#allocation2 + $0x20] sm:$0xff]
    %v1513 = vld [vmem:[#allocation2 + $0x30] sm:$0xff]
    %v1514 = vld [vmem:[#allocation2 + $0x40] sm:$0xff]
    %v1515 = vld [vmem:[#allocation2 + $0x50] sm:$0xff]
    %v1516 = vld [vmem:[#allocation2 + $0x60] sm:$0xff]
    %v1517 = vld [vmem:[#allocation2 + $0x70] sm:$0xff]
    %v1518 = vld [vmem:[#allocation2 + $0xa0] sm:$0xff]
    %v1519 = vld [vmem:[#allocation2 + $0xb0] sm:$0xff]
    %v1520 = vld [vmem:[#allocation2 + $0xc0] sm:$0xff]
    %v1521 = vld [vmem:[#allocation2 + $0xd0] sm:$0xff]
    %v1522 = vld [vmem:[#allocation2 + $0xe0] sm:$0xff]
    %v1523 = vld [vmem:[#allocation2 + $0xf0] sm:$0xff]
    %v1524 = vld [vmem:[#allocation2 + $0x100] sm:$0xff]
    %v1525 = vld [vmem:[#allocation2 + $0x110] sm:$0xff]
    %v1526 = vld [vmem:[#allocation2 + $0x140] sm:$0xff]
    %v1527 = vld [vmem:[#allocation2 + $0x150] sm:$0xff]
    %v1528 = vld [vmem:[#allocation2 + $0x160] sm:$0xff]
    %v1529 = vld [vmem:[#allocation2 + $0x170] sm:$0xff]
    %v1530 = vld [vmem:[#allocation2 + $0x180] sm:$0xff]
    %v1531 = vld [vmem:[#allocation2 + $0x190] sm:$0xff]
    %v1532 = vld [vmem:[#allocation2 + $0x1a0] sm:$0xff]
    %v1533 = vld [vmem:[#allocation2 + $0x1b0] sm:$0xff]
    %v1534 = vld [vmem:[#allocation2 + $0x1e0] sm:$0xff]
    %v1535 = vld [vmem:[#allocation2 + $0x1f0] sm:$0xff]
    %v1536 = vld [vmem:[#allocation2 + $0x200] sm:$0xff]
    %v1537 = vld [vmem:[#allocation2 + $0x210] sm:$0xff]
    %v1538 = vld [vmem:[#allocation2 + $0x220] sm:$0xff]
    %v1539 = vld [vmem:[#allocation2 + $0x230] sm:$0xff]
    %v1540 = vld [vmem:[#allocation2 + $0x240] sm:$0xff]
    %v1541 = vld [vmem:[#allocation2 + $0x250] sm:$0xff]
    %v1542 = vld [vmem:[#allocation2 + $0x280] sm:$0xff]
    %v1543 = vld [vmem:[#allocation2 + $0x290] sm:$0xff]
    %v1544 = vld [vmem:[#allocation2 + $0x2a0] sm:$0xff]
    %v1545 = vld [vmem:[#allocation2 + $0x2b0] sm:$0xff]
    %v1546 = vld [vmem:[#allocation2 + $0x2c0] sm:$0xff]
    %v1547 = vld [vmem:[#allocation2 + $0x2d0] sm:$0xff]
    %v1548 = vld [vmem:[#allocation2 + $0x2e0] sm:$0xff]
    %v1549 = vld [vmem:[#allocation2 + $0x2f0] sm:$0xff]
    %v1550 = vld [vmem:[#allocation2 + $0x320] sm:$0xff]
    %v1551 = vld [vmem:[#allocation2 + $0x330] sm:$0xff]
    %v1552 = vld [vmem:[#allocation2 + $0x340] sm:$0xff]
    %v1553 = vld [vmem:[#allocation2 + $0x350] sm:$0xff]
    %v1554 = vld [vmem:[#allocation2 + $0x360] sm:$0xff]
    %v1555 = vld [vmem:[#allocation2 + $0x370] sm:$0xff]
    %v1556 = vld [vmem:[#allocation2 + $0x380] sm:$0xff]
    %v1557 = vld [vmem:[#allocation2 + $0x390] sm:$0xff]
    %v1558 = vld [vmem:[#allocation2 + $0x3c0] sm:$0xff]
    %v1559 = vld [vmem:[#allocation2 + $0x3d0] sm:$0xff]
    %v1560 = vld [vmem:[#allocation2 + $0x3e0] sm:$0xff]
    %v1561 = vld [vmem:[#allocation2 + $0x3f0] sm:$0xff]
    %v1562 = vld [vmem:[#allocation2 + $0x400] sm:$0xff]
    %v1563 = vld [vmem:[#allocation2 + $0x410] sm:$0xff]
    %v1564 = vld [vmem:[#allocation2 + $0x420] sm:$0xff]
    %v1565 = vld [vmem:[#allocation2 + $0x430] sm:$0xff]
    %v1566 = vld [vmem:[#allocation2 + $0x460] sm:$0xff]
    %v1567 = vld [vmem:[#allocation2 + $0x470] sm:$0xff]
    %v1568 = vld [vmem:[#allocation2 + $0x480] sm:$0xff]
    %v1569 = vld [vmem:[#allocation2 + $0x490] sm:$0xff]
    %v1570 = vld [vmem:[#allocation2 + $0x4a0] sm:$0xff]
    %v1571 = vld [vmem:[#allocation2 + $0x4b0] sm:$0xff]
    %v1572 = vld [vmem:[#allocation2 + $0x4c0] sm:$0xff]
    %v1573 = vld [vmem:[#allocation2 + $0x4d0] sm:$0xff]
    %v1574 = vlaneseq
    %v1575 = vshrl.u32 %v1574, 7
    %v1576 = vsub.s32 0, %v1575
    %v1577 = vrot.slane %v1501, %v1576
    %v1578 = vmul.f32 %v1577, %v1510
    %v1579 = vmul.f32 %v1577, %v1511
    %v1580 = vmul.f32 %v1577, %v1512
    %v1581 = vmul.f32 %v1577, %v1513
    %v1582 = vmul.f32 %v1577, %v1514
    %v1583 = vmul.f32 %v1577, %v1515
    %v1584 = vmul.f32 %v1577, %v1516
    %v1585 = vmul.f32 %v1577, %v1517
    %v1586 = vmul.f32 %v1577, %v1518
    %v1587 = vmul.f32 %v1577, %v1519
    %v1588 = vmul.f32 %v1577, %v1520
    %v1589 = vmul.f32 %v1577, %v1521
    %v1590 = vmul.f32 %v1577, %v1522
    %v1591 = vmul.f32 %v1577, %v1523
    %v1592 = vmul.f32 %v1577, %v1524
    %v1593 = vmul.f32 %v1577, %v1525
    %v1594 = vmul.f32 %v1577, %v1526
    %v1595 = vmul.f32 %v1577, %v1527
    %v1596 = vmul.f32 %v1577, %v1528
    %v1597 = vmul.f32 %v1577, %v1529
    %v1598 = vmul.f32 %v1577, %v1530
    %v1599 = vmul.f32 %v1577, %v1531
    %v1600 = vmul.f32 %v1577, %v1532
    %v1601 = vmul.f32 %v1577, %v1533
    %v1602 = vmul.f32 %v1577, %v1534
    %v1603 = vmul.f32 %v1577, %v1535
    %v1604 = vmul.f32 %v1577, %v1536
    %v1605 = vmul.f32 %v1577, %v1537
    %v1606 = vmul.f32 %v1577, %v1538
    %v1607 = vmul.f32 %v1577, %v1539
    %v1608 = vmul.f32 %v1577, %v1540
    %v1609 = vmul.f32 %v1577, %v1541
    %v1610 = vmul.f32 %v1577, %v1542
    %v1611 = vmul.f32 %v1577, %v1543
    %v1612 = vmul.f32 %v1577, %v1544
    %v1613 = vmul.f32 %v1577, %v1545
    %v1614 = vmul.f32 %v1577, %v1546
    %v1615 = vmul.f32 %v1577, %v1547
    %v1616 = vmul.f32 %v1577, %v1548
    %v1617 = vmul.f32 %v1577, %v1549
    %v1618 = vmul.f32 %v1577, %v1550
    %v1619 = vmul.f32 %v1577, %v1551
    %v1620 = vmul.f32 %v1577, %v1552
    %v1621 = vmul.f32 %v1577, %v1553
    %v1622 = vmul.f32 %v1577, %v1554
    %v1623 = vmul.f32 %v1577, %v1555
    %v1624 = vmul.f32 %v1577, %v1556
    %v1625 = vmul.f32 %v1577, %v1557
    %v1626 = vmul.f32 %v1577, %v1558
    %v1627 = vmul.f32 %v1577, %v1559
    %v1628 = vmul.f32 %v1577, %v1560
    %v1629 = vmul.f32 %v1577, %v1561
    %v1630 = vmul.f32 %v1577, %v1562
    %v1631 = vmul.f32 %v1577, %v1563
    %v1632 = vmul.f32 %v1577, %v1564
    %v1633 = vmul.f32 %v1577, %v1565
    %v1634 = vmul.f32 %v1577, %v1566
    %v1635 = vmul.f32 %v1577, %v1567
    %v1636 = vmul.f32 %v1577, %v1568
    %v1637 = vmul.f32 %v1577, %v1569
    %v1638 = vmul.f32 %v1577, %v1570
    %v1639 = vmul.f32 %v1577, %v1571
    %v1640 = vmul.f32 %v1577, %v1572
    %v1641 = vmul.f32 %v1577, %v1573
    %v1642 = vadd.f32 %v1508, %v1578
    %v1643 = vadd.f32 %v1508, %v1579
    %v1644 = vadd.f32 %v1508, %v1580
    %v1645 = vadd.f32 %v1508, %v1581
    %v1646 = vadd.f32 %v1508, %v1582
    %v1647 = vadd.f32 %v1508, %v1583
    %v1648 = vadd.f32 %v1508, %v1584
    %v1649 = vadd.f32 %v1508, %v1585
    %v1650 = vadd.f32 %v1508, %v1586
    %v1651 = vadd.f32 %v1508, %v1587
    %v1652 = vadd.f32 %v1508, %v1588
    %v1653 = vadd.f32 %v1508, %v1589
    %v1654 = vadd.f32 %v1508, %v1590
    %v1655 = vadd.f32 %v1508, %v1591
    %v1656 = vadd.f32 %v1508, %v1592
    %v1657 = vadd.f32 %v1508, %v1593
    %v1658 = vadd.f32 %v1508, %v1594
    %v1659 = vadd.f32 %v1508, %v1595
    %v1660 = vadd.f32 %v1508, %v1596
    %v1661 = vadd.f32 %v1508, %v1597
    %v1662 = vadd.f32 %v1508, %v1598
    %v1663 = vadd.f32 %v1508, %v1599
    %v1664 = vadd.f32 %v1508, %v1600
    %v1665 = vadd.f32 %v1508, %v1601
    %v1666 = vadd.f32 %v1508, %v1602
    %v1667 = vadd.f32 %v1508, %v1603
    %v1668 = vadd.f32 %v1508, %v1604
    %v1669 = vadd.f32 %v1508, %v1605
    %v1670 = vadd.f32 %v1508, %v1606
    %v1671 = vadd.f32 %v1508, %v1607
    %v1672 = vadd.f32 %v1508, %v1608
    %v1673 = vadd.f32 %v1508, %v1609
    %v1674 = vadd.f32 %v1508, %v1610
    %v1675 = vadd.f32 %v1508, %v1611
    %v1676 = vadd.f32 %v1508, %v1612
    %v1677 = vadd.f32 %v1508, %v1613
    %v1678 = vadd.f32 %v1508, %v1614
    %v1679 = vadd.f32 %v1508, %v1615
    %v1680 = vadd.f32 %v1508, %v1616
    %v1681 = vadd.f32 %v1508, %v1617
    %v1682 = vadd.f32 %v1508, %v1618
    %v1683 = vadd.f32 %v1508, %v1619
    %v1684 = vadd.f32 %v1508, %v1620
    %v1685 = vadd.f32 %v1508, %v1621
    %v1686 = vadd.f32 %v1508, %v1622
    %v1687 = vadd.f32 %v1508, %v1623
    %v1688 = vadd.f32 %v1508, %v1624
    %v1689 = vadd.f32 %v1508, %v1625
    %v1690 = vadd.f32 %v1508, %v1626
    %v1691 = vadd.f32 %v1508, %v1627
    %v1692 = vadd.f32 %v1508, %v1628
    %v1693 = vadd.f32 %v1508, %v1629
    %v1694 = vadd.f32 %v1508, %v1630
    %v1695 = vadd.f32 %v1508, %v1631
    %v1696 = vadd.f32 %v1508, %v1632
    %v1697 = vadd.f32 %v1508, %v1633
    %v1698 = vadd.f32 %v1508, %v1634
    %v1699 = vadd.f32 %v1508, %v1635
    %v1700 = vadd.f32 %v1508, %v1636
    %v1701 = vadd.f32 %v1508, %v1637
    %v1702 = vadd.f32 %v1508, %v1638
    %v1703 = vadd.f32 %v1508, %v1639
    %v1704 = vadd.f32 %v1508, %v1640
    %v1705 = vadd.f32 %v1508, %v1641
    %v1706 = vld [vmem:[#allocation2 + $0x1] sm:$0xff]
    %v1707 = vld [vmem:[#allocation2 + $0x11] sm:$0xff]
    %v1708 = vld [vmem:[#allocation2 + $0x21] sm:$0xff]
    %v1709 = vld [vmem:[#allocation2 + $0x31] sm:$0xff]
    %v1710 = vld [vmem:[#allocation2 + $0x41] sm:$0xff]
    %v1711 = vld [vmem:[#allocation2 + $0x51] sm:$0xff]
    %v1712 = vld [vmem:[#allocation2 + $0x61] sm:$0xff]
    %v1713 = vld [vmem:[#allocation2 + $0x71] sm:$0xff]
    %v1714 = vld [vmem:[#allocation2 + $0xa1] sm:$0xff]
    %v1715 = vld [vmem:[#allocation2 + $0xb1] sm:$0xff]
    %v1716 = vld [vmem:[#allocation2 + $0xc1] sm:$0xff]
    %v1717 = vld [vmem:[#allocation2 + $0xd1] sm:$0xff]
    %v1718 = vld [vmem:[#allocation2 + $0xe1] sm:$0xff]
    %v1719 = vld [vmem:[#allocation2 + $0xf1] sm:$0xff]
    %v1720 = vld [vmem:[#allocation2 + $0x101] sm:$0xff]
    %v1721 = vld [vmem:[#allocation2 + $0x111] sm:$0xff]
    %v1722 = vld [vmem:[#allocation2 + $0x141] sm:$0xff]
    %v1723 = vld [vmem:[#allocation2 + $0x151] sm:$0xff]
    %v1724 = vld [vmem:[#allocation2 + $0x161] sm:$0xff]
    %v1725 = vld [vmem:[#allocation2 + $0x171] sm:$0xff]
    %v1726 = vld [vmem:[#allocation2 + $0x181] sm:$0xff]
    %v1727 = vld [vmem:[#allocation2 + $0x191] sm:$0xff]
    %v1728 = vld [vmem:[#allocation2 + $0x1a1] sm:$0xff]
    %v1729 = vld [vmem:[#allocation2 + $0x1b1] sm:$0xff]
    %v1730 = vld [vmem:[#allocation2 + $0x1e1] sm:$0xff]
    %v1731 = vld [vmem:[#allocation2 + $0x1f1] sm:$0xff]
    %v1732 = vld [vmem:[#allocation2 + $0x201] sm:$0xff]
    %v1733 = vld [vmem:[#allocation2 + $0x211] sm:$0xff]
    %v1734 = vld [vmem:[#allocation2 + $0x221] sm:$0xff]
    %v1735 = vld [vmem:[#allocation2 + $0x231] sm:$0xff]
    %v1736 = vld [vmem:[#allocation2 + $0x241] sm:$0xff]
    %v1737 = vld [vmem:[#allocation2 + $0x251] sm:$0xff]
    %v1738 = vld [vmem:[#allocation2 + $0x281] sm:$0xff]
    %v1739 = vld [vmem:[#allocation2 + $0x291] sm:$0xff]
    %v1740 = vld [vmem:[#allocation2 + $0x2a1] sm:$0xff]
    %v1741 = vld [vmem:[#allocation2 + $0x2b1] sm:$0xff]
    %v1742 = vld [vmem:[#allocation2 + $0x2c1] sm:$0xff]
    %v1743 = vld [vmem:[#allocation2 + $0x2d1] sm:$0xff]
    %v1744 = vld [vmem:[#allocation2 + $0x2e1] sm:$0xff]
    %v1745 = vld [vmem:[#allocation2 + $0x2f1] sm:$0xff]
    %v1746 = vld [vmem:[#allocation2 + $0x321] sm:$0xff]
    %v1747 = vld [vmem:[#allocation2 + $0x331] sm:$0xff]
    %v1748 = vld [vmem:[#allocation2 + $0x341] sm:$0xff]
    %v1749 = vld [vmem:[#allocation2 + $0x351] sm:$0xff]
    %v1750 = vld [vmem:[#allocation2 + $0x361] sm:$0xff]
    %v1751 = vld [vmem:[#allocation2 + $0x371] sm:$0xff]
    %v1752 = vld [vmem:[#allocation2 + $0x381] sm:$0xff]
    %v1753 = vld [vmem:[#allocation2 + $0x391] sm:$0xff]
    %v1754 = vld [vmem:[#allocation2 + $0x3c1] sm:$0xff]
    %v1755 = vld [vmem:[#allocation2 + $0x3d1] sm:$0xff]
    %v1756 = vld [vmem:[#allocation2 + $0x3e1] sm:$0xff]
    %v1757 = vld [vmem:[#allocation2 + $0x3f1] sm:$0xff]
    %v1758 = vld [vmem:[#allocation2 + $0x401] sm:$0xff]
    %v1759 = vld [vmem:[#allocation2 + $0x411] sm:$0xff]
    %v1760 = vld [vmem:[#allocation2 + $0x421] sm:$0xff]
    %v1761 = vld [vmem:[#allocation2 + $0x431] sm:$0xff]
    %v1762 = vld [vmem:[#allocation2 + $0x461] sm:$0xff]
    %v1763 = vld [vmem:[#allocation2 + $0x471] sm:$0xff]
    %v1764 = vld [vmem:[#allocation2 + $0x481] sm:$0xff]
    %v1765 = vld [vmem:[#allocation2 + $0x491] sm:$0xff]
    %v1766 = vld [vmem:[#allocation2 + $0x4a1] sm:$0xff]
    %v1767 = vld [vmem:[#allocation2 + $0x4b1] sm:$0xff]
    %v1768 = vld [vmem:[#allocation2 + $0x4c1] sm:$0xff]
    %v1769 = vld [vmem:[#allocation2 + $0x4d1] sm:$0xff]
    %v1770 = vlaneseq
    %v1771 = vshrl.u32 %v1770, 7
    %v1772 = vsub.s32 1, %v1771
    %v1773 = vrot.slane %v1501, %v1772
    %v1774 = vmul.f32 %v1773, %v1706
    %v1775 = vmul.f32 %v1773, %v1707
    %v1776 = vmul.f32 %v1773, %v1708
    %v1777 = vmul.f32 %v1773, %v1709
    %v1778 = vmul.f32 %v1773, %v1710
    %v1779 = vmul.f32 %v1773, %v1711
    %v1780 = vmul.f32 %v1773, %v1712
    %v1781 = vmul.f32 %v1773, %v1713
    %v1782 = vmul.f32 %v1773, %v1714
    %v1783 = vmul.f32 %v1773, %v1715
    %v1784 = vmul.f32 %v1773, %v1716
    %v1785 = vmul.f32 %v1773, %v1717
    %v1786 = vmul.f32 %v1773, %v1718
    %v1787 = vmul.f32 %v1773, %v1719
    %v1788 = vmul.f32 %v1773, %v1720
    %v1789 = vmul.f32 %v1773, %v1721
    %v1790 = vmul.f32 %v1773, %v1722
    %v1791 = vmul.f32 %v1773, %v1723
    %v1792 = vmul.f32 %v1773, %v1724
    %v1793 = vmul.f32 %v1773, %v1725
    %v1794 = vmul.f32 %v1773, %v1726
    %v1795 = vmul.f32 %v1773, %v1727
    %v1796 = vmul.f32 %v1773, %v1728
    %v1797 = vmul.f32 %v1773, %v1729
    %v1798 = vmul.f32 %v1773, %v1730
    %v1799 = vmul.f32 %v1773, %v1731
    %v1800 = vmul.f32 %v1773, %v1732
    %v1801 = vmul.f32 %v1773, %v1733
    %v1802 = vmul.f32 %v1773, %v1734
    %v1803 = vmul.f32 %v1773, %v1735
    %v1804 = vmul.f32 %v1773, %v1736
    %v1805 = vmul.f32 %v1773, %v1737
    %v1806 = vmul.f32 %v1773, %v1738
    %v1807 = vmul.f32 %v1773, %v1739
    %v1808 = vmul.f32 %v1773, %v1740
    %v1809 = vmul.f32 %v1773, %v1741
    %v1810 = vmul.f32 %v1773, %v1742
    %v1811 = vmul.f32 %v1773, %v1743
    %v1812 = vmul.f32 %v1773, %v1744
    %v1813 = vmul.f32 %v1773, %v1745
    %v1814 = vmul.f32 %v1773, %v1746
    %v1815 = vmul.f32 %v1773, %v1747
    %v1816 = vmul.f32 %v1773, %v1748
    %v1817 = vmul.f32 %v1773, %v1749
    %v1818 = vmul.f32 %v1773, %v1750
    %v1819 = vmul.f32 %v1773, %v1751
    %v1820 = vmul.f32 %v1773, %v1752
    %v1821 = vmul.f32 %v1773, %v1753
    %v1822 = vmul.f32 %v1773, %v1754
    %v1823 = vmul.f32 %v1773, %v1755
    %v1824 = vmul.f32 %v1773, %v1756
    %v1825 = vmul.f32 %v1773, %v1757
    %v1826 = vmul.f32 %v1773, %v1758
    %v1827 = vmul.f32 %v1773, %v1759
    %v1828 = vmul.f32 %v1773, %v1760
    %v1829 = vmul.f32 %v1773, %v1761
    %v1830 = vmul.f32 %v1773, %v1762
    %v1831 = vmul.f32 %v1773, %v1763
    %v1832 = vmul.f32 %v1773, %v1764
    %v1833 = vmul.f32 %v1773, %v1765
    %v1834 = vmul.f32 %v1773, %v1766
    %v1835 = vmul.f32 %v1773, %v1767
    %v1836 = vmul.f32 %v1773, %v1768
    %v1837 = vmul.f32 %v1773, %v1769
    %v1838 = vadd.f32 %v1642, %v1774
    %v1839 = vadd.f32 %v1643, %v1775
    %v1840 = vadd.f32 %v1644, %v1776
    %v1841 = vadd.f32 %v1645, %v1777
    %v1842 = vadd.f32 %v1646, %v1778
    %v1843 = vadd.f32 %v1647, %v1779
    %v1844 = vadd.f32 %v1648, %v1780
    %v1845 = vadd.f32 %v1649, %v1781
    %v1846 = vadd.f32 %v1650, %v1782
    %v1847 = vadd.f32 %v1651, %v1783
    %v1848 = vadd.f32 %v1652, %v1784
    %v1849 = vadd.f32 %v1653, %v1785
    %v1850 = vadd.f32 %v1654, %v1786
    %v1851 = vadd.f32 %v1655, %v1787
    %v1852 = vadd.f32 %v1656, %v1788
    %v1853 = vadd.f32 %v1657, %v1789
    %v1854 = vadd.f32 %v1658, %v1790
    %v1855 = vadd.f32 %v1659, %v1791
    %v1856 = vadd.f32 %v1660, %v1792
    %v1857 = vadd.f32 %v1661, %v1793
    %v1858 = vadd.f32 %v1662, %v1794
    %v1859 = vadd.f32 %v1663, %v1795
    %v1860 = vadd.f32 %v1664, %v1796
    %v1861 = vadd.f32 %v1665, %v1797
    %v1862 = vadd.f32 %v1666, %v1798
    %v1863 = vadd.f32 %v1667, %v1799
    %v1864 = vadd.f32 %v1668, %v1800
    %v1865 = vadd.f32 %v1669, %v1801
    %v1866 = vadd.f32 %v1670, %v1802
    %v1867 = vadd.f32 %v1671, %v1803
    %v1868 = vadd.f32 %v1672, %v1804
    %v1869 = vadd.f32 %v1673, %v1805
    %v1870 = vadd.f32 %v1674, %v1806
    %v1871 = vadd.f32 %v1675, %v1807
    %v1872 = vadd.f32 %v1676, %v1808
    %v1873 = vadd.f32 %v1677, %v1809
    %v1874 = vadd.f32 %v1678, %v1810
    %v1875 = vadd.f32 %v1679, %v1811
    %v1876 = vadd.f32 %v1680, %v1812
    %v1877 = vadd.f32 %v1681, %v1813
    %v1878 = vadd.f32 %v1682, %v1814
    %v1879 = vadd.f32 %v1683, %v1815
    %v1880 = vadd.f32 %v1684, %v1816
    %v1881 = vadd.f32 %v1685, %v1817
    %v1882 = vadd.f32 %v1686, %v1818
    %v1883 = vadd.f32 %v1687, %v1819
    %v1884 = vadd.f32 %v1688, %v1820
    %v1885 = vadd.f32 %v1689, %v1821
    %v1886 = vadd.f32 %v1690, %v1822
    %v1887 = vadd.f32 %v1691, %v1823
    %v1888 = vadd.f32 %v1692, %v1824
    %v1889 = vadd.f32 %v1693, %v1825
    %v1890 = vadd.f32 %v1694, %v1826
    %v1891 = vadd.f32 %v1695, %v1827
    %v1892 = vadd.f32 %v1696, %v1828
    %v1893 = vadd.f32 %v1697, %v1829
    %v1894 = vadd.f32 %v1698, %v1830
    %v1895 = vadd.f32 %v1699, %v1831
    %v1896 = vadd.f32 %v1700, %v1832
    %v1897 = vadd.f32 %v1701, %v1833
    %v1898 = vadd.f32 %v1702, %v1834
    %v1899 = vadd.f32 %v1703, %v1835
    %v1900 = vadd.f32 %v1704, %v1836
    %v1901 = vadd.f32 %v1705, %v1837
    %v1902 = vld [vmem:[#allocation2 + $0x2] sm:$0xff]
    %v1903 = vld [vmem:[#allocation2 + $0x12] sm:$0xff]
    %v1904 = vld [vmem:[#allocation2 + $0x22] sm:$0xff]
    %v1905 = vld [vmem:[#allocation2 + $0x32] sm:$0xff]
    %v1906 = vld [vmem:[#allocation2 + $0x42] sm:$0xff]
    %v1907 = vld [vmem:[#allocation2 + $0x52] sm:$0xff]
    %v1908 = vld [vmem:[#allocation2 + $0x62] sm:$0xff]
    %v1909 = vld [vmem:[#allocation2 + $0x72] sm:$0xff]
    %v1910 = vld [vmem:[#allocation2 + $0xa2] sm:$0xff]
    %v1911 = vld [vmem:[#allocation2 + $0xb2] sm:$0xff]
    %v1912 = vld [vmem:[#allocation2 + $0xc2] sm:$0xff]
    %v1913 = vld [vmem:[#allocation2 + $0xd2] sm:$0xff]
    %v1914 = vld [vmem:[#allocation2 + $0xe2] sm:$0xff]
    %v1915 = vld [vmem:[#allocation2 + $0xf2] sm:$0xff]
    %v1916 = vld [vmem:[#allocation2 + $0x102] sm:$0xff]
    %v1917 = vld [vmem:[#allocation2 + $0x112] sm:$0xff]
    %v1918 = vld [vmem:[#allocation2 + $0x142] sm:$0xff]
    %v1919 = vld [vmem:[#allocation2 + $0x152] sm:$0xff]
    %v1920 = vld [vmem:[#allocation2 + $0x162] sm:$0xff]
    %v1921 = vld [vmem:[#allocation2 + $0x172] sm:$0xff]
    %v1922 = vld [vmem:[#allocation2 + $0x182] sm:$0xff]
    %v1923 = vld [vmem:[#allocation2 + $0x192] sm:$0xff]
    %v1924 = vld [vmem:[#allocation2 + $0x1a2] sm:$0xff]
    %v1925 = vld [vmem:[#allocation2 + $0x1b2] sm:$0xff]
    %v1926 = vld [vmem:[#allocation2 + $0x1e2] sm:$0xff]
    %v1927 = vld [vmem:[#allocation2 + $0x1f2] sm:$0xff]
    %v1928 = vld [vmem:[#allocation2 + $0x202] sm:$0xff]
    %v1929 = vld [vmem:[#allocation2 + $0x212] sm:$0xff]
    %v1930 = vld [vmem:[#allocation2 + $0x222] sm:$0xff]
    %v1931 = vld [vmem:[#allocation2 + $0x232] sm:$0xff]
    %v1932 = vld [vmem:[#allocation2 + $0x242] sm:$0xff]
    %v1933 = vld [vmem:[#allocation2 + $0x252] sm:$0xff]
    %v1934 = vld [vmem:[#allocation2 + $0x282] sm:$0xff]
    %v1935 = vld [vmem:[#allocation2 + $0x292] sm:$0xff]
    %v1936 = vld [vmem:[#allocation2 + $0x2a2] sm:$0xff]
    %v1937 = vld [vmem:[#allocation2 + $0x2b2] sm:$0xff]
    %v1938 = vld [vmem:[#allocation2 + $0x2c2] sm:$0xff]
    %v1939 = vld [vmem:[#allocation2 + $0x2d2] sm:$0xff]
    %v1940 = vld [vmem:[#allocation2 + $0x2e2] sm:$0xff]
    %v1941 = vld [vmem:[#allocation2 + $0x2f2] sm:$0xff]
    %v1942 = vld [vmem:[#allocation2 + $0x322] sm:$0xff]
    %v1943 = vld [vmem:[#allocation2 + $0x332] sm:$0xff]
    %v1944 = vld [vmem:[#allocation2 + $0x342] sm:$0xff]
    %v1945 = vld [vmem:[#allocation2 + $0x352] sm:$0xff]
    %v1946 = vld [vmem:[#allocation2 + $0x362] sm:$0xff]
    %v1947 = vld [vmem:[#allocation2 + $0x372] sm:$0xff]
    %v1948 = vld [vmem:[#allocation2 + $0x382] sm:$0xff]
    %v1949 = vld [vmem:[#allocation2 + $0x392] sm:$0xff]
    %v1950 = vld [vmem:[#allocation2 + $0x3c2] sm:$0xff]
    %v1951 = vld [vmem:[#allocation2 + $0x3d2] sm:$0xff]
    %v1952 = vld [vmem:[#allocation2 + $0x3e2] sm:$0xff]
    %v1953 = vld [vmem:[#allocation2 + $0x3f2] sm:$0xff]
    %v1954 = vld [vmem:[#allocation2 + $0x402] sm:$0xff]
    %v1955 = vld [vmem:[#allocation2 + $0x412] sm:$0xff]
    %v1956 = vld [vmem:[#allocation2 + $0x422] sm:$0xff]
    %v1957 = vld [vmem:[#allocation2 + $0x432] sm:$0xff]
    %v1958 = vld [vmem:[#allocation2 + $0x462] sm:$0xff]
    %v1959 = vld [vmem:[#allocation2 + $0x472] sm:$0xff]
    %v1960 = vld [vmem:[#allocation2 + $0x482] sm:$0xff]
    %v1961 = vld [vmem:[#allocation2 + $0x492] sm:$0xff]
    %v1962 = vld [vmem:[#allocation2 + $0x4a2] sm:$0xff]
    %v1963 = vld [vmem:[#allocation2 + $0x4b2] sm:$0xff]
    %v1964 = vld [vmem:[#allocation2 + $0x4c2] sm:$0xff]
    %v1965 = vld [vmem:[#allocation2 + $0x4d2] sm:$0xff]
    %v1966 = vlaneseq
    %v1967 = vshrl.u32 %v1966, 7
    %v1968 = vsub.s32 2, %v1967
    %v1969 = vrot.slane %v1501, %v1968
    %v1970 = vmul.f32 %v1969, %v1902
    %v1971 = vmul.f32 %v1969, %v1903
    %v1972 = vmul.f32 %v1969, %v1904
    %v1973 = vmul.f32 %v1969, %v1905
    %v1974 = vmul.f32 %v1969, %v1906
    %v1975 = vmul.f32 %v1969, %v1907
    %v1976 = vmul.f32 %v1969, %v1908
    %v1977 = vmul.f32 %v1969, %v1909
    %v1978 = vmul.f32 %v1969, %v1910
    %v1979 = vmul.f32 %v1969, %v1911
    %v1980 = vmul.f32 %v1969, %v1912
    %v1981 = vmul.f32 %v1969, %v1913
    %v1982 = vmul.f32 %v1969, %v1914
    %v1983 = vmul.f32 %v1969, %v1915
    %v1984 = vmul.f32 %v1969, %v1916
    %v1985 = vmul.f32 %v1969, %v1917
    %v1986 = vmul.f32 %v1969, %v1918
    %v1987 = vmul.f32 %v1969, %v1919
    %v1988 = vmul.f32 %v1969, %v1920
    %v1989 = vmul.f32 %v1969, %v1921
    %v1990 = vmul.f32 %v1969, %v1922
    %v1991 = vmul.f32 %v1969, %v1923
    %v1992 = vmul.f32 %v1969, %v1924
    %v1993 = vmul.f32 %v1969, %v1925
    %v1994 = vmul.f32 %v1969, %v1926
    %v1995 = vmul.f32 %v1969, %v1927
    %v1996 = vmul.f32 %v1969, %v1928
    %v1997 = vmul.f32 %v1969, %v1929
    %v1998 = vmul.f32 %v1969, %v1930
    %v1999 = vmul.f32 %v1969, %v1931
    %v2000 = vmul.f32 %v1969, %v1932
    %v2001 = vmul.f32 %v1969, %v1933
    %v2002 = vmul.f32 %v1969, %v1934
    %v2003 = vmul.f32 %v1969, %v1935
    %v2004 = vmul.f32 %v1969, %v1936
    %v2005 = vmul.f32 %v1969, %v1937
    %v2006 = vmul.f32 %v1969, %v1938
    %v2007 = vmul.f32 %v1969, %v1939
    %v2008 = vmul.f32 %v1969, %v1940
    %v2009 = vmul.f32 %v1969, %v1941
    %v2010 = vmul.f32 %v1969, %v1942
    %v2011 = vmul.f32 %v1969, %v1943
    %v2012 = vmul.f32 %v1969, %v1944
    %v2013 = vmul.f32 %v1969, %v1945
    %v2014 = vmul.f32 %v1969, %v1946
    %v2015 = vmul.f32 %v1969, %v1947
    %v2016 = vmul.f32 %v1969, %v1948
    %v2017 = vmul.f32 %v1969, %v1949
    %v2018 = vmul.f32 %v1969, %v1950
    %v2019 = vmul.f32 %v1969, %v1951
    %v2020 = vmul.f32 %v1969, %v1952
    %v2021 = vmul.f32 %v1969, %v1953
    %v2022 = vmul.f32 %v1969, %v1954
    %v2023 = vmul.f32 %v1969, %v1955
    %v2024 = vmul.f32 %v1969, %v1956
    %v2025 = vmul.f32 %v1969, %v1957
    %v2026 = vmul.f32 %v1969, %v1958
    %v2027 = vmul.f32 %v1969, %v1959
    %v2028 = vmul.f32 %v1969, %v1960
    %v2029 = vmul.f32 %v1969, %v1961
    %v2030 = vmul.f32 %v1969, %v1962
    %v2031 = vmul.f32 %v1969, %v1963
    %v2032 = vmul.f32 %v1969, %v1964
    %v2033 = vmul.f32 %v1969, %v1965
    %v2034 = vadd.f32 %v1838, %v1970
    %v2035 = vadd.f32 %v1839, %v1971
    %v2036 = vadd.f32 %v1840, %v1972
    %v2037 = vadd.f32 %v1841, %v1973
    %v2038 = vadd.f32 %v1842, %v1974
    %v2039 = vadd.f32 %v1843, %v1975
    %v2040 = vadd.f32 %v1844, %v1976
    %v2041 = vadd.f32 %v1845, %v1977
    %v2042 = vadd.f32 %v1846, %v1978
    %v2043 = vadd.f32 %v1847, %v1979
    %v2044 = vadd.f32 %v1848, %v1980
    %v2045 = vadd.f32 %v1849, %v1981
    %v2046 = vadd.f32 %v1850, %v1982
    %v2047 = vadd.f32 %v1851, %v1983
    %v2048 = vadd.f32 %v1852, %v1984
    %v2049 = vadd.f32 %v1853, %v1985
    %v2050 = vadd.f32 %v1854, %v1986
    %v2051 = vadd.f32 %v1855, %v1987
    %v2052 = vadd.f32 %v1856, %v1988
    %v2053 = vadd.f32 %v1857, %v1989
    %v2054 = vadd.f32 %v1858, %v1990
    %v2055 = vadd.f32 %v1859, %v1991
    %v2056 = vadd.f32 %v1860, %v1992
    %v2057 = vadd.f32 %v1861, %v1993
    %v2058 = vadd.f32 %v1862, %v1994
    %v2059 = vadd.f32 %v1863, %v1995
    %v2060 = vadd.f32 %v1864, %v1996
    %v2061 = vadd.f32 %v1865, %v1997
    %v2062 = vadd.f32 %v1866, %v1998
    %v2063 = vadd.f32 %v1867, %v1999
    %v2064 = vadd.f32 %v1868, %v2000
    %v2065 = vadd.f32 %v1869, %v2001
    %v2066 = vadd.f32 %v1870, %v2002
    %v2067 = vadd.f32 %v1871, %v2003
    %v2068 = vadd.f32 %v1872, %v2004
    %v2069 = vadd.f32 %v1873, %v2005
    %v2070 = vadd.f32 %v1874, %v2006
    %v2071 = vadd.f32 %v1875, %v2007
    %v2072 = vadd.f32 %v1876, %v2008
    %v2073 = vadd.f32 %v1877, %v2009
    %v2074 = vadd.f32 %v1878, %v2010
    %v2075 = vadd.f32 %v1879, %v2011
    %v2076 = vadd.f32 %v1880, %v2012
    %v2077 = vadd.f32 %v1881, %v2013
    %v2078 = vadd.f32 %v1882, %v2014
    %v2079 = vadd.f32 %v1883, %v2015
    %v2080 = vadd.f32 %v1884, %v2016
    %v2081 = vadd.f32 %v1885, %v2017
    %v2082 = vadd.f32 %v1886, %v2018
    %v2083 = vadd.f32 %v1887, %v2019
    %v2084 = vadd.f32 %v1888, %v2020
    %v2085 = vadd.f32 %v1889, %v2021
    %v2086 = vadd.f32 %v1890, %v2022
    %v2087 = vadd.f32 %v1891, %v2023
    %v2088 = vadd.f32 %v1892, %v2024
    %v2089 = vadd.f32 %v1893, %v2025
    %v2090 = vadd.f32 %v1894, %v2026
    %v2091 = vadd.f32 %v1895, %v2027
    %v2092 = vadd.f32 %v1896, %v2028
    %v2093 = vadd.f32 %v1897, %v2029
    %v2094 = vadd.f32 %v1898, %v2030
    %v2095 = vadd.f32 %v1899, %v2031
    %v2096 = vadd.f32 %v1900, %v2032
    %v2097 = vadd.f32 %v1901, %v2033
    %v2098 = vld [vmem:[%s1308] sm:$0xff]
    %v2099 = vld [vmem:[%s1308 + $0x10] sm:$0xff]
    %v2100 = vld [vmem:[%s1308 + $0x20] sm:$0xff]
    %v2101 = vld [vmem:[%s1308 + $0x30] sm:$0xff]
    %v2102 = vld [vmem:[%s1308 + $0x40] sm:$0xff]
    %v2103 = vld [vmem:[%s1308 + $0x50] sm:$0xff]
    %v2104 = vld [vmem:[%s1308 + $0x60] sm:$0xff]
    %v2105 = vld [vmem:[%s1308 + $0x70] sm:$0xff]
    %v2106 = vld [vmem:[%s1308 + $0xa0] sm:$0xff]
    %v2107 = vld [vmem:[%s1308 + $0xb0] sm:$0xff]
    %v2108 = vld [vmem:[%s1308 + $0xc0] sm:$0xff]
    %v2109 = vld [vmem:[%s1308 + $0xd0] sm:$0xff]
    %v2110 = vld [vmem:[%s1308 + $0xe0] sm:$0xff]
    %v2111 = vld [vmem:[%s1308 + $0xf0] sm:$0xff]
    %v2112 = vld [vmem:[%s1308 + $0x100] sm:$0xff]
    %v2113 = vld [vmem:[%s1308 + $0x110] sm:$0xff]
    %v2114 = vld [vmem:[%s1308 + $0x140] sm:$0xff]
    %v2115 = vld [vmem:[%s1308 + $0x150] sm:$0xff]
    %v2116 = vld [vmem:[%s1308 + $0x160] sm:$0xff]
    %v2117 = vld [vmem:[%s1308 + $0x170] sm:$0xff]
    %v2118 = vld [vmem:[%s1308 + $0x180] sm:$0xff]
    %v2119 = vld [vmem:[%s1308 + $0x190] sm:$0xff]
    %v2120 = vld [vmem:[%s1308 + $0x1a0] sm:$0xff]
    %v2121 = vld [vmem:[%s1308 + $0x1b0] sm:$0xff]
    %v2122 = vld [vmem:[%s1308 + $0x1e0] sm:$0xff]
    %v2123 = vld [vmem:[%s1308 + $0x1f0] sm:$0xff]
    %v2124 = vld [vmem:[%s1308 + $0x200] sm:$0xff]
    %v2125 = vld [vmem:[%s1308 + $0x210] sm:$0xff]
    %v2126 = vld [vmem:[%s1308 + $0x220] sm:$0xff]
    %v2127 = vld [vmem:[%s1308 + $0x230] sm:$0xff]
    %v2128 = vld [vmem:[%s1308 + $0x240] sm:$0xff]
    %v2129 = vld [vmem:[%s1308 + $0x250] sm:$0xff]
    %v2130 = vld [vmem:[%s1308 + $0x280] sm:$0xff]
    %v2131 = vld [vmem:[%s1308 + $0x290] sm:$0xff]
    %v2132 = vld [vmem:[%s1308 + $0x2a0] sm:$0xff]
    %v2133 = vld [vmem:[%s1308 + $0x2b0] sm:$0xff]
    %v2134 = vld [vmem:[%s1308 + $0x2c0] sm:$0xff]
    %v2135 = vld [vmem:[%s1308 + $0x2d0] sm:$0xff]
    %v2136 = vld [vmem:[%s1308 + $0x2e0] sm:$0xff]
    %v2137 = vld [vmem:[%s1308 + $0x2f0] sm:$0xff]
    %v2138 = vld [vmem:[%s1308 + $0x320] sm:$0xff]
    %v2139 = vld [vmem:[%s1308 + $0x330] sm:$0xff]
    %v2140 = vld [vmem:[%s1308 + $0x340] sm:$0xff]
    %v2141 = vld [vmem:[%s1308 + $0x350] sm:$0xff]
    %v2142 = vld [vmem:[%s1308 + $0x360] sm:$0xff]
    %v2143 = vld [vmem:[%s1308 + $0x370] sm:$0xff]
    %v2144 = vld [vmem:[%s1308 + $0x380] sm:$0xff]
    %v2145 = vld [vmem:[%s1308 + $0x390] sm:$0xff]
    %v2146 = vld [vmem:[%s1308 + $0x3c0] sm:$0xff]
    %v2147 = vld [vmem:[%s1308 + $0x3d0] sm:$0xff]
    %v2148 = vld [vmem:[%s1308 + $0x3e0] sm:$0xff]
    %v2149 = vld [vmem:[%s1308 + $0x3f0] sm:$0xff]
    %v2150 = vld [vmem:[%s1308 + $0x400] sm:$0xff]
    %v2151 = vld [vmem:[%s1308 + $0x410] sm:$0xff]
    %v2152 = vld [vmem:[%s1308 + $0x420] sm:$0xff]
    %v2153 = vld [vmem:[%s1308 + $0x430] sm:$0xff]
    %v2154 = vld [vmem:[%s1308 + $0x460] sm:$0xff]
    %v2155 = vld [vmem:[%s1308 + $0x470] sm:$0xff]
    %v2156 = vld [vmem:[%s1308 + $0x480] sm:$0xff]
    %v2157 = vld [vmem:[%s1308 + $0x490] sm:$0xff]
    %v2158 = vld [vmem:[%s1308 + $0x4a0] sm:$0xff]
    %v2159 = vld [vmem:[%s1308 + $0x4b0] sm:$0xff]
    %v2160 = vld [vmem:[%s1308 + $0x4c0] sm:$0xff]
    %v2161 = vld [vmem:[%s1308 + $0x4d0] sm:$0xff]
    %v2162 = vlaneseq
    %v2163 = vshrl.u32 %v2162, 7
    %v2164 = vsub.s32 3, %v2163
    %v2165 = vrot.slane %v1501, %v2164
    %v2166 = vmul.f32 %v2165, %v2098
    %v2167 = vmul.f32 %v2165, %v2099
    %v2168 = vmul.f32 %v2165, %v2100
    %v2169 = vmul.f32 %v2165, %v2101
    %v2170 = vmul.f32 %v2165, %v2102
    %v2171 = vmul.f32 %v2165, %v2103
    %v2172 = vmul.f32 %v2165, %v2104
    %v2173 = vmul.f32 %v2165, %v2105
    %v2174 = vmul.f32 %v2165, %v2106
    %v2175 = vmul.f32 %v2165, %v2107
    %v2176 = vmul.f32 %v2165, %v2108
    %v2177 = vmul.f32 %v2165, %v2109
    %v2178 = vmul.f32 %v2165, %v2110
    %v2179 = vmul.f32 %v2165, %v2111
    %v2180 = vmul.f32 %v2165, %v2112
    %v2181 = vmul.f32 %v2165, %v2113
    %v2182 = vmul.f32 %v2165, %v2114
    %v2183 = vmul.f32 %v2165, %v2115
    %v2184 = vmul.f32 %v2165, %v2116
    %v2185 = vmul.f32 %v2165, %v2117
    %v2186 = vmul.f32 %v2165, %v2118
    %v2187 = vmul.f32 %v2165, %v2119
    %v2188 = vmul.f32 %v2165, %v2120
    %v2189 = vmul.f32 %v2165, %v2121
    %v2190 = vmul.f32 %v2165, %v2122
    %v2191 = vmul.f32 %v2165, %v2123
    %v2192 = vmul.f32 %v2165, %v2124
    %v2193 = vmul.f32 %v2165, %v2125
    %v2194 = vmul.f32 %v2165, %v2126
    %v2195 = vmul.f32 %v2165, %v2127
    %v2196 = vmul.f32 %v2165, %v2128
    %v2197 = vmul.f32 %v2165, %v2129
    %v2198 = vmul.f32 %v2165, %v2130
    %v2199 = vmul.f32 %v2165, %v2131
    %v2200 = vmul.f32 %v2165, %v2132
    %v2201 = vmul.f32 %v2165, %v2133
    %v2202 = vmul.f32 %v2165, %v2134
    %v2203 = vmul.f32 %v2165, %v2135
    %v2204 = vmul.f32 %v2165, %v2136
    %v2205 = vmul.f32 %v2165, %v2137
    %v2206 = vmul.f32 %v2165, %v2138
    %v2207 = vmul.f32 %v2165, %v2139
    %v2208 = vmul.f32 %v2165, %v2140
    %v2209 = vmul.f32 %v2165, %v2141
    %v2210 = vmul.f32 %v2165, %v2142
    %v2211 = vmul.f32 %v2165, %v2143
    %v2212 = vmul.f32 %v2165, %v2144
    %v2213 = vmul.f32 %v2165, %v2145
    %v2214 = vmul.f32 %v2165, %v2146
    %v2215 = vmul.f32 %v2165, %v2147
    %v2216 = vmul.f32 %v2165, %v2148
    %v2217 = vmul.f32 %v2165, %v2149
    %v2218 = vmul.f32 %v2165, %v2150
    %v2219 = vmul.f32 %v2165, %v2151
    %v2220 = vmul.f32 %v2165, %v2152
    %v2221 = vmul.f32 %v2165, %v2153
    %v2222 = vmul.f32 %v2165, %v2154
    %v2223 = vmul.f32 %v2165, %v2155
    %v2224 = vmul.f32 %v2165, %v2156
    %v2225 = vmul.f32 %v2165, %v2157
    %v2226 = vmul.f32 %v2165, %v2158
    %v2227 = vmul.f32 %v2165, %v2159
    %v2228 = vmul.f32 %v2165, %v2160
    %v2229 = vmul.f32 %v2165, %v2161
    %v2230 = vadd.f32 %v2034, %v2166
    %v2231 = vadd.f32 %v2035, %v2167
    %v2232 = vadd.f32 %v2036, %v2168
    %v2233 = vadd.f32 %v2037, %v2169
    %v2234 = vadd.f32 %v2038, %v2170
    %v2235 = vadd.f32 %v2039, %v2171
    %v2236 = vadd.f32 %v2040, %v2172
    %v2237 = vadd.f32 %v2041, %v2173
    %v2238 = vadd.f32 %v2042, %v2174
    %v2239 = vadd.f32 %v2043, %v2175
    %v2240 = vadd.f32 %v2044, %v2176
    %v2241 = vadd.f32 %v2045, %v2177
    %v2242 = vadd.f32 %v2046, %v2178
    %v2243 = vadd.f32 %v2047, %v2179
    %v2244 = vadd.f32 %v2048, %v2180
    %v2245 = vadd.f32 %v2049, %v2181
    %v2246 = vadd.f32 %v2050, %v2182
    %v2247 = vadd.f32 %v2051, %v2183
    %v2248 = vadd.f32 %v2052, %v2184
    %v2249 = vadd.f32 %v2053, %v2185
    %v2250 = vadd.f32 %v2054, %v2186
    %v2251 = vadd.f32 %v2055, %v2187
    %v2252 = vadd.f32 %v2056, %v2188
    %v2253 = vadd.f32 %v2057, %v2189
    %v2254 = vadd.f32 %v2058, %v2190
    %v2255 = vadd.f32 %v2059, %v2191
    %v2256 = vadd.f32 %v2060, %v2192
    %v2257 = vadd.f32 %v2061, %v2193
    %v2258 = vadd.f32 %v2062, %v2194
    %v2259 = vadd.f32 %v2063, %v2195
    %v2260 = vadd.f32 %v2064, %v2196
    %v2261 = vadd.f32 %v2065, %v2197
    %v2262 = vadd.f32 %v2066, %v2198
    %v2263 = vadd.f32 %v2067, %v2199
    %v2264 = vadd.f32 %v2068, %v2200
    %v2265 = vadd.f32 %v2069, %v2201
    %v2266 = vadd.f32 %v2070, %v2202
    %v2267 = vadd.f32 %v2071, %v2203
    %v2268 = vadd.f32 %v2072, %v2204
    %v2269 = vadd.f32 %v2073, %v2205
    %v2270 = vadd.f32 %v2074, %v2206
    %v2271 = vadd.f32 %v2075, %v2207
    %v2272 = vadd.f32 %v2076, %v2208
    %v2273 = vadd.f32 %v2077, %v2209
    %v2274 = vadd.f32 %v2078, %v2210
    %v2275 = vadd.f32 %v2079, %v2211
    %v2276 = vadd.f32 %v2080, %v2212
    %v2277 = vadd.f32 %v2081, %v2213
    %v2278 = vadd.f32 %v2082, %v2214
    %v2279 = vadd.f32 %v2083, %v2215
    %v2280 = vadd.f32 %v2084, %v2216
    %v2281 = vadd.f32 %v2085, %v2217
    %v2282 = vadd.f32 %v2086, %v2218
    %v2283 = vadd.f32 %v2087, %v2219
    %v2284 = vadd.f32 %v2088, %v2220
    %v2285 = vadd.f32 %v2089, %v2221
    %v2286 = vadd.f32 %v2090, %v2222
    %v2287 = vadd.f32 %v2091, %v2223
    %v2288 = vadd.f32 %v2092, %v2224
    %v2289 = vadd.f32 %v2093, %v2225
    %v2290 = vadd.f32 %v2094, %v2226
    %v2291 = vadd.f32 %v2095, %v2227
    %v2292 = vadd.f32 %v2096, %v2228
    %v2293 = vadd.f32 %v2097, %v2229
    %v2294 = vld [vmem:[%s1308 + $0x1] sm:$0xff]
    %v2295 = vld [vmem:[%s1308 + $0x11] sm:$0xff]
    %v2296 = vld [vmem:[%s1308 + $0x21] sm:$0xff]
    %v2297 = vld [vmem:[%s1308 + $0x31] sm:$0xff]
    %v2298 = vld [vmem:[%s1308 + $0x41] sm:$0xff]
    %v2299 = vld [vmem:[%s1308 + $0x51] sm:$0xff]
    %v2300 = vld [vmem:[%s1308 + $0x61] sm:$0xff]
    %v2301 = vld [vmem:[%s1308 + $0x71] sm:$0xff]
    %v2302 = vld [vmem:[%s1308 + $0xa1] sm:$0xff]
    %v2303 = vld [vmem:[%s1308 + $0xb1] sm:$0xff]
    %v2304 = vld [vmem:[%s1308 + $0xc1] sm:$0xff]
    %v2305 = vld [vmem:[%s1308 + $0xd1] sm:$0xff]
    %v2306 = vld [vmem:[%s1308 + $0xe1] sm:$0xff]
    %v2307 = vld [vmem:[%s1308 + $0xf1] sm:$0xff]
    %v2308 = vld [vmem:[%s1308 + $0x101] sm:$0xff]
    %v2309 = vld [vmem:[%s1308 + $0x111] sm:$0xff]
    %v2310 = vld [vmem:[%s1308 + $0x141] sm:$0xff]
    %v2311 = vld [vmem:[%s1308 + $0x151] sm:$0xff]
    %v2312 = vld [vmem:[%s1308 + $0x161] sm:$0xff]
    %v2313 = vld [vmem:[%s1308 + $0x171] sm:$0xff]
    %v2314 = vld [vmem:[%s1308 + $0x181] sm:$0xff]
    %v2315 = vld [vmem:[%s1308 + $0x191] sm:$0xff]
    %v2316 = vld [vmem:[%s1308 + $0x1a1] sm:$0xff]
    %v2317 = vld [vmem:[%s1308 + $0x1b1] sm:$0xff]
    %v2318 = vld [vmem:[%s1308 + $0x1e1] sm:$0xff]
    %v2319 = vld [vmem:[%s1308 + $0x1f1] sm:$0xff]
    %v2320 = vld [vmem:[%s1308 + $0x201] sm:$0xff]
    %v2321 = vld [vmem:[%s1308 + $0x211] sm:$0xff]
    %v2322 = vld [vmem:[%s1308 + $0x221] sm:$0xff]
    %v2323 = vld [vmem:[%s1308 + $0x231] sm:$0xff]
    %v2324 = vld [vmem:[%s1308 + $0x241] sm:$0xff]
    %v2325 = vld [vmem:[%s1308 + $0x251] sm:$0xff]
    %v2326 = vld [vmem:[%s1308 + $0x281] sm:$0xff]
    %v2327 = vld [vmem:[%s1308 + $0x291] sm:$0xff]
    %v2328 = vld [vmem:[%s1308 + $0x2a1] sm:$0xff]
    %v2329 = vld [vmem:[%s1308 + $0x2b1] sm:$0xff]
    %v2330 = vld [vmem:[%s1308 + $0x2c1] sm:$0xff]
    %v2331 = vld [vmem:[%s1308 + $0x2d1] sm:$0xff]
    %v2332 = vld [vmem:[%s1308 + $0x2e1] sm:$0xff]
    %v2333 = vld [vmem:[%s1308 + $0x2f1] sm:$0xff]
    %v2334 = vld [vmem:[%s1308 + $0x321] sm:$0xff]
    %v2335 = vld [vmem:[%s1308 + $0x331] sm:$0xff]
    %v2336 = vld [vmem:[%s1308 + $0x341] sm:$0xff]
    %v2337 = vld [vmem:[%s1308 + $0x351] sm:$0xff]
    %v2338 = vld [vmem:[%s1308 + $0x361] sm:$0xff]
    %v2339 = vld [vmem:[%s1308 + $0x371] sm:$0xff]
    %v2340 = vld [vmem:[%s1308 + $0x381] sm:$0xff]
    %v2341 = vld [vmem:[%s1308 + $0x391] sm:$0xff]
    %v2342 = vld [vmem:[%s1308 + $0x3c1] sm:$0xff]
    %v2343 = vld [vmem:[%s1308 + $0x3d1] sm:$0xff]
    %v2344 = vld [vmem:[%s1308 + $0x3e1] sm:$0xff]
    %v2345 = vld [vmem:[%s1308 + $0x3f1] sm:$0xff]
    %v2346 = vld [vmem:[%s1308 + $0x401] sm:$0xff]
    %v2347 = vld [vmem:[%s1308 + $0x411] sm:$0xff]
    %v2348 = vld [vmem:[%s1308 + $0x421] sm:$0xff]
    %v2349 = vld [vmem:[%s1308 + $0x431] sm:$0xff]
    %v2350 = vld [vmem:[%s1308 + $0x461] sm:$0xff]
    %v2351 = vld [vmem:[%s1308 + $0x471] sm:$0xff]
    %v2352 = vld [vmem:[%s1308 + $0x481] sm:$0xff]
    %v2353 = vld [vmem:[%s1308 + $0x491] sm:$0xff]
    %v2354 = vld [vmem:[%s1308 + $0x4a1] sm:$0xff]
    %v2355 = vld [vmem:[%s1308 + $0x4b1] sm:$0xff]
    %v2356 = vld [vmem:[%s1308 + $0x4c1] sm:$0xff]
    %v2357 = vld [vmem:[%s1308 + $0x4d1] sm:$0xff]
    %v2358 = vlaneseq
    %v2359 = vshrl.u32 %v2358, 7
    %v2360 = vsub.s32 4, %v2359
    %v2361 = vrot.slane %v1501, %v2360
    %v2362 = vmul.f32 %v2361, %v2294
    %v2363 = vmul.f32 %v2361, %v2295
    %v2364 = vmul.f32 %v2361, %v2296
    %v2365 = vmul.f32 %v2361, %v2297
    %v2366 = vmul.f32 %v2361, %v2298
    %v2367 = vmul.f32 %v2361, %v2299
    %v2368 = vmul.f32 %v2361, %v2300
    %v2369 = vmul.f32 %v2361, %v2301
    %v2370 = vmul.f32 %v2361, %v2302
    %v2371 = vmul.f32 %v2361, %v2303
    %v2372 = vmul.f32 %v2361, %v2304
    %v2373 = vmul.f32 %v2361, %v2305
    %v2374 = vmul.f32 %v2361, %v2306
    %v2375 = vmul.f32 %v2361, %v2307
    %v2376 = vmul.f32 %v2361, %v2308
    %v2377 = vmul.f32 %v2361, %v2309
    %v2378 = vmul.f32 %v2361, %v2310
    %v2379 = vmul.f32 %v2361, %v2311
    %v2380 = vmul.f32 %v2361, %v2312
    %v2381 = vmul.f32 %v2361, %v2313
    %v2382 = vmul.f32 %v2361, %v2314
    %v2383 = vmul.f32 %v2361, %v2315
    %v2384 = vmul.f32 %v2361, %v2316
    %v2385 = vmul.f32 %v2361, %v2317
    %v2386 = vmul.f32 %v2361, %v2318
    %v2387 = vmul.f32 %v2361, %v2319
    %v2388 = vmul.f32 %v2361, %v2320
    %v2389 = vmul.f32 %v2361, %v2321
    %v2390 = vmul.f32 %v2361, %v2322
    %v2391 = vmul.f32 %v2361, %v2323
    %v2392 = vmul.f32 %v2361, %v2324
    %v2393 = vmul.f32 %v2361, %v2325
    %v2394 = vmul.f32 %v2361, %v2326
    %v2395 = vmul.f32 %v2361, %v2327
    %v2396 = vmul.f32 %v2361, %v2328
    %v2397 = vmul.f32 %v2361, %v2329
    %v2398 = vmul.f32 %v2361, %v2330
    %v2399 = vmul.f32 %v2361, %v2331
    %v2400 = vmul.f32 %v2361, %v2332
    %v2401 = vmul.f32 %v2361, %v2333
    %v2402 = vmul.f32 %v2361, %v2334
    %v2403 = vmul.f32 %v2361, %v2335
    %v2404 = vmul.f32 %v2361, %v2336
    %v2405 = vmul.f32 %v2361, %v2337
    %v2406 = vmul.f32 %v2361, %v2338
    %v2407 = vmul.f32 %v2361, %v2339
    %v2408 = vmul.f32 %v2361, %v2340
    %v2409 = vmul.f32 %v2361, %v2341
    %v2410 = vmul.f32 %v2361, %v2342
    %v2411 = vmul.f32 %v2361, %v2343
    %v2412 = vmul.f32 %v2361, %v2344
    %v2413 = vmul.f32 %v2361, %v2345
    %v2414 = vmul.f32 %v2361, %v2346
    %v2415 = vmul.f32 %v2361, %v2347
    %v2416 = vmul.f32 %v2361, %v2348
    %v2417 = vmul.f32 %v2361, %v2349
    %v2418 = vmul.f32 %v2361, %v2350
    %v2419 = vmul.f32 %v2361, %v2351
    %v2420 = vmul.f32 %v2361, %v2352
    %v2421 = vmul.f32 %v2361, %v2353
    %v2422 = vmul.f32 %v2361, %v2354
    %v2423 = vmul.f32 %v2361, %v2355
    %v2424 = vmul.f32 %v2361, %v2356
    %v2425 = vmul.f32 %v2361, %v2357
    %v2426 = vadd.f32 %v2230, %v2362
    %v2427 = vadd.f32 %v2231, %v2363
    %v2428 = vadd.f32 %v2232, %v2364
    %v2429 = vadd.f32 %v2233, %v2365
    %v2430 = vadd.f32 %v2234, %v2366
    %v2431 = vadd.f32 %v2235, %v2367
    %v2432 = vadd.f32 %v2236, %v2368
    %v2433 = vadd.f32 %v2237, %v2369
    %v2434 = vadd.f32 %v2238, %v2370
    %v2435 = vadd.f32 %v2239, %v2371
    %v2436 = vadd.f32 %v2240, %v2372
    %v2437 = vadd.f32 %v2241, %v2373
    %v2438 = vadd.f32 %v2242, %v2374
    %v2439 = vadd.f32 %v2243, %v2375
    %v2440 = vadd.f32 %v2244, %v2376
    %v2441 = vadd.f32 %v2245, %v2377
    %v2442 = vadd.f32 %v2246, %v2378
    %v2443 = vadd.f32 %v2247, %v2379
    %v2444 = vadd.f32 %v2248, %v2380
    %v2445 = vadd.f32 %v2249, %v2381
    %v2446 = vadd.f32 %v2250, %v2382
    %v2447 = vadd.f32 %v2251, %v2383
    %v2448 = vadd.f32 %v2252, %v2384
    %v2449 = vadd.f32 %v2253, %v2385
    %v2450 = vadd.f32 %v2254, %v2386
    %v2451 = vadd.f32 %v2255, %v2387
    %v2452 = vadd.f32 %v2256, %v2388
    %v2453 = vadd.f32 %v2257, %v2389
    %v2454 = vadd.f32 %v2258, %v2390
    %v2455 = vadd.f32 %v2259, %v2391
    %v2456 = vadd.f32 %v2260, %v2392
    %v2457 = vadd.f32 %v2261, %v2393
    %v2458 = vadd.f32 %v2262, %v2394
    %v2459 = vadd.f32 %v2263, %v2395
    %v2460 = vadd.f32 %v2264, %v2396
    %v2461 = vadd.f32 %v2265, %v2397
    %v2462 = vadd.f32 %v2266, %v2398
    %v2463 = vadd.f32 %v2267, %v2399
    %v2464 = vadd.f32 %v2268, %v2400
    %v2465 = vadd.f32 %v2269, %v2401
    %v2466 = vadd.f32 %v2270, %v2402
    %v2467 = vadd.f32 %v2271, %v2403
    %v2468 = vadd.f32 %v2272, %v2404
    %v2469 = vadd.f32 %v2273, %v2405
    %v2470 = vadd.f32 %v2274, %v2406
    %v2471 = vadd.f32 %v2275, %v2407
    %v2472 = vadd.f32 %v2276, %v2408
    %v2473 = vadd.f32 %v2277, %v2409
    %v2474 = vadd.f32 %v2278, %v2410
    %v2475 = vadd.f32 %v2279, %v2411
    %v2476 = vadd.f32 %v2280, %v2412
    %v2477 = vadd.f32 %v2281, %v2413
    %v2478 = vadd.f32 %v2282, %v2414
    %v2479 = vadd.f32 %v2283, %v2415
    %v2480 = vadd.f32 %v2284, %v2416
    %v2481 = vadd.f32 %v2285, %v2417
    %v2482 = vadd.f32 %v2286, %v2418
    %v2483 = vadd.f32 %v2287, %v2419
    %v2484 = vadd.f32 %v2288, %v2420
    %v2485 = vadd.f32 %v2289, %v2421
    %v2486 = vadd.f32 %v2290, %v2422
    %v2487 = vadd.f32 %v2291, %v2423
    %v2488 = vadd.f32 %v2292, %v2424
    %v2489 = vadd.f32 %v2293, %v2425
    %v2490 = vld [vmem:[%s1308 + $0x2] sm:$0xff]
    %v2491 = vld [vmem:[%s1308 + $0x12] sm:$0xff]
    %v2492 = vld [vmem:[%s1308 + $0x22] sm:$0xff]
    %v2493 = vld [vmem:[%s1308 + $0x32] sm:$0xff]
    %v2494 = vld [vmem:[%s1308 + $0x42] sm:$0xff]
    %v2495 = vld [vmem:[%s1308 + $0x52] sm:$0xff]
    %v2496 = vld [vmem:[%s1308 + $0x62] sm:$0xff]
    %v2497 = vld [vmem:[%s1308 + $0x72] sm:$0xff]
    %v2498 = vld [vmem:[%s1308 + $0xa2] sm:$0xff]
    %v2499 = vld [vmem:[%s1308 + $0xb2] sm:$0xff]
    %v2500 = vld [vmem:[%s1308 + $0xc2] sm:$0xff]
    %v2501 = vld [vmem:[%s1308 + $0xd2] sm:$0xff]
    %v2502 = vld [vmem:[%s1308 + $0xe2] sm:$0xff]
    %v2503 = vld [vmem:[%s1308 + $0xf2] sm:$0xff]
    %v2504 = vld [vmem:[%s1308 + $0x102] sm:$0xff]
    %v2505 = vld [vmem:[%s1308 + $0x112] sm:$0xff]
    %v2506 = vld [vmem:[%s1308 + $0x142] sm:$0xff]
    %v2507 = vld [vmem:[%s1308 + $0x152] sm:$0xff]
    %v2508 = vld [vmem:[%s1308 + $0x162] sm:$0xff]
    %v2509 = vld [vmem:[%s1308 + $0x172] sm:$0xff]
    %v2510 = vld [vmem:[%s1308 + $0x182] sm:$0xff]
    %v2511 = vld [vmem:[%s1308 + $0x192] sm:$0xff]
    %v2512 = vld [vmem:[%s1308 + $0x1a2] sm:$0xff]
    %v2513 = vld [vmem:[%s1308 + $0x1b2] sm:$0xff]
    %v2514 = vld [vmem:[%s1308 + $0x1e2] sm:$0xff]
    %v2515 = vld [vmem:[%s1308 + $0x1f2] sm:$0xff]
    %v2516 = vld [vmem:[%s1308 + $0x202] sm:$0xff]
    %v2517 = vld [vmem:[%s1308 + $0x212] sm:$0xff]
    %v2518 = vld [vmem:[%s1308 + $0x222] sm:$0xff]
    %v2519 = vld [vmem:[%s1308 + $0x232] sm:$0xff]
    %v2520 = vld [vmem:[%s1308 + $0x242] sm:$0xff]
    %v2521 = vld [vmem:[%s1308 + $0x252] sm:$0xff]
    %v2522 = vld [vmem:[%s1308 + $0x282] sm:$0xff]
    %v2523 = vld [vmem:[%s1308 + $0x292] sm:$0xff]
    %v2524 = vld [vmem:[%s1308 + $0x2a2] sm:$0xff]
    %v2525 = vld [vmem:[%s1308 + $0x2b2] sm:$0xff]
    %v2526 = vld [vmem:[%s1308 + $0x2c2] sm:$0xff]
    %v2527 = vld [vmem:[%s1308 + $0x2d2] sm:$0xff]
    %v2528 = vld [vmem:[%s1308 + $0x2e2] sm:$0xff]
    %v2529 = vld [vmem:[%s1308 + $0x2f2] sm:$0xff]
    %v2530 = vld [vmem:[%s1308 + $0x322] sm:$0xff]
    %v2531 = vld [vmem:[%s1308 + $0x332] sm:$0xff]
    %v2532 = vld [vmem:[%s1308 + $0x342] sm:$0xff]
    %v2533 = vld [vmem:[%s1308 + $0x352] sm:$0xff]
    %v2534 = vld [vmem:[%s1308 + $0x362] sm:$0xff]
    %v2535 = vld [vmem:[%s1308 + $0x372] sm:$0xff]
    %v2536 = vld [vmem:[%s1308 + $0x382] sm:$0xff]
    %v2537 = vld [vmem:[%s1308 + $0x392] sm:$0xff]
    %v2538 = vld [vmem:[%s1308 + $0x3c2] sm:$0xff]
    %v2539 = vld [vmem:[%s1308 + $0x3d2] sm:$0xff]
    %v2540 = vld [vmem:[%s1308 + $0x3e2] sm:$0xff]
    %v2541 = vld [vmem:[%s1308 + $0x3f2] sm:$0xff]
    %v2542 = vld [vmem:[%s1308 + $0x402] sm:$0xff]
    %v2543 = vld [vmem:[%s1308 + $0x412] sm:$0xff]
    %v2544 = vld [vmem:[%s1308 + $0x422] sm:$0xff]
    %v2545 = vld [vmem:[%s1308 + $0x432] sm:$0xff]
    %v2546 = vld [vmem:[%s1308 + $0x462] sm:$0xff]
    %v2547 = vld [vmem:[%s1308 + $0x472] sm:$0xff]
    %v2548 = vld [vmem:[%s1308 + $0x482] sm:$0xff]
    %v2549 = vld [vmem:[%s1308 + $0x492] sm:$0xff]
    %v2550 = vld [vmem:[%s1308 + $0x4a2] sm:$0xff]
    %v2551 = vld [vmem:[%s1308 + $0x4b2] sm:$0xff]
    %v2552 = vld [vmem:[%s1308 + $0x4c2] sm:$0xff]
    %v2553 = vld [vmem:[%s1308 + $0x4d2] sm:$0xff]
    %v2554 = vlaneseq
    %v2555 = vshrl.u32 %v2554, 7
    %v2556 = vsub.s32 5, %v2555
    %v2557 = vrot.slane %v1501, %v2556
    %v2558 = vmul.f32 %v2557, %v2490
    %v2559 = vmul.f32 %v2557, %v2491
    %v2560 = vmul.f32 %v2557, %v2492
    %v2561 = vmul.f32 %v2557, %v2493
    %v2562 = vmul.f32 %v2557, %v2494
    %v2563 = vmul.f32 %v2557, %v2495
    %v2564 = vmul.f32 %v2557, %v2496
    %v2565 = vmul.f32 %v2557, %v2497
    %v2566 = vmul.f32 %v2557, %v2498
    %v2567 = vmul.f32 %v2557, %v2499
    %v2568 = vmul.f32 %v2557, %v2500
    %v2569 = vmul.f32 %v2557, %v2501
    %v2570 = vmul.f32 %v2557, %v2502
    %v2571 = vmul.f32 %v2557, %v2503
    %v2572 = vmul.f32 %v2557, %v2504
    %v2573 = vmul.f32 %v2557, %v2505
    %v2574 = vmul.f32 %v2557, %v2506
    %v2575 = vmul.f32 %v2557, %v2507
    %v2576 = vmul.f32 %v2557, %v2508
    %v2577 = vmul.f32 %v2557, %v2509
    %v2578 = vmul.f32 %v2557, %v2510
    %v2579 = vmul.f32 %v2557, %v2511
    %v2580 = vmul.f32 %v2557, %v2512
    %v2581 = vmul.f32 %v2557, %v2513
    %v2582 = vmul.f32 %v2557, %v2514
    %v2583 = vmul.f32 %v2557, %v2515
    %v2584 = vmul.f32 %v2557, %v2516
    %v2585 = vmul.f32 %v2557, %v2517
    %v2586 = vmul.f32 %v2557, %v2518
    %v2587 = vmul.f32 %v2557, %v2519
    %v2588 = vmul.f32 %v2557, %v2520
    %v2589 = vmul.f32 %v2557, %v2521
    %v2590 = vmul.f32 %v2557, %v2522
    %v2591 = vmul.f32 %v2557, %v2523
    %v2592 = vmul.f32 %v2557, %v2524
    %v2593 = vmul.f32 %v2557, %v2525
    %v2594 = vmul.f32 %v2557, %v2526
    %v2595 = vmul.f32 %v2557, %v2527
    %v2596 = vmul.f32 %v2557, %v2528
    %v2597 = vmul.f32 %v2557, %v2529
    %v2598 = vmul.f32 %v2557, %v2530
    %v2599 = vmul.f32 %v2557, %v2531
    %v2600 = vmul.f32 %v2557, %v2532
    %v2601 = vmul.f32 %v2557, %v2533
    %v2602 = vmul.f32 %v2557, %v2534
    %v2603 = vmul.f32 %v2557, %v2535
    %v2604 = vmul.f32 %v2557, %v2536
    %v2605 = vmul.f32 %v2557, %v2537
    %v2606 = vmul.f32 %v2557, %v2538
    %v2607 = vmul.f32 %v2557, %v2539
    %v2608 = vmul.f32 %v2557, %v2540
    %v2609 = vmul.f32 %v2557, %v2541
    %v2610 = vmul.f32 %v2557, %v2542
    %v2611 = vmul.f32 %v2557, %v2543
    %v2612 = vmul.f32 %v2557, %v2544
    %v2613 = vmul.f32 %v2557, %v2545
    %v2614 = vmul.f32 %v2557, %v2546
    %v2615 = vmul.f32 %v2557, %v2547
    %v2616 = vmul.f32 %v2557, %v2548
    %v2617 = vmul.f32 %v2557, %v2549
    %v2618 = vmul.f32 %v2557, %v2550
    %v2619 = vmul.f32 %v2557, %v2551
    %v2620 = vmul.f32 %v2557, %v2552
    %v2621 = vmul.f32 %v2557, %v2553
    %v2622 = vadd.f32 %v2426, %v2558
    %v2623 = vadd.f32 %v2427, %v2559
    %v2624 = vadd.f32 %v2428, %v2560
    %v2625 = vadd.f32 %v2429, %v2561
    %v2626 = vadd.f32 %v2430, %v2562
    %v2627 = vadd.f32 %v2431, %v2563
    %v2628 = vadd.f32 %v2432, %v2564
    %v2629 = vadd.f32 %v2433, %v2565
    %v2630 = vadd.f32 %v2434, %v2566
    %v2631 = vadd.f32 %v2435, %v2567
    %v2632 = vadd.f32 %v2436, %v2568
    %v2633 = vadd.f32 %v2437, %v2569
    %v2634 = vadd.f32 %v2438, %v2570
    %v2635 = vadd.f32 %v2439, %v2571
    %v2636 = vadd.f32 %v2440, %v2572
    %v2637 = vadd.f32 %v2441, %v2573
    %v2638 = vadd.f32 %v2442, %v2574
    %v2639 = vadd.f32 %v2443, %v2575
    %v2640 = vadd.f32 %v2444, %v2576
    %v2641 = vadd.f32 %v2445, %v2577
    %v2642 = vadd.f32 %v2446, %v2578
    %v2643 = vadd.f32 %v2447, %v2579
    %v2644 = vadd.f32 %v2448, %v2580
    %v2645 = vadd.f32 %v2449, %v2581
    %v2646 = vadd.f32 %v2450, %v2582
    %v2647 = vadd.f32 %v2451, %v2583
    %v2648 = vadd.f32 %v2452, %v2584
    %v2649 = vadd.f32 %v2453, %v2585
    %v2650 = vadd.f32 %v2454, %v2586
    %v2651 = vadd.f32 %v2455, %v2587
    %v2652 = vadd.f32 %v2456, %v2588
    %v2653 = vadd.f32 %v2457, %v2589
    %v2654 = vadd.f32 %v2458, %v2590
    %v2655 = vadd.f32 %v2459, %v2591
    %v2656 = vadd.f32 %v2460, %v2592
    %v2657 = vadd.f32 %v2461, %v2593
    %v2658 = vadd.f32 %v2462, %v2594
    %v2659 = vadd.f32 %v2463, %v2595
    %v2660 = vadd.f32 %v2464, %v2596
    %v2661 = vadd.f32 %v2465, %v2597
    %v2662 = vadd.f32 %v2466, %v2598
    %v2663 = vadd.f32 %v2467, %v2599
    %v2664 = vadd.f32 %v2468, %v2600
    %v2665 = vadd.f32 %v2469, %v2601
    %v2666 = vadd.f32 %v2470, %v2602
    %v2667 = vadd.f32 %v2471, %v2603
    %v2668 = vadd.f32 %v2472, %v2604
    %v2669 = vadd.f32 %v2473, %v2605
    %v2670 = vadd.f32 %v2474, %v2606
    %v2671 = vadd.f32 %v2475, %v2607
    %v2672 = vadd.f32 %v2476, %v2608
    %v2673 = vadd.f32 %v2477, %v2609
    %v2674 = vadd.f32 %v2478, %v2610
    %v2675 = vadd.f32 %v2479, %v2611
    %v2676 = vadd.f32 %v2480, %v2612
    %v2677 = vadd.f32 %v2481, %v2613
    %v2678 = vadd.f32 %v2482, %v2614
    %v2679 = vadd.f32 %v2483, %v2615
    %v2680 = vadd.f32 %v2484, %v2616
    %v2681 = vadd.f32 %v2485, %v2617
    %v2682 = vadd.f32 %v2486, %v2618
    %v2683 = vadd.f32 %v2487, %v2619
    %v2684 = vadd.f32 %v2488, %v2620
    %v2685 = vadd.f32 %v2489, %v2621
    %s2686 = scalar_lea.vmem [#allocation2], 32
    %v2687 = vld [vmem:[%s2686] sm:$0xff]
    %v2688 = vld [vmem:[%s2686 + $0x10] sm:$0xff]
    %v2689 = vld [vmem:[%s2686 + $0x20] sm:$0xff]
    %v2690 = vld [vmem:[%s2686 + $0x30] sm:$0xff]
    %v2691 = vld [vmem:[%s2686 + $0x40] sm:$0xff]
    %v2692 = vld [vmem:[%s2686 + $0x50] sm:$0xff]
    %v2693 = vld [vmem:[%s2686 + $0x60] sm:$0xff]
    %v2694 = vld [vmem:[%s2686 + $0x70] sm:$0xff]
    %v2695 = vld [vmem:[%s2686 + $0xa0] sm:$0xff]
    %v2696 = vld [vmem:[%s2686 + $0xb0] sm:$0xff]
    %v2697 = vld [vmem:[%s2686 + $0xc0] sm:$0xff]
    %v2698 = vld [vmem:[%s2686 + $0xd0] sm:$0xff]
    %v2699 = vld [vmem:[%s2686 + $0xe0] sm:$0xff]
    %v2700 = vld [vmem:[%s2686 + $0xf0] sm:$0xff]
    %v2701 = vld [vmem:[%s2686 + $0x100] sm:$0xff]
    %v2702 = vld [vmem:[%s2686 + $0x110] sm:$0xff]
    %v2703 = vld [vmem:[%s2686 + $0x140] sm:$0xff]
    %v2704 = vld [vmem:[%s2686 + $0x150] sm:$0xff]
    %v2705 = vld [vmem:[%s2686 + $0x160] sm:$0xff]
    %v2706 = vld [vmem:[%s2686 + $0x170] sm:$0xff]
    %v2707 = vld [vmem:[%s2686 + $0x180] sm:$0xff]
    %v2708 = vld [vmem:[%s2686 + $0x190] sm:$0xff]
    %v2709 = vld [vmem:[%s2686 + $0x1a0] sm:$0xff]
    %v2710 = vld [vmem:[%s2686 + $0x1b0] sm:$0xff]
    %v2711 = vld [vmem:[%s2686 + $0x1e0] sm:$0xff]
    %v2712 = vld [vmem:[%s2686 + $0x1f0] sm:$0xff]
    %v2713 = vld [vmem:[%s2686 + $0x200] sm:$0xff]
    %v2714 = vld [vmem:[%s2686 + $0x210] sm:$0xff]
    %v2715 = vld [vmem:[%s2686 + $0x220] sm:$0xff]
    %v2716 = vld [vmem:[%s2686 + $0x230] sm:$0xff]
    %v2717 = vld [vmem:[%s2686 + $0x240] sm:$0xff]
    %v2718 = vld [vmem:[%s2686 + $0x250] sm:$0xff]
    %v2719 = vld [vmem:[%s2686 + $0x280] sm:$0xff]
    %v2720 = vld [vmem:[%s2686 + $0x290] sm:$0xff]
    %v2721 = vld [vmem:[%s2686 + $0x2a0] sm:$0xff]
    %v2722 = vld [vmem:[%s2686 + $0x2b0] sm:$0xff]
    %v2723 = vld [vmem:[%s2686 + $0x2c0] sm:$0xff]
    %v2724 = vld [vmem:[%s2686 + $0x2d0] sm:$0xff]
    %v2725 = vld [vmem:[%s2686 + $0x2e0] sm:$0xff]
    %v2726 = vld [vmem:[%s2686 + $0x2f0] sm:$0xff]
    %v2727 = vld [vmem:[%s2686 + $0x320] sm:$0xff]
    %v2728 = vld [vmem:[%s2686 + $0x330] sm:$0xff]
    %v2729 = vld [vmem:[%s2686 + $0x340] sm:$0xff]
    %v2730 = vld [vmem:[%s2686 + $0x350] sm:$0xff]
    %v2731 = vld [vmem:[%s2686 + $0x360] sm:$0xff]
    %v2732 = vld [vmem:[%s2686 + $0x370] sm:$0xff]
    %v2733 = vld [vmem:[%s2686 + $0x380] sm:$0xff]
    %v2734 = vld [vmem:[%s2686 + $0x390] sm:$0xff]
    %v2735 = vld [vmem:[%s2686 + $0x3c0] sm:$0xff]
    %v2736 = vld [vmem:[%s2686 + $0x3d0] sm:$0xff]
    %v2737 = vld [vmem:[%s2686 + $0x3e0] sm:$0xff]
    %v2738 = vld [vmem:[%s2686 + $0x3f0] sm:$0xff]
    %v2739 = vld [vmem:[%s2686 + $0x400] sm:$0xff]
    %v2740 = vld [vmem:[%s2686 + $0x410] sm:$0xff]
    %v2741 = vld [vmem:[%s2686 + $0x420] sm:$0xff]
    %v2742 = vld [vmem:[%s2686 + $0x430] sm:$0xff]
    %v2743 = vld [vmem:[%s2686 + $0x460] sm:$0xff]
    %v2744 = vld [vmem:[%s2686 + $0x470] sm:$0xff]
    %v2745 = vld [vmem:[%s2686 + $0x480] sm:$0xff]
    %v2746 = vld [vmem:[%s2686 + $0x490] sm:$0xff]
    %v2747 = vld [vmem:[%s2686 + $0x4a0] sm:$0xff]
    %v2748 = vld [vmem:[%s2686 + $0x4b0] sm:$0xff]
    %v2749 = vld [vmem:[%s2686 + $0x4c0] sm:$0xff]
    %v2750 = vld [vmem:[%s2686 + $0x4d0] sm:$0xff]
    %v2751 = vlaneseq
    %v2752 = vshrl.u32 %v2751, 7
    %v2753 = vsub.s32 6, %v2752
    %v2754 = vrot.slane %v1501, %v2753
    %v2755 = vmul.f32 %v2754, %v2687
    %v2756 = vmul.f32 %v2754, %v2688
    %v2757 = vmul.f32 %v2754, %v2689
    %v2758 = vmul.f32 %v2754, %v2690
    %v2759 = vmul.f32 %v2754, %v2691
    %v2760 = vmul.f32 %v2754, %v2692
    %v2761 = vmul.f32 %v2754, %v2693
    %v2762 = vmul.f32 %v2754, %v2694
    %v2763 = vmul.f32 %v2754, %v2695
    %v2764 = vmul.f32 %v2754, %v2696
    %v2765 = vmul.f32 %v2754, %v2697
    %v2766 = vmul.f32 %v2754, %v2698
    %v2767 = vmul.f32 %v2754, %v2699
    %v2768 = vmul.f32 %v2754, %v2700
    %v2769 = vmul.f32 %v2754, %v2701
    %v2770 = vmul.f32 %v2754, %v2702
    %v2771 = vmul.f32 %v2754, %v2703
    %v2772 = vmul.f32 %v2754, %v2704
    %v2773 = vmul.f32 %v2754, %v2705
    %v2774 = vmul.f32 %v2754, %v2706
    %v2775 = vmul.f32 %v2754, %v2707
    %v2776 = vmul.f32 %v2754, %v2708
    %v2777 = vmul.f32 %v2754, %v2709
    %v2778 = vmul.f32 %v2754, %v2710
    %v2779 = vmul.f32 %v2754, %v2711
    %v2780 = vmul.f32 %v2754, %v2712
    %v2781 = vmul.f32 %v2754, %v2713
    %v2782 = vmul.f32 %v2754, %v2714
    %v2783 = vmul.f32 %v2754, %v2715
    %v2784 = vmul.f32 %v2754, %v2716
    %v2785 = vmul.f32 %v2754, %v2717
    %v2786 = vmul.f32 %v2754, %v2718
    %v2787 = vmul.f32 %v2754, %v2719
    %v2788 = vmul.f32 %v2754, %v2720
    %v2789 = vmul.f32 %v2754, %v2721
    %v2790 = vmul.f32 %v2754, %v2722
    %v2791 = vmul.f32 %v2754, %v2723
    %v2792 = vmul.f32 %v2754, %v2724
    %v2793 = vmul.f32 %v2754, %v2725
    %v2794 = vmul.f32 %v2754, %v2726
    %v2795 = vmul.f32 %v2754, %v2727
    %v2796 = vmul.f32 %v2754, %v2728
    %v2797 = vmul.f32 %v2754, %v2729
    %v2798 = vmul.f32 %v2754, %v2730
    %v2799 = vmul.f32 %v2754, %v2731
    %v2800 = vmul.f32 %v2754, %v2732
    %v2801 = vmul.f32 %v2754, %v2733
    %v2802 = vmul.f32 %v2754, %v2734
    %v2803 = vmul.f32 %v2754, %v2735
    %v2804 = vmul.f32 %v2754, %v2736
    %v2805 = vmul.f32 %v2754, %v2737
    %v2806 = vmul.f32 %v2754, %v2738
    %v2807 = vmul.f32 %v2754, %v2739
    %v2808 = vmul.f32 %v2754, %v2740
    %v2809 = vmul.f32 %v2754, %v2741
    %v2810 = vmul.f32 %v2754, %v2742
    %v2811 = vmul.f32 %v2754, %v2743
    %v2812 = vmul.f32 %v2754, %v2744
    %v2813 = vmul.f32 %v2754, %v2745
    %v2814 = vmul.f32 %v2754, %v2746
    %v2815 = vmul.f32 %v2754, %v2747
    %v2816 = vmul.f32 %v2754, %v2748
    %v2817 = vmul.f32 %v2754, %v2749
    %v2818 = vmul.f32 %v2754, %v2750
    %v2819 = vadd.f32 %v2622, %v2755
    %v2820 = vadd.f32 %v2623, %v2756
    %v2821 = vadd.f32 %v2624, %v2757
    %v2822 = vadd.f32 %v2625, %v2758
    %v2823 = vadd.f32 %v2626, %v2759
    %v2824 = vadd.f32 %v2627, %v2760
    %v2825 = vadd.f32 %v2628, %v2761
    %v2826 = vadd.f32 %v2629, %v2762
    %v2827 = vadd.f32 %v2630, %v2763
    %v2828 = vadd.f32 %v2631, %v2764
    %v2829 = vadd.f32 %v2632, %v2765
    %v2830 = vadd.f32 %v2633, %v2766
    %v2831 = vadd.f32 %v2634, %v2767
    %v2832 = vadd.f32 %v2635, %v2768
    %v2833 = vadd.f32 %v2636, %v2769
    %v2834 = vadd.f32 %v2637, %v2770
    %v2835 = vadd.f32 %v2638, %v2771
    %v2836 = vadd.f32 %v2639, %v2772
    %v2837 = vadd.f32 %v2640, %v2773
    %v2838 = vadd.f32 %v2641, %v2774
    %v2839 = vadd.f32 %v2642, %v2775
    %v2840 = vadd.f32 %v2643, %v2776
    %v2841 = vadd.f32 %v2644, %v2777
    %v2842 = vadd.f32 %v2645, %v2778
    %v2843 = vadd.f32 %v2646, %v2779
    %v2844 = vadd.f32 %v2647, %v2780
    %v2845 = vadd.f32 %v2648, %v2781
    %v2846 = vadd.f32 %v2649, %v2782
    %v2847 = vadd.f32 %v2650, %v2783
    %v2848 = vadd.f32 %v2651, %v2784
    %v2849 = vadd.f32 %v2652, %v2785
    %v2850 = vadd.f32 %v2653, %v2786
    %v2851 = vadd.f32 %v2654, %v2787
    %v2852 = vadd.f32 %v2655, %v2788
    %v2853 = vadd.f32 %v2656, %v2789
    %v2854 = vadd.f32 %v2657, %v2790
    %v2855 = vadd.f32 %v2658, %v2791
    %v2856 = vadd.f32 %v2659, %v2792
    %v2857 = vadd.f32 %v2660, %v2793
    %v2858 = vadd.f32 %v2661, %v2794
    %v2859 = vadd.f32 %v2662, %v2795
    %v2860 = vadd.f32 %v2663, %v2796
    %v2861 = vadd.f32 %v2664, %v2797
    %v2862 = vadd.f32 %v2665, %v2798
    %v2863 = vadd.f32 %v2666, %v2799
    %v2864 = vadd.f32 %v2667, %v2800
    %v2865 = vadd.f32 %v2668, %v2801
    %v2866 = vadd.f32 %v2669, %v2802
    %v2867 = vadd.f32 %v2670, %v2803
    %v2868 = vadd.f32 %v2671, %v2804
    %v2869 = vadd.f32 %v2672, %v2805
    %v2870 = vadd.f32 %v2673, %v2806
    %v2871 = vadd.f32 %v2674, %v2807
    %v2872 = vadd.f32 %v2675, %v2808
    %v2873 = vadd.f32 %v2676, %v2809
    %v2874 = vadd.f32 %v2677, %v2810
    %v2875 = vadd.f32 %v2678, %v2811
    %v2876 = vadd.f32 %v2679, %v2812
    %v2877 = vadd.f32 %v2680, %v2813
    %v2878 = vadd.f32 %v2681, %v2814
    %v2879 = vadd.f32 %v2682, %v2815
    %v2880 = vadd.f32 %v2683, %v2816
    %v2881 = vadd.f32 %v2684, %v2817
    %v2882 = vadd.f32 %v2685, %v2818
    %v2883 = vld [vmem:[%s2686 + $0x1] sm:$0xff]
    %v2884 = vld [vmem:[%s2686 + $0x11] sm:$0xff]
    %v2885 = vld [vmem:[%s2686 + $0x21] sm:$0xff]
    %v2886 = vld [vmem:[%s2686 + $0x31] sm:$0xff]
    %v2887 = vld [vmem:[%s2686 + $0x41] sm:$0xff]
    %v2888 = vld [vmem:[%s2686 + $0x51] sm:$0xff]
    %v2889 = vld [vmem:[%s2686 + $0x61] sm:$0xff]
    %v2890 = vld [vmem:[%s2686 + $0x71] sm:$0xff]
    %v2891 = vld [vmem:[%s2686 + $0xa1] sm:$0xff]
    %v2892 = vld [vmem:[%s2686 + $0xb1] sm:$0xff]
    %v2893 = vld [vmem:[%s2686 + $0xc1] sm:$0xff]
    %v2894 = vld [vmem:[%s2686 + $0xd1] sm:$0xff]
    %v2895 = vld [vmem:[%s2686 + $0xe1] sm:$0xff]
    %v2896 = vld [vmem:[%s2686 + $0xf1] sm:$0xff]
    %v2897 = vld [vmem:[%s2686 + $0x101] sm:$0xff]
    %v2898 = vld [vmem:[%s2686 + $0x111] sm:$0xff]
    %v2899 = vld [vmem:[%s2686 + $0x141] sm:$0xff]
    %v2900 = vld [vmem:[%s2686 + $0x151] sm:$0xff]
    %v2901 = vld [vmem:[%s2686 + $0x161] sm:$0xff]
    %v2902 = vld [vmem:[%s2686 + $0x171] sm:$0xff]
    %v2903 = vld [vmem:[%s2686 + $0x181] sm:$0xff]
    %v2904 = vld [vmem:[%s2686 + $0x191] sm:$0xff]
    %v2905 = vld [vmem:[%s2686 + $0x1a1] sm:$0xff]
    %v2906 = vld [vmem:[%s2686 + $0x1b1] sm:$0xff]
    %v2907 = vld [vmem:[%s2686 + $0x1e1] sm:$0xff]
    %v2908 = vld [vmem:[%s2686 + $0x1f1] sm:$0xff]
    %v2909 = vld [vmem:[%s2686 + $0x201] sm:$0xff]
    %v2910 = vld [vmem:[%s2686 + $0x211] sm:$0xff]
    %v2911 = vld [vmem:[%s2686 + $0x221] sm:$0xff]
    %v2912 = vld [vmem:[%s2686 + $0x231] sm:$0xff]
    %v2913 = vld [vmem:[%s2686 + $0x241] sm:$0xff]
    %v2914 = vld [vmem:[%s2686 + $0x251] sm:$0xff]
    %v2915 = vld [vmem:[%s2686 + $0x281] sm:$0xff]
    %v2916 = vld [vmem:[%s2686 + $0x291] sm:$0xff]
    %v2917 = vld [vmem:[%s2686 + $0x2a1] sm:$0xff]
    %v2918 = vld [vmem:[%s2686 + $0x2b1] sm:$0xff]
    %v2919 = vld [vmem:[%s2686 + $0x2c1] sm:$0xff]
    %v2920 = vld [vmem:[%s2686 + $0x2d1] sm:$0xff]
    %v2921 = vld [vmem:[%s2686 + $0x2e1] sm:$0xff]
    %v2922 = vld [vmem:[%s2686 + $0x2f1] sm:$0xff]
    %v2923 = vld [vmem:[%s2686 + $0x321] sm:$0xff]
    %v2924 = vld [vmem:[%s2686 + $0x331] sm:$0xff]
    %v2925 = vld [vmem:[%s2686 + $0x341] sm:$0xff]
    %v2926 = vld [vmem:[%s2686 + $0x351] sm:$0xff]
    %v2927 = vld [vmem:[%s2686 + $0x361] sm:$0xff]
    %v2928 = vld [vmem:[%s2686 + $0x371] sm:$0xff]
    %v2929 = vld [vmem:[%s2686 + $0x381] sm:$0xff]
    %v2930 = vld [vmem:[%s2686 + $0x391] sm:$0xff]
    %v2931 = vld [vmem:[%s2686 + $0x3c1] sm:$0xff]
    %v2932 = vld [vmem:[%s2686 + $0x3d1] sm:$0xff]
    %v2933 = vld [vmem:[%s2686 + $0x3e1] sm:$0xff]
    %v2934 = vld [vmem:[%s2686 + $0x3f1] sm:$0xff]
    %v2935 = vld [vmem:[%s2686 + $0x401] sm:$0xff]
    %v2936 = vld [vmem:[%s2686 + $0x411] sm:$0xff]
    %v2937 = vld [vmem:[%s2686 + $0x421] sm:$0xff]
    %v2938 = vld [vmem:[%s2686 + $0x431] sm:$0xff]
    %v2939 = vld [vmem:[%s2686 + $0x461] sm:$0xff]
    %v2940 = vld [vmem:[%s2686 + $0x471] sm:$0xff]
    %v2941 = vld [vmem:[%s2686 + $0x481] sm:$0xff]
    %v2942 = vld [vmem:[%s2686 + $0x491] sm:$0xff]
    %v2943 = vld [vmem:[%s2686 + $0x4a1] sm:$0xff]
    %v2944 = vld [vmem:[%s2686 + $0x4b1] sm:$0xff]
    %v2945 = vld [vmem:[%s2686 + $0x4c1] sm:$0xff]
    %v2946 = vld [vmem:[%s2686 + $0x4d1] sm:$0xff]
    %v2947 = vlaneseq
    %v2948 = vshrl.u32 %v2947, 7
    %v2949 = vsub.s32 7, %v2948
    %v2950 = vrot.slane %v1501, %v2949
    %v2951 = vmul.f32 %v2950, %v2883
    %v2952 = vmul.f32 %v2950, %v2884
    %v2953 = vmul.f32 %v2950, %v2885
    %v2954 = vmul.f32 %v2950, %v2886
    %v2955 = vmul.f32 %v2950, %v2887
    %v2956 = vmul.f32 %v2950, %v2888
    %v2957 = vmul.f32 %v2950, %v2889
    %v2958 = vmul.f32 %v2950, %v2890
    %v2959 = vmul.f32 %v2950, %v2891
    %v2960 = vmul.f32 %v2950, %v2892
    %v2961 = vmul.f32 %v2950, %v2893
    %v2962 = vmul.f32 %v2950, %v2894
    %v2963 = vmul.f32 %v2950, %v2895
    %v2964 = vmul.f32 %v2950, %v2896
    %v2965 = vmul.f32 %v2950, %v2897
    %v2966 = vmul.f32 %v2950, %v2898
    %v2967 = vmul.f32 %v2950, %v2899
    %v2968 = vmul.f32 %v2950, %v2900
    %v2969 = vmul.f32 %v2950, %v2901
    %v2970 = vmul.f32 %v2950, %v2902
    %v2971 = vmul.f32 %v2950, %v2903
    %v2972 = vmul.f32 %v2950, %v2904
    %v2973 = vmul.f32 %v2950, %v2905
    %v2974 = vmul.f32 %v2950, %v2906
    %v2975 = vmul.f32 %v2950, %v2907
    %v2976 = vmul.f32 %v2950, %v2908
    %v2977 = vmul.f32 %v2950, %v2909
    %v2978 = vmul.f32 %v2950, %v2910
    %v2979 = vmul.f32 %v2950, %v2911
    %v2980 = vmul.f32 %v2950, %v2912
    %v2981 = vmul.f32 %v2950, %v2913
    %v2982 = vmul.f32 %v2950, %v2914
    %v2983 = vmul.f32 %v2950, %v2915
    %v2984 = vmul.f32 %v2950, %v2916
    %v2985 = vmul.f32 %v2950, %v2917
    %v2986 = vmul.f32 %v2950, %v2918
    %v2987 = vmul.f32 %v2950, %v2919
    %v2988 = vmul.f32 %v2950, %v2920
    %v2989 = vmul.f32 %v2950, %v2921
    %v2990 = vmul.f32 %v2950, %v2922
    %v2991 = vmul.f32 %v2950, %v2923
    %v2992 = vmul.f32 %v2950, %v2924
    %v2993 = vmul.f32 %v2950, %v2925
    %v2994 = vmul.f32 %v2950, %v2926
    %v2995 = vmul.f32 %v2950, %v2927
    %v2996 = vmul.f32 %v2950, %v2928
    %v2997 = vmul.f32 %v2950, %v2929
    %v2998 = vmul.f32 %v2950, %v2930
    %v2999 = vmul.f32 %v2950, %v2931
    %v3000 = vmul.f32 %v2950, %v2932
    %v3001 = vmul.f32 %v2950, %v2933
    %v3002 = vmul.f32 %v2950, %v2934
    %v3003 = vmul.f32 %v2950, %v2935
    %v3004 = vmul.f32 %v2950, %v2936
    %v3005 = vmul.f32 %v2950, %v2937
    %v3006 = vmul.f32 %v2950, %v2938
    %v3007 = vmul.f32 %v2950, %v2939
    %v3008 = vmul.f32 %v2950, %v2940
    %v3009 = vmul.f32 %v2950, %v2941
    %v3010 = vmul.f32 %v2950, %v2942
    %v3011 = vmul.f32 %v2950, %v2943
    %v3012 = vmul.f32 %v2950, %v2944
    %v3013 = vmul.f32 %v2950, %v2945
    %v3014 = vmul.f32 %v2950, %v2946
    %v3015 = vadd.f32 %v2819, %v2951
    %v3016 = vadd.f32 %v2820, %v2952
    %v3017 = vadd.f32 %v2821, %v2953
    %v3018 = vadd.f32 %v2822, %v2954
    %v3019 = vadd.f32 %v2823, %v2955
    %v3020 = vadd.f32 %v2824, %v2956
    %v3021 = vadd.f32 %v2825, %v2957
    %v3022 = vadd.f32 %v2826, %v2958
    %v3023 = vadd.f32 %v2827, %v2959
    %v3024 = vadd.f32 %v2828, %v2960
    %v3025 = vadd.f32 %v2829, %v2961
    %v3026 = vadd.f32 %v2830, %v2962
    %v3027 = vadd.f32 %v2831, %v2963
    %v3028 = vadd.f32 %v2832, %v2964
    %v3029 = vadd.f32 %v2833, %v2965
    %v3030 = vadd.f32 %v2834, %v2966
    %v3031 = vadd.f32 %v2835, %v2967
    %v3032 = vadd.f32 %v2836, %v2968
    %v3033 = vadd.f32 %v2837, %v2969
    %v3034 = vadd.f32 %v2838, %v2970
    %v3035 = vadd.f32 %v2839, %v2971
    %v3036 = vadd.f32 %v2840, %v2972
    %v3037 = vadd.f32 %v2841, %v2973
    %v3038 = vadd.f32 %v2842, %v2974
    %v3039 = vadd.f32 %v2843, %v2975
    %v3040 = vadd.f32 %v2844, %v2976
    %v3041 = vadd.f32 %v2845, %v2977
    %v3042 = vadd.f32 %v2846, %v2978
    %v3043 = vadd.f32 %v2847, %v2979
    %v3044 = vadd.f32 %v2848, %v2980
    %v3045 = vadd.f32 %v2849, %v2981
    %v3046 = vadd.f32 %v2850, %v2982
    %v3047 = vadd.f32 %v2851, %v2983
    %v3048 = vadd.f32 %v2852, %v2984
    %v3049 = vadd.f32 %v2853, %v2985
    %v3050 = vadd.f32 %v2854, %v2986
    %v3051 = vadd.f32 %v2855, %v2987
    %v3052 = vadd.f32 %v2856, %v2988
    %v3053 = vadd.f32 %v2857, %v2989
    %v3054 = vadd.f32 %v2858, %v2990
    %v3055 = vadd.f32 %v2859, %v2991
    %v3056 = vadd.f32 %v2860, %v2992
    %v3057 = vadd.f32 %v2861, %v2993
    %v3058 = vadd.f32 %v2862, %v2994
    %v3059 = vadd.f32 %v2863, %v2995
    %v3060 = vadd.f32 %v2864, %v2996
    %v3061 = vadd.f32 %v2865, %v2997
    %v3062 = vadd.f32 %v2866, %v2998
    %v3063 = vadd.f32 %v2867, %v2999
    %v3064 = vadd.f32 %v2868, %v3000
    %v3065 = vadd.f32 %v2869, %v3001
    %v3066 = vadd.f32 %v2870, %v3002
    %v3067 = vadd.f32 %v2871, %v3003
    %v3068 = vadd.f32 %v2872, %v3004
    %v3069 = vadd.f32 %v2873, %v3005
    %v3070 = vadd.f32 %v2874, %v3006
    %v3071 = vadd.f32 %v2875, %v3007
    %v3072 = vadd.f32 %v2876, %v3008
    %v3073 = vadd.f32 %v2877, %v3009
    %v3074 = vadd.f32 %v2878, %v3010
    %v3075 = vadd.f32 %v2879, %v3011
    %v3076 = vadd.f32 %v2880, %v3012
    %v3077 = vadd.f32 %v2881, %v3013
    %v3078 = vadd.f32 %v2882, %v3014
    %v3079 = vld [vmem:[%s2686 + $0x2] sm:$0xff]
    %v3080 = vld [vmem:[%s2686 + $0x12] sm:$0xff]
    %v3081 = vld [vmem:[%s2686 + $0x22] sm:$0xff]
    %v3082 = vld [vmem:[%s2686 + $0x32] sm:$0xff]
    %v3083 = vld [vmem:[%s2686 + $0x42] sm:$0xff]
    %v3084 = vld [vmem:[%s2686 + $0x52] sm:$0xff]
    %v3085 = vld [vmem:[%s2686 + $0x62] sm:$0xff]
    %v3086 = vld [vmem:[%s2686 + $0x72] sm:$0xff]
    %v3087 = vld [vmem:[%s2686 + $0xa2] sm:$0xff]
    %v3088 = vld [vmem:[%s2686 + $0xb2] sm:$0xff]
    %v3089 = vld [vmem:[%s2686 + $0xc2] sm:$0xff]
    %v3090 = vld [vmem:[%s2686 + $0xd2] sm:$0xff]
    %v3091 = vld [vmem:[%s2686 + $0xe2] sm:$0xff]
    %v3092 = vld [vmem:[%s2686 + $0xf2] sm:$0xff]
    %v3093 = vld [vmem:[%s2686 + $0x102] sm:$0xff]
    %v3094 = vld [vmem:[%s2686 + $0x112] sm:$0xff]
    %v3095 = vld [vmem:[%s2686 + $0x142] sm:$0xff]
    %v3096 = vld [vmem:[%s2686 + $0x152] sm:$0xff]
    %v3097 = vld [vmem:[%s2686 + $0x162] sm:$0xff]
    %v3098 = vld [vmem:[%s2686 + $0x172] sm:$0xff]
    %v3099 = vld [vmem:[%s2686 + $0x182] sm:$0xff]
    %v3100 = vld [vmem:[%s2686 + $0x192] sm:$0xff]
    %v3101 = vld [vmem:[%s2686 + $0x1a2] sm:$0xff]
    %v3102 = vld [vmem:[%s2686 + $0x1b2] sm:$0xff]
    %v3103 = vld [vmem:[%s2686 + $0x1e2] sm:$0xff]
    %v3104 = vld [vmem:[%s2686 + $0x1f2] sm:$0xff]
    %v3105 = vld [vmem:[%s2686 + $0x202] sm:$0xff]
    %v3106 = vld [vmem:[%s2686 + $0x212] sm:$0xff]
    %v3107 = vld [vmem:[%s2686 + $0x222] sm:$0xff]
    %v3108 = vld [vmem:[%s2686 + $0x232] sm:$0xff]
    %v3109 = vld [vmem:[%s2686 + $0x242] sm:$0xff]
    %v3110 = vld [vmem:[%s2686 + $0x252] sm:$0xff]
    %v3111 = vld [vmem:[%s2686 + $0x282] sm:$0xff]
    %v3112 = vld [vmem:[%s2686 + $0x292] sm:$0xff]
    %v3113 = vld [vmem:[%s2686 + $0x2a2] sm:$0xff]
    %v3114 = vld [vmem:[%s2686 + $0x2b2] sm:$0xff]
    %v3115 = vld [vmem:[%s2686 + $0x2c2] sm:$0xff]
    %v3116 = vld [vmem:[%s2686 + $0x2d2] sm:$0xff]
    %v3117 = vld [vmem:[%s2686 + $0x2e2] sm:$0xff]
    %v3118 = vld [vmem:[%s2686 + $0x2f2] sm:$0xff]
    %v3119 = vld [vmem:[%s2686 + $0x322] sm:$0xff]
    %v3120 = vld [vmem:[%s2686 + $0x332] sm:$0xff]
    %v3121 = vld [vmem:[%s2686 + $0x342] sm:$0xff]
    %v3122 = vld [vmem:[%s2686 + $0x352] sm:$0xff]
    %v3123 = vld [vmem:[%s2686 + $0x362] sm:$0xff]
    %v3124 = vld [vmem:[%s2686 + $0x372] sm:$0xff]
    %v3125 = vld [vmem:[%s2686 + $0x382] sm:$0xff]
    %v3126 = vld [vmem:[%s2686 + $0x392] sm:$0xff]
    %v3127 = vld [vmem:[%s2686 + $0x3c2] sm:$0xff]
    %v3128 = vld [vmem:[%s2686 + $0x3d2] sm:$0xff]
    %v3129 = vld [vmem:[%s2686 + $0x3e2] sm:$0xff]
    %v3130 = vld [vmem:[%s2686 + $0x3f2] sm:$0xff]
    %v3131 = vld [vmem:[%s2686 + $0x402] sm:$0xff]
    %v3132 = vld [vmem:[%s2686 + $0x412] sm:$0xff]
    %v3133 = vld [vmem:[%s2686 + $0x422] sm:$0xff]
    %v3134 = vld [vmem:[%s2686 + $0x432] sm:$0xff]
    %v3135 = vld [vmem:[%s2686 + $0x462] sm:$0xff]
    %v3136 = vld [vmem:[%s2686 + $0x472] sm:$0xff]
    %v3137 = vld [vmem:[%s2686 + $0x482] sm:$0xff]
    %v3138 = vld [vmem:[%s2686 + $0x492] sm:$0xff]
    %v3139 = vld [vmem:[%s2686 + $0x4a2] sm:$0xff]
    %v3140 = vld [vmem:[%s2686 + $0x4b2] sm:$0xff]
    %v3141 = vld [vmem:[%s2686 + $0x4c2] sm:$0xff]
    %v3142 = vld [vmem:[%s2686 + $0x4d2] sm:$0xff]
    %v3143 = vlaneseq
    %v3144 = vshrl.u32 %v3143, 7
    %v3145 = vsub.s32 0, %v3144
    %v3146 = vrot.slane %v1502, %v3145
    %v3147 = vmul.f32 %v3146, %v3079
    %v3148 = vmul.f32 %v3146, %v3080
    %v3149 = vmul.f32 %v3146, %v3081
    %v3150 = vmul.f32 %v3146, %v3082
    %v3151 = vmul.f32 %v3146, %v3083
    %v3152 = vmul.f32 %v3146, %v3084
    %v3153 = vmul.f32 %v3146, %v3085
    %v3154 = vmul.f32 %v3146, %v3086
    %v3155 = vmul.f32 %v3146, %v3087
    %v3156 = vmul.f32 %v3146, %v3088
    %v3157 = vmul.f32 %v3146, %v3089
    %v3158 = vmul.f32 %v3146, %v3090
    %v3159 = vmul.f32 %v3146, %v3091
    %v3160 = vmul.f32 %v3146, %v3092
    %v3161 = vmul.f32 %v3146, %v3093
    %v3162 = vmul.f32 %v3146, %v3094
    %v3163 = vmul.f32 %v3146, %v3095
    %v3164 = vmul.f32 %v3146, %v3096
    %v3165 = vmul.f32 %v3146, %v3097
    %v3166 = vmul.f32 %v3146, %v3098
    %v3167 = vmul.f32 %v3146, %v3099
    %v3168 = vmul.f32 %v3146, %v3100
    %v3169 = vmul.f32 %v3146, %v3101
    %v3170 = vmul.f32 %v3146, %v3102
    %v3171 = vmul.f32 %v3146, %v3103
    %v3172 = vmul.f32 %v3146, %v3104
    %v3173 = vmul.f32 %v3146, %v3105
    %v3174 = vmul.f32 %v3146, %v3106
    %v3175 = vmul.f32 %v3146, %v3107
    %v3176 = vmul.f32 %v3146, %v3108
    %v3177 = vmul.f32 %v3146, %v3109
    %v3178 = vmul.f32 %v3146, %v3110
    %v3179 = vmul.f32 %v3146, %v3111
    %v3180 = vmul.f32 %v3146, %v3112
    %v3181 = vmul.f32 %v3146, %v3113
    %v3182 = vmul.f32 %v3146, %v3114
    %v3183 = vmul.f32 %v3146, %v3115
    %v3184 = vmul.f32 %v3146, %v3116
    %v3185 = vmul.f32 %v3146, %v3117
    %v3186 = vmul.f32 %v3146, %v3118
    %v3187 = vmul.f32 %v3146, %v3119
    %v3188 = vmul.f32 %v3146, %v3120
    %v3189 = vmul.f32 %v3146, %v3121
    %v3190 = vmul.f32 %v3146, %v3122
    %v3191 = vmul.f32 %v3146, %v3123
    %v3192 = vmul.f32 %v3146, %v3124
    %v3193 = vmul.f32 %v3146, %v3125
    %v3194 = vmul.f32 %v3146, %v3126
    %v3195 = vmul.f32 %v3146, %v3127
    %v3196 = vmul.f32 %v3146, %v3128
    %v3197 = vmul.f32 %v3146, %v3129
    %v3198 = vmul.f32 %v3146, %v3130
    %v3199 = vmul.f32 %v3146, %v3131
    %v3200 = vmul.f32 %v3146, %v3132
    %v3201 = vmul.f32 %v3146, %v3133
    %v3202 = vmul.f32 %v3146, %v3134
    %v3203 = vmul.f32 %v3146, %v3135
    %v3204 = vmul.f32 %v3146, %v3136
    %v3205 = vmul.f32 %v3146, %v3137
    %v3206 = vmul.f32 %v3146, %v3138
    %v3207 = vmul.f32 %v3146, %v3139
    %v3208 = vmul.f32 %v3146, %v3140
    %v3209 = vmul.f32 %v3146, %v3141
    %v3210 = vmul.f32 %v3146, %v3142
    %v3211 = vadd.f32 %v3015, %v3147
    %v3212 = vadd.f32 %v3016, %v3148
    %v3213 = vadd.f32 %v3017, %v3149
    %v3214 = vadd.f32 %v3018, %v3150
    %v3215 = vadd.f32 %v3019, %v3151
    %v3216 = vadd.f32 %v3020, %v3152
    %v3217 = vadd.f32 %v3021, %v3153
    %v3218 = vadd.f32 %v3022, %v3154
    %v3219 = vadd.f32 %v3023, %v3155
    %v3220 = vadd.f32 %v3024, %v3156
    %v3221 = vadd.f32 %v3025, %v3157
    %v3222 = vadd.f32 %v3026, %v3158
    %v3223 = vadd.f32 %v3027, %v3159
    %v3224 = vadd.f32 %v3028, %v3160
    %v3225 = vadd.f32 %v3029, %v3161
    %v3226 = vadd.f32 %v3030, %v3162
    %v3227 = vadd.f32 %v3031, %v3163
    %v3228 = vadd.f32 %v3032, %v3164
    %v3229 = vadd.f32 %v3033, %v3165
    %v3230 = vadd.f32 %v3034, %v3166
    %v3231 = vadd.f32 %v3035, %v3167
    %v3232 = vadd.f32 %v3036, %v3168
    %v3233 = vadd.f32 %v3037, %v3169
    %v3234 = vadd.f32 %v3038, %v3170
    %v3235 = vadd.f32 %v3039, %v3171
    %v3236 = vadd.f32 %v3040, %v3172
    %v3237 = vadd.f32 %v3041, %v3173
    %v3238 = vadd.f32 %v3042, %v3174
    %v3239 = vadd.f32 %v3043, %v3175
    %v3240 = vadd.f32 %v3044, %v3176
    %v3241 = vadd.f32 %v3045, %v3177
    %v3242 = vadd.f32 %v3046, %v3178
    %v3243 = vadd.f32 %v3047, %v3179
    %v3244 = vadd.f32 %v3048, %v3180
    %v3245 = vadd.f32 %v3049, %v3181
    %v3246 = vadd.f32 %v3050, %v3182
    %v3247 = vadd.f32 %v3051, %v3183
    %v3248 = vadd.f32 %v3052, %v3184
    %v3249 = vadd.f32 %v3053, %v3185
    %v3250 = vadd.f32 %v3054, %v3186
    %v3251 = vadd.f32 %v3055, %v3187
    %v3252 = vadd.f32 %v3056, %v3188
    %v3253 = vadd.f32 %v3057, %v3189
    %v3254 = vadd.f32 %v3058, %v3190
    %v3255 = vadd.f32 %v3059, %v3191
    %v3256 = vadd.f32 %v3060, %v3192
    %v3257 = vadd.f32 %v3061, %v3193
    %v3258 = vadd.f32 %v3062, %v3194
    %v3259 = vadd.f32 %v3063, %v3195
    %v3260 = vadd.f32 %v3064, %v3196
    %v3261 = vadd.f32 %v3065, %v3197
    %v3262 = vadd.f32 %v3066, %v3198
    %v3263 = vadd.f32 %v3067, %v3199
    %v3264 = vadd.f32 %v3068, %v3200
    %v3265 = vadd.f32 %v3069, %v3201
    %v3266 = vadd.f32 %v3070, %v3202
    %v3267 = vadd.f32 %v3071, %v3203
    %v3268 = vadd.f32 %v3072, %v3204
    %v3269 = vadd.f32 %v3073, %v3205
    %v3270 = vadd.f32 %v3074, %v3206
    %v3271 = vadd.f32 %v3075, %v3207
    %v3272 = vadd.f32 %v3076, %v3208
    %v3273 = vadd.f32 %v3077, %v3209
    %v3274 = vadd.f32 %v3078, %v3210
    %v3275 = vmul.f32 %v3211, 0.5
    %v3276 = vmul.f32 %v3212, 0.5
    %v3277 = vmul.f32 %v3213, 0.5
    %v3278 = vmul.f32 %v3214, 0.5
    %v3279 = vmul.f32 %v3215, 0.5
    %v3280 = vmul.f32 %v3216, 0.5
    %v3281 = vmul.f32 %v3217, 0.5
    %v3282 = vmul.f32 %v3218, 0.5
    %v3283 = vmul.f32 %v3219, 0.5
    %v3284 = vmul.f32 %v3220, 0.5
    %v3285 = vmul.f32 %v3221, 0.5
    %v3286 = vmul.f32 %v3222, 0.5
    %v3287 = vmul.f32 %v3223, 0.5
    %v3288 = vmul.f32 %v3224, 0.5
    %v3289 = vmul.f32 %v3225, 0.5
    %v3290 = vmul.f32 %v3226, 0.5
    %v3291 = vmul.f32 %v3227, 0.5
    %v3292 = vmul.f32 %v3228, 0.5
    %v3293 = vmul.f32 %v3229, 0.5
    %v3294 = vmul.f32 %v3230, 0.5
    %v3295 = vmul.f32 %v3231, 0.5
    %v3296 = vmul.f32 %v3232, 0.5
    %v3297 = vmul.f32 %v3233, 0.5
    %v3298 = vmul.f32 %v3234, 0.5
    %v3299 = vmul.f32 %v3235, 0.5
    %v3300 = vmul.f32 %v3236, 0.5
    %v3301 = vmul.f32 %v3237, 0.5
    %v3302 = vmul.f32 %v3238, 0.5
    %v3303 = vmul.f32 %v3239, 0.5
    %v3304 = vmul.f32 %v3240, 0.5
    %v3305 = vmul.f32 %v3241, 0.5
    %v3306 = vmul.f32 %v3242, 0.5
    %v3307 = vmul.f32 %v3243, 0.5
    %v3308 = vmul.f32 %v3244, 0.5
    %v3309 = vmul.f32 %v3245, 0.5
    %v3310 = vmul.f32 %v3246, 0.5
    %v3311 = vmul.f32 %v3247, 0.5
    %v3312 = vmul.f32 %v3248, 0.5
    %v3313 = vmul.f32 %v3249, 0.5
    %v3314 = vmul.f32 %v3250, 0.5
    %v3315 = vmul.f32 %v3251, 0.5
    %v3316 = vmul.f32 %v3252, 0.5
    %v3317 = vmul.f32 %v3253, 0.5
    %v3318 = vmul.f32 %v3254, 0.5
    %v3319 = vmul.f32 %v3255, 0.5
    %v3320 = vmul.f32 %v3256, 0.5
    %v3321 = vmul.f32 %v3257, 0.5
    %v3322 = vmul.f32 %v3258, 0.5
    %v3323 = vmul.f32 %v3259, 0.5
    %v3324 = vmul.f32 %v3260, 0.5
    %v3325 = vmul.f32 %v3261, 0.5
    %v3326 = vmul.f32 %v3262, 0.5
    %v3327 = vmul.f32 %v3263, 0.5
    %v3328 = vmul.f32 %v3264, 0.5
    %v3329 = vmul.f32 %v3265, 0.5
    %v3330 = vmul.f32 %v3266, 0.5
    %v3331 = vmul.f32 %v3267, 0.5
    %v3332 = vmul.f32 %v3268, 0.5
    %v3333 = vmul.f32 %v3269, 0.5
    %v3334 = vmul.f32 %v3270, 0.5
    %v3335 = vmul.f32 %v3271, 0.5
    %v3336 = vmul.f32 %v3272, 0.5
    %v3337 = vmul.f32 %v3273, 0.5
    %v3338 = vmul.f32 %v3274, 0.5
    %v3339 = vmul.f32 %v3211, %v3211
    %v3340 = vmul.f32 %v3212, %v3212
    %v3341 = vmul.f32 %v3213, %v3213
    %v3342 = vmul.f32 %v3214, %v3214
    %v3343 = vmul.f32 %v3215, %v3215
    %v3344 = vmul.f32 %v3216, %v3216
    %v3345 = vmul.f32 %v3217, %v3217
    %v3346 = vmul.f32 %v3218, %v3218
    %v3347 = vmul.f32 %v3219, %v3219
    %v3348 = vmul.f32 %v3220, %v3220
    %v3349 = vmul.f32 %v3221, %v3221
    %v3350 = vmul.f32 %v3222, %v3222
    %v3351 = vmul.f32 %v3223, %v3223
    %v3352 = vmul.f32 %v3224, %v3224
    %v3353 = vmul.f32 %v3225, %v3225
    %v3354 = vmul.f32 %v3226, %v3226
    %v3355 = vmul.f32 %v3227, %v3227
    %v3356 = vmul.f32 %v3228, %v3228
    %v3357 = vmul.f32 %v3229, %v3229
    %v3358 = vmul.f32 %v3230, %v3230
    %v3359 = vmul.f32 %v3231, %v3231
    %v3360 = vmul.f32 %v3232, %v3232
    %v3361 = vmul.f32 %v3233, %v3233
    %v3362 = vmul.f32 %v3234, %v3234
    %v3363 = vmul.f32 %v3235, %v3235
    %v3364 = vmul.f32 %v3236, %v3236
    %v3365 = vmul.f32 %v3237, %v3237
    %v3366 = vmul.f32 %v3238, %v3238
    %v3367 = vmul.f32 %v3239, %v3239
    %v3368 = vmul.f32 %v3240, %v3240
    %v3369 = vmul.f32 %v3241, %v3241
    %v3370 = vmul.f32 %v3242, %v3242
    %v3371 = vmul.f32 %v3243, %v3243
    %v3372 = vmul.f32 %v3244, %v3244
    %v3373 = vmul.f32 %v3245, %v3245
    %v3374 = vmul.f32 %v3246, %v3246
    %v3375 = vmul.f32 %v3247, %v3247
    %v3376 = vmul.f32 %v3248, %v3248
    %v3377 = vmul.f32 %v3249, %v3249
    %v3378 = vmul.f32 %v3250, %v3250
    %v3379 = vmul.f32 %v3251, %v3251
    %v3380 = vmul.f32 %v3252, %v3252
    %v3381 = vmul.f32 %v3253, %v3253
    %v3382 = vmul.f32 %v3254, %v3254
    %v3383 = vmul.f32 %v3255, %v3255
    %v3384 = vmul.f32 %v3256, %v3256
    %v3385 = vmul.f32 %v3257, %v3257
    %v3386 = vmul.f32 %v3258, %v3258
    %v3387 = vmul.f32 %v3259, %v3259
    %v3388 = vmul.f32 %v3260, %v3260
    %v3389 = vmul.f32 %v3261, %v3261
    %v3390 = vmul.f32 %v3262, %v3262
    %v3391 = vmul.f32 %v3263, %v3263
    %v3392 = vmul.f32 %v3264, %v3264
    %v3393 = vmul.f32 %v3265, %v3265
    %v3394 = vmul.f32 %v3266, %v3266
    %v3395 = vmul.f32 %v3267, %v3267
    %v3396 = vmul.f32 %v3268, %v3268
    %v3397 = vmul.f32 %v3269, %v3269
    %v3398 = vmul.f32 %v3270, %v3270
    %v3399 = vmul.f32 %v3271, %v3271
    %v3400 = vmul.f32 %v3272, %v3272
    %v3401 = vmul.f32 %v3273, %v3273
    %v3402 = vmul.f32 %v3274, %v3274
    %v3403 = vmul.f32 %v3339, %v3211
    %v3404 = vmul.f32 %v3340, %v3212
    %v3405 = vmul.f32 %v3341, %v3213
    %v3406 = vmul.f32 %v3342, %v3214
    %v3407 = vmul.f32 %v3343, %v3215
    %v3408 = vmul.f32 %v3344, %v3216
    %v3409 = vmul.f32 %v3345, %v3217
    %v3410 = vmul.f32 %v3346, %v3218
    %v3411 = vmul.f32 %v3347, %v3219
    %v3412 = vmul.f32 %v3348, %v3220
    %v3413 = vmul.f32 %v3349, %v3221
    %v3414 = vmul.f32 %v3350, %v3222
    %v3415 = vmul.f32 %v3351, %v3223
    %v3416 = vmul.f32 %v3352, %v3224
    %v3417 = vmul.f32 %v3353, %v3225
    %v3418 = vmul.f32 %v3354, %v3226
    %v3419 = vmul.f32 %v3355, %v3227
    %v3420 = vmul.f32 %v3356, %v3228
    %v3421 = vmul.f32 %v3357, %v3229
    %v3422 = vmul.f32 %v3358, %v3230
    %v3423 = vmul.f32 %v3359, %v3231
    %v3424 = vmul.f32 %v3360, %v3232
    %v3425 = vmul.f32 %v3361, %v3233
    %v3426 = vmul.f32 %v3362, %v3234
    %v3427 = vmul.f32 %v3363, %v3235
    %v3428 = vmul.f32 %v3364, %v3236
    %v3429 = vmul.f32 %v3365, %v3237
    %v3430 = vmul.f32 %v3366, %v3238
    %v3431 = vmul.f32 %v3367, %v3239
    %v3432 = vmul.f32 %v3368, %v3240
    %v3433 = vmul.f32 %v3369, %v3241
    %v3434 = vmul.f32 %v3370, %v3242
    %v3435 = vmul.f32 %v3371, %v3243
    %v3436 = vmul.f32 %v3372, %v3244
    %v3437 = vmul.f32 %v3373, %v3245
    %v3438 = vmul.f32 %v3374, %v3246
    %v3439 = vmul.f32 %v3375, %v3247
    %v3440 = vmul.f32 %v3376, %v3248
    %v3441 = vmul.f32 %v3377, %v3249
    %v3442 = vmul.f32 %v3378, %v3250
    %v3443 = vmul.f32 %v3379, %v3251
    %v3444 = vmul.f32 %v3380, %v3252
    %v3445 = vmul.f32 %v3381, %v3253
    %v3446 = vmul.f32 %v3382, %v3254
    %v3447 = vmul.f32 %v3383, %v3255
    %v3448 = vmul.f32 %v3384, %v3256
    %v3449 = vmul.f32 %v3385, %v3257
    %v3450 = vmul.f32 %v3386, %v3258
    %v3451 = vmul.f32 %v3387, %v3259
    %v3452 = vmul.f32 %v3388, %v3260
    %v3453 = vmul.f32 %v3389, %v3261
    %v3454 = vmul.f32 %v3390, %v3262
    %v3455 = vmul.f32 %v3391, %v3263
    %v3456 = vmul.f32 %v3392, %v3264
    %v3457 = vmul.f32 %v3393, %v3265
    %v3458 = vmul.f32 %v3394, %v3266
    %v3459 = vmul.f32 %v3395, %v3267
    %v3460 = vmul.f32 %v3396, %v3268
    %v3461 = vmul.f32 %v3397, %v3269
    %v3462 = vmul.f32 %v3398, %v3270
    %v3463 = vmul.f32 %v3399, %v3271
    %v3464 = vmul.f32 %v3400, %v3272
    %v3465 = vmul.f32 %v3401, %v3273
    %v3466 = vmul.f32 %v3402, %v3274
    %v3467 = vmul.f32 %v3403, 0.044715
    %v3468 = vmul.f32 %v3404, 0.044715
    %v3469 = vmul.f32 %v3405, 0.044715
    %v3470 = vmul.f32 %v3406, 0.044715
    %v3471 = vmul.f32 %v3407, 0.044715
    %v3472 = vmul.f32 %v3408, 0.044715
    %v3473 = vmul.f32 %v3409, 0.044715
    %v3474 = vmul.f32 %v3410, 0.044715
    %v3475 = vmul.f32 %v3411, 0.044715
    %v3476 = vmul.f32 %v3412, 0.044715
    %v3477 = vmul.f32 %v3413, 0.044715
    %v3478 = vmul.f32 %v3414, 0.044715
    %v3479 = vmul.f32 %v3415, 0.044715
    %v3480 = vmul.f32 %v3416, 0.044715
    %v3481 = vmul.f32 %v3417, 0.044715
    %v3482 = vmul.f32 %v3418, 0.044715
    %v3483 = vmul.f32 %v3419, 0.044715
    %v3484 = vmul.f32 %v3420, 0.044715
    %v3485 = vmul.f32 %v3421, 0.044715
    %v3486 = vmul.f32 %v3422, 0.044715
    %v3487 = vmul.f32 %v3423, 0.044715
    %v3488 = vmul.f32 %v3424, 0.044715
    %v3489 = vmul.f32 %v3425, 0.044715
    %v3490 = vmul.f32 %v3426, 0.044715
    %v3491 = vmul.f32 %v3427, 0.044715
    %v3492 = vmul.f32 %v3428, 0.044715
    %v3493 = vmul.f32 %v3429, 0.044715
    %v3494 = vmul.f32 %v3430, 0.044715
    %v3495 = vmul.f32 %v3431, 0.044715
    %v3496 = vmul.f32 %v3432, 0.044715
    %v3497 = vmul.f32 %v3433, 0.044715
    %v3498 = vmul.f32 %v3434, 0.044715
    %v3499 = vmul.f32 %v3435, 0.044715
    %v3500 = vmul.f32 %v3436, 0.044715
    %v3501 = vmul.f32 %v3437, 0.044715
    %v3502 = vmul.f32 %v3438, 0.044715
    %v3503 = vmul.f32 %v3439, 0.044715
    %v3504 = vmul.f32 %v3440, 0.044715
    %v3505 = vmul.f32 %v3441, 0.044715
    %v3506 = vmul.f32 %v3442, 0.044715
    %v3507 = vmul.f32 %v3443, 0.044715
    %v3508 = vmul.f32 %v3444, 0.044715
    %v3509 = vmul.f32 %v3445, 0.044715
    %v3510 = vmul.f32 %v3446, 0.044715
    %v3511 = vmul.f32 %v3447, 0.044715
    %v3512 = vmul.f32 %v3448, 0.044715
    %v3513 = vmul.f32 %v3449, 0.044715
    %v3514 = vmul.f32 %v3450, 0.044715
    %v3515 = vmul.f32 %v3451, 0.044715
    %v3516 = vmul.f32 %v3452, 0.044715
    %v3517 = vmul.f32 %v3453, 0.044715
    %v3518 = vmul.f32 %v3454, 0.044715
    %v3519 = vmul.f32 %v3455, 0.044715
    %v3520 = vmul.f32 %v3456, 0.044715
    %v3521 = vmul.f32 %v3457, 0.044715
    %v3522 = vmul.f32 %v3458, 0.044715
    %v3523 = vmul.f32 %v3459, 0.044715
    %v3524 = vmul.f32 %v3460, 0.044715
    %v3525 = vmul.f32 %v3461, 0.044715
    %v3526 = vmul.f32 %v3462, 0.044715
    %v3527 = vmul.f32 %v3463, 0.044715
    %v3528 = vmul.f32 %v3464, 0.044715
    %v3529 = vmul.f32 %v3465, 0.044715
    %v3530 = vmul.f32 %v3466, 0.044715
    %v3531 = vadd.f32 %v3211, %v3467
    %v3532 = vadd.f32 %v3212, %v3468
    %v3533 = vadd.f32 %v3213, %v3469
    %v3534 = vadd.f32 %v3214, %v3470
    %v3535 = vadd.f32 %v3215, %v3471
    %v3536 = vadd.f32 %v3216, %v3472
    %v3537 = vadd.f32 %v3217, %v3473
    %v3538 = vadd.f32 %v3218, %v3474
    %v3539 = vadd.f32 %v3219, %v3475
    %v3540 = vadd.f32 %v3220, %v3476
    %v3541 = vadd.f32 %v3221, %v3477
    %v3542 = vadd.f32 %v3222, %v3478
    %v3543 = vadd.f32 %v3223, %v3479
    %v3544 = vadd.f32 %v3224, %v3480
    %v3545 = vadd.f32 %v3225, %v3481
    %v3546 = vadd.f32 %v3226, %v3482
    %v3547 = vadd.f32 %v3227, %v3483
    %v3548 = vadd.f32 %v3228, %v3484
    %v3549 = vadd.f32 %v3229, %v3485
    %v3550 = vadd.f32 %v3230, %v3486
    %v3551 = vadd.f32 %v3231, %v3487
    %v3552 = vadd.f32 %v3232, %v3488
    %v3553 = vadd.f32 %v3233, %v3489
    %v3554 = vadd.f32 %v3234, %v3490
    %v3555 = vadd.f32 %v3235, %v3491
    %v3556 = vadd.f32 %v3236, %v3492
    %v3557 = vadd.f32 %v3237, %v3493
    %v3558 = vadd.f32 %v3238, %v3494
    %v3559 = vadd.f32 %v3239, %v3495
    %v3560 = vadd.f32 %v3240, %v3496
    %v3561 = vadd.f32 %v3241, %v3497
    %v3562 = vadd.f32 %v3242, %v3498
    %v3563 = vadd.f32 %v3243, %v3499
    %v3564 = vadd.f32 %v3244, %v3500
    %v3565 = vadd.f32 %v3245, %v3501
    %v3566 = vadd.f32 %v3246, %v3502
    %v3567 = vadd.f32 %v3247, %v3503
    %v3568 = vadd.f32 %v3248, %v3504
    %v3569 = vadd.f32 %v3249, %v3505
    %v3570 = vadd.f32 %v3250, %v3506
    %v3571 = vadd.f32 %v3251, %v3507
    %v3572 = vadd.f32 %v3252, %v3508
    %v3573 = vadd.f32 %v3253, %v3509
    %v3574 = vadd.f32 %v3254, %v3510
    %v3575 = vadd.f32 %v3255, %v3511
    %v3576 = vadd.f32 %v3256, %v3512
    %v3577 = vadd.f32 %v3257, %v3513
    %v3578 = vadd.f32 %v3258, %v3514
    %v3579 = vadd.f32 %v3259, %v3515
    %v3580 = vadd.f32 %v3260, %v3516
    %v3581 = vadd.f32 %v3261, %v3517
    %v3582 = vadd.f32 %v3262, %v3518
    %v3583 = vadd.f32 %v3263, %v3519
    %v3584 = vadd.f32 %v3264, %v3520
    %v3585 = vadd.f32 %v3265, %v3521
    %v3586 = vadd.f32 %v3266, %v3522
    %v3587 = vadd.f32 %v3267, %v3523
    %v3588 = vadd.f32 %v3268, %v3524
    %v3589 = vadd.f32 %v3269, %v3525
    %v3590 = vadd.f32 %v3270, %v3526
    %v3591 = vadd.f32 %v3271, %v3527
    %v3592 = vadd.f32 %v3272, %v3528
    %v3593 = vadd.f32 %v3273, %v3529
    %v3594 = vadd.f32 %v3274, %v3530
    %v3595 = vmul.f32 %v3531, 0.7978846
    %v3596 = vmul.f32 %v3532, 0.7978846
    %v3597 = vmul.f32 %v3533, 0.7978846
    %v3598 = vmul.f32 %v3534, 0.7978846
    %v3599 = vmul.f32 %v3535, 0.7978846
    %v3600 = vmul.f32 %v3536, 0.7978846
    %v3601 = vmul.f32 %v3537, 0.7978846
    %v3602 = vmul.f32 %v3538, 0.7978846
    %v3603 = vmul.f32 %v3539, 0.7978846
    %v3604 = vmul.f32 %v3540, 0.7978846
    %v3605 = vmul.f32 %v3541, 0.7978846
    %v3606 = vmul.f32 %v3542, 0.7978846
    %v3607 = vmul.f32 %v3543, 0.7978846
    %v3608 = vmul.f32 %v3544, 0.7978846
    %v3609 = vmul.f32 %v3545, 0.7978846
    %v3610 = vmul.f32 %v3546, 0.7978846
    %v3611 = vmul.f32 %v3547, 0.7978846
    %v3612 = vmul.f32 %v3548, 0.7978846
    %v3613 = vmul.f32 %v3549, 0.7978846
    %v3614 = vmul.f32 %v3550, 0.7978846
    %v3615 = vmul.f32 %v3551, 0.7978846
    %v3616 = vmul.f32 %v3552, 0.7978846
    %v3617 = vmul.f32 %v3553, 0.7978846
    %v3618 = vmul.f32 %v3554, 0.7978846
    %v3619 = vmul.f32 %v3555, 0.7978846
    %v3620 = vmul.f32 %v3556, 0.7978846
    %v3621 = vmul.f32 %v3557, 0.7978846
    %v3622 = vmul.f32 %v3558, 0.7978846
    %v3623 = vmul.f32 %v3559, 0.7978846
    %v3624 = vmul.f32 %v3560, 0.7978846
    %v3625 = vmul.f32 %v3561, 0.7978846
    %v3626 = vmul.f32 %v3562, 0.7978846
    %v3627 = vmul.f32 %v3563, 0.7978846
    %v3628 = vmul.f32 %v3564, 0.7978846
    %v3629 = vmul.f32 %v3565, 0.7978846
    %v3630 = vmul.f32 %v3566, 0.7978846
    %v3631 = vmul.f32 %v3567, 0.7978846
    %v3632 = vmul.f32 %v3568, 0.7978846
    %v3633 = vmul.f32 %v3569, 0.7978846
    %v3634 = vmul.f32 %v3570, 0.7978846
    %v3635 = vmul.f32 %v3571, 0.7978846
    %v3636 = vmul.f32 %v3572, 0.7978846
    %v3637 = vmul.f32 %v3573, 0.7978846
    %v3638 = vmul.f32 %v3574, 0.7978846
    %v3639 = vmul.f32 %v3575, 0.7978846
    %v3640 = vmul.f32 %v3576, 0.7978846
    %v3641 = vmul.f32 %v3577, 0.7978846
    %v3642 = vmul.f32 %v3578, 0.7978846
    %v3643 = vmul.f32 %v3579, 0.7978846
    %v3644 = vmul.f32 %v3580, 0.7978846
    %v3645 = vmul.f32 %v3581, 0.7978846
    %v3646 = vmul.f32 %v3582, 0.7978846
    %v3647 = vmul.f32 %v3583, 0.7978846
    %v3648 = vmul.f32 %v3584, 0.7978846
    %v3649 = vmul.f32 %v3585, 0.7978846
    %v3650 = vmul.f32 %v3586, 0.7978846
    %v3651 = vmul.f32 %v3587, 0.7978846
    %v3652 = vmul.f32 %v3588, 0.7978846
    %v3653 = vmul.f32 %v3589, 0.7978846
    %v3654 = vmul.f32 %v3590, 0.7978846
    %v3655 = vmul.f32 %v3591, 0.7978846
    %v3656 = vmul.f32 %v3592, 0.7978846
    %v3657 = vmul.f32 %v3593, 0.7978846
    %v3658 = vmul.f32 %v3594, 0.7978846
    %v3659 = vtanh.pop %v3595
    %v3660 = vtanh.pop %v3596
    %v3661 = vtanh.pop %v3597
    %v3662 = vtanh.pop %v3598
    %v3663 = vtanh.pop %v3599
    %v3664 = vtanh.pop %v3600
    %v3665 = vtanh.pop %v3601
    %v3666 = vtanh.pop %v3602
    %v3667 = vtanh.pop %v3603
    %v3668 = vtanh.pop %v3604
    %v3669 = vtanh.pop %v3605
    %v3670 = vtanh.pop %v3606
    %v3671 = vtanh.pop %v3607
    %v3672 = vtanh.pop %v3608
    %v3673 = vtanh.pop %v3609
    %v3674 = vtanh.pop %v3610
    %v3675 = vtanh.pop %v3611
    %v3676 = vtanh.pop %v3612
    %v3677 = vtanh.pop %v3613
    %v3678 = vtanh.pop %v3614
    %v3679 = vtanh.pop %v3615
    %v3680 = vtanh.pop %v3616
    %v3681 = vtanh.pop %v3617
    %v3682 = vtanh.pop %v3618
    %v3683 = vtanh.pop %v3619
    %v3684 = vtanh.pop %v3620
    %v3685 = vtanh.pop %v3621
    %v3686 = vtanh.pop %v3622
    %v3687 = vtanh.pop %v3623
    %v3688 = vtanh.pop %v3624
    %v3689 = vtanh.pop %v3625
    %v3690 = vtanh.pop %v3626
    %v3691 = vtanh.pop %v3627
    %v3692 = vtanh.pop %v3628
    %v3693 = vtanh.pop %v3629
    %v3694 = vtanh.pop %v3630
    %v3695 = vtanh.pop %v3631
    %v3696 = vtanh.pop %v3632
    %v3697 = vtanh.pop %v3633
    %v3698 = vtanh.pop %v3634
    %v3699 = vtanh.pop %v3635
    %v3700 = vtanh.pop %v3636
    %v3701 = vtanh.pop %v3637
    %v3702 = vtanh.pop %v3638
    %v3703 = vtanh.pop %v3639
    %v3704 = vtanh.pop %v3640
    %v3705 = vtanh.pop %v3641
    %v3706 = vtanh.pop %v3642
    %v3707 = vtanh.pop %v3643
    %v3708 = vtanh.pop %v3644
    %v3709 = vtanh.pop %v3645
    %v3710 = vtanh.pop %v3646
    %v3711 = vtanh.pop %v3647
    %v3712 = vtanh.pop %v3648
    %v3713 = vtanh.pop %v3649
    %v3714 = vtanh.pop %v3650
    %v3715 = vtanh.pop %v3651
    %v3716 = vtanh.pop %v3652
    %v3717 = vtanh.pop %v3653
    %v3718 = vtanh.pop %v3654
    %v3719 = vtanh.pop %v3655
    %v3720 = vtanh.pop %v3656
    %v3721 = vtanh.pop %v3657
    %v3722 = vtanh.pop %v3658
    %v3723 = vadd.f32 %v3659, 1.0
    %v3724 = vadd.f32 %v3660, 1.0
    %v3725 = vadd.f32 %v3661, 1.0
    %v3726 = vadd.f32 %v3662, 1.0
    %v3727 = vadd.f32 %v3663, 1.0
    %v3728 = vadd.f32 %v3664, 1.0
    %v3729 = vadd.f32 %v3665, 1.0
    %v3730 = vadd.f32 %v3666, 1.0
    %v3731 = vadd.f32 %v3667, 1.0
    %v3732 = vadd.f32 %v3668, 1.0
    %v3733 = vadd.f32 %v3669, 1.0
    %v3734 = vadd.f32 %v3670, 1.0
    %v3735 = vadd.f32 %v3671, 1.0
    %v3736 = vadd.f32 %v3672, 1.0
    %v3737 = vadd.f32 %v3673, 1.0
    %v3738 = vadd.f32 %v3674, 1.0
    %v3739 = vadd.f32 %v3675, 1.0
    %v3740 = vadd.f32 %v3676, 1.0
    %v3741 = vadd.f32 %v3677, 1.0
    %v3742 = vadd.f32 %v3678, 1.0
    %v3743 = vadd.f32 %v3679, 1.0
    %v3744 = vadd.f32 %v3680, 1.0
    %v3745 = vadd.f32 %v3681, 1.0
    %v3746 = vadd.f32 %v3682, 1.0
    %v3747 = vadd.f32 %v3683, 1.0
    %v3748 = vadd.f32 %v3684, 1.0
    %v3749 = vadd.f32 %v3685, 1.0
    %v3750 = vadd.f32 %v3686, 1.0
    %v3751 = vadd.f32 %v3687, 1.0
    %v3752 = vadd.f32 %v3688, 1.0
    %v3753 = vadd.f32 %v3689, 1.0
    %v3754 = vadd.f32 %v3690, 1.0
    %v3755 = vadd.f32 %v3691, 1.0
    %v3756 = vadd.f32 %v3692, 1.0
    %v3757 = vadd.f32 %v3693, 1.0
    %v3758 = vadd.f32 %v3694, 1.0
    %v3759 = vadd.f32 %v3695, 1.0
    %v3760 = vadd.f32 %v3696, 1.0
    %v3761 = vadd.f32 %v3697, 1.0
    %v3762 = vadd.f32 %v3698, 1.0
    %v3763 = vadd.f32 %v3699, 1.0
    %v3764 = vadd.f32 %v3700, 1.0
    %v3765 = vadd.f32 %v3701, 1.0
    %v3766 = vadd.f32 %v3702, 1.0
    %v3767 = vadd.f32 %v3703, 1.0
    %v3768 = vadd.f32 %v3704, 1.0
    %v3769 = vadd.f32 %v3705, 1.0
    %v3770 = vadd.f32 %v3706, 1.0
    %v3771 = vadd.f32 %v3707, 1.0
    %v3772 = vadd.f32 %v3708, 1.0
    %v3773 = vadd.f32 %v3709, 1.0
    %v3774 = vadd.f32 %v3710, 1.0
    %v3775 = vadd.f32 %v3711, 1.0
    %v3776 = vadd.f32 %v3712, 1.0
    %v3777 = vadd.f32 %v3713, 1.0
    %v3778 = vadd.f32 %v3714, 1.0
    %v3779 = vadd.f32 %v3715, 1.0
    %v3780 = vadd.f32 %v3716, 1.0
    %v3781 = vadd.f32 %v3717, 1.0
    %v3782 = vadd.f32 %v3718, 1.0
    %v3783 = vadd.f32 %v3719, 1.0
    %v3784 = vadd.f32 %v3720, 1.0
    %v3785 = vadd.f32 %v3721, 1.0
    %v3786 = vadd.f32 %v3722, 1.0
    %v3787 = vmul.f32 %v3275, %v3723
    %v3788 = vmul.f32 %v3276, %v3724
    %v3789 = vmul.f32 %v3277, %v3725
    %v3790 = vmul.f32 %v3278, %v3726
    %v3791 = vmul.f32 %v3279, %v3727
    %v3792 = vmul.f32 %v3280, %v3728
    %v3793 = vmul.f32 %v3281, %v3729
    %v3794 = vmul.f32 %v3282, %v3730
    %v3795 = vmul.f32 %v3283, %v3731
    %v3796 = vmul.f32 %v3284, %v3732
    %v3797 = vmul.f32 %v3285, %v3733
    %v3798 = vmul.f32 %v3286, %v3734
    %v3799 = vmul.f32 %v3287, %v3735
    %v3800 = vmul.f32 %v3288, %v3736
    %v3801 = vmul.f32 %v3289, %v3737
    %v3802 = vmul.f32 %v3290, %v3738
    %v3803 = vmul.f32 %v3291, %v3739
    %v3804 = vmul.f32 %v3292, %v3740
    %v3805 = vmul.f32 %v3293, %v3741
    %v3806 = vmul.f32 %v3294, %v3742
    %v3807 = vmul.f32 %v3295, %v3743
    %v3808 = vmul.f32 %v3296, %v3744
    %v3809 = vmul.f32 %v3297, %v3745
    %v3810 = vmul.f32 %v3298, %v3746
    %v3811 = vmul.f32 %v3299, %v3747
    %v3812 = vmul.f32 %v3300, %v3748
    %v3813 = vmul.f32 %v3301, %v3749
    %v3814 = vmul.f32 %v3302, %v3750
    %v3815 = vmul.f32 %v3303, %v3751
    %v3816 = vmul.f32 %v3304, %v3752
    %v3817 = vmul.f32 %v3305, %v3753
    %v3818 = vmul.f32 %v3306, %v3754
    %v3819 = vmul.f32 %v3307, %v3755
    %v3820 = vmul.f32 %v3308, %v3756
    %v3821 = vmul.f32 %v3309, %v3757
    %v3822 = vmul.f32 %v3310, %v3758
    %v3823 = vmul.f32 %v3311, %v3759
    %v3824 = vmul.f32 %v3312, %v3760
    %v3825 = vmul.f32 %v3313, %v3761
    %v3826 = vmul.f32 %v3314, %v3762
    %v3827 = vmul.f32 %v3315, %v3763
    %v3828 = vmul.f32 %v3316, %v3764
    %v3829 = vmul.f32 %v3317, %v3765
    %v3830 = vmul.f32 %v3318, %v3766
    %v3831 = vmul.f32 %v3319, %v3767
    %v3832 = vmul.f32 %v3320, %v3768
    %v3833 = vmul.f32 %v3321, %v3769
    %v3834 = vmul.f32 %v3322, %v3770
    %v3835 = vmul.f32 %v3323, %v3771
    %v3836 = vmul.f32 %v3324, %v3772
    %v3837 = vmul.f32 %v3325, %v3773
    %v3838 = vmul.f32 %v3326, %v3774
    %v3839 = vmul.f32 %v3327, %v3775
    %v3840 = vmul.f32 %v3328, %v3776
    %v3841 = vmul.f32 %v3329, %v3777
    %v3842 = vmul.f32 %v3330, %v3778
    %v3843 = vmul.f32 %v3331, %v3779
    %v3844 = vmul.f32 %v3332, %v3780
    %v3845 = vmul.f32 %v3333, %v3781
    %v3846 = vmul.f32 %v3334, %v3782
    %v3847 = vmul.f32 %v3335, %v3783
    %v3848 = vmul.f32 %v3336, %v3784
    %v3849 = vmul.f32 %v3337, %v3785
    %v3850 = vmul.f32 %v3338, %v3786
    %v3851 = vpack.c.bf16 %v3788, %v3787
    %v3852 = vpack.c.bf16 %v3790, %v3789
    %v3853 = vpack.c.bf16 %v3792, %v3791
    %v3854 = vpack.c.bf16 %v3794, %v3793
    %v3855 = vpack.c.bf16 %v3796, %v3795
    %v3856 = vpack.c.bf16 %v3798, %v3797
    %v3857 = vpack.c.bf16 %v3800, %v3799
    %v3858 = vpack.c.bf16 %v3802, %v3801
    %v3859 = vpack.c.bf16 %v3804, %v3803
    %v3860 = vpack.c.bf16 %v3806, %v3805
    %v3861 = vpack.c.bf16 %v3808, %v3807
    %v3862 = vpack.c.bf16 %v3810, %v3809
    %v3863 = vpack.c.bf16 %v3812, %v3811
    %v3864 = vpack.c.bf16 %v3814, %v3813
    %v3865 = vpack.c.bf16 %v3816, %v3815
    %v3866 = vpack.c.bf16 %v3818, %v3817
    %v3867 = vpack.c.bf16 %v3820, %v3819
    %v3868 = vpack.c.bf16 %v3822, %v3821
    %v3869 = vpack.c.bf16 %v3824, %v3823
    %v3870 = vpack.c.bf16 %v3826, %v3825
    %v3871 = vpack.c.bf16 %v3828, %v3827
    %v3872 = vpack.c.bf16 %v3830, %v3829
    %v3873 = vpack.c.bf16 %v3832, %v3831
    %v3874 = vpack.c.bf16 %v3834, %v3833
    %v3875 = vpack.c.bf16 %v3836, %v3835
    %v3876 = vpack.c.bf16 %v3838, %v3837
    %v3877 = vpack.c.bf16 %v3840, %v3839
    %v3878 = vpack.c.bf16 %v3842, %v3841
    %v3879 = vpack.c.bf16 %v3844, %v3843
    %v3880 = vpack.c.bf16 %v3846, %v3845
    %v3881 = vpack.c.bf16 %v3848, %v3847
    %v3882 = vpack.c.bf16 %v3850, %v3849
    %v3883 = vld [vmem:[#allocation9] sm:$0xf]
    %v3884 = vld [vmem:[#allocation9 + $0x4] sm:$0xf]
    %v3885 = vld [vmem:[#allocation9 + $0x8] sm:$0xf]
    %v3886 = vld [vmem:[#allocation9 + $0xc] sm:$0xf]
    %v3887 = vld [vmem:[#allocation9 + $0x10] sm:$0xf]
    %v3888 = vld [vmem:[#allocation9 + $0x14] sm:$0xf]
    %v3889 = vld [vmem:[#allocation9 + $0x18] sm:$0xf]
    %v3890 = vld [vmem:[#allocation9 + $0x1c] sm:$0xf]
    %v3891 = vld [vmem:[#allocation9 + $0x20] sm:$0xf]
    %v3892 = vld [vmem:[#allocation9 + $0x24] sm:$0xf]
    %v3893 = vld [vmem:[#allocation9 + $0x28] sm:$0xf]
    %v3894 = vld [vmem:[#allocation9 + $0x2c] sm:$0xf]
    %v3895 = vld [vmem:[#allocation9 + $0x30] sm:$0xf]
    %v3896 = vld [vmem:[#allocation9 + $0x34] sm:$0xf]
    %v3897 = vld [vmem:[#allocation9 + $0x38] sm:$0xf]
    %v3898 = vld [vmem:[#allocation9 + $0x3c] sm:$0xf]
    %v3899 = vld [vmem:[%s6] sm:$0x1]
    %v3901 = vlaneseq
    %v3902 = vshrl.u32 %v3901, 7
    %v3903 = vsub.s32 0, %v3902
    %v3904 = vrot.slane %v3899, %v3903
    %v3922 = vunpack.c.l.b16 %v3883
    %v3923 = vunpack.c.l.b16 %v3884
    %v3924 = vunpack.c.l.b16 %v3885
    %v3925 = vunpack.c.l.b16 %v3886
    %v3926 = vunpack.c.l.b16 %v3887
    %v3927 = vunpack.c.l.b16 %v3888
    %v3928 = vunpack.c.l.b16 %v3889
    %v3929 = vunpack.c.l.b16 %v3890
    %v3930 = vunpack.c.l.b16 %v3891
    %v3931 = vunpack.c.l.b16 %v3892
    %v3932 = vunpack.c.l.b16 %v3893
    %v3933 = vunpack.c.l.b16 %v3894
    %v3934 = vunpack.c.l.b16 %v3895
    %v3935 = vunpack.c.l.b16 %v3896
    %v3936 = vunpack.c.l.b16 %v3897
    %v3937 = vunpack.c.l.b16 %v3898
    %v3938 = vpack.c.b16 %v3923, %v3922
    %v3939 = vpack.c.b16 %v3925, %v3924
    %v3940 = vpack.c.b16 %v3927, %v3926
    %v3941 = vpack.c.b16 %v3929, %v3928
    %v3942 = vpack.c.b16 %v3931, %v3930
    %v3943 = vpack.c.b16 %v3933, %v3932
    %v3944 = vpack.c.b16 %v3935, %v3934
    %v3945 = vpack.c.b16 %v3937, %v3936
    %3954 = vmatprep.subr.bf16.mxu0 0
    %3955 = vmatpush1.bf16.msra.mxu0 %v3945
    %3956 = vmatprep.subr.bf16.mxu0 0
    %3957 = vmatpush1.bf16.msra.mxu0 %v3944
    %3958 = vmatprep.subr.bf16.mxu0 0
    %3959 = vmatpush1.bf16.msra.mxu0 %v3943
    %3960 = vmatprep.subr.bf16.mxu0 0
    %3961 = vmatpush1.bf16.msra.mxu0 %v3942
    %3962 = vmatprep.subr.bf16.mxu0 0
    %3963 = vmatpush1.bf16.msra.mxu0 %v3941
    %3964 = vmatprep.subr.bf16.mxu0 0
    %3965 = vmatpush1.bf16.msra.mxu0 %v3940
    %3966 = vmatprep.subr.bf16.mxu0 0
    %3967 = vmatpush1.bf16.msra.mxu0 %v3939
    %3968 = vmatprep.subr.bf16.mxu0 0
    %3969 = vmatpush1.bf16.msra.mxu0 %v3938
    %3970 = vmatprep.subr.bf16.mxu0 0
    %3971 = vmatpush2.bf16.msra.mxu0 0
    %3972 = vmatprep.subr.bf16.mxu0 0
    %3973 = vmatpush2.bf16.msra.mxu0 0
    %3974 = vmatprep.subr.bf16.mxu0 0
    %3975 = vmatpush2.bf16.msra.mxu0 0
    %3976 = vmatprep.subr.bf16.mxu0 0
    %3977 = vmatpush2.bf16.msra.mxu0 0
    %3978 = vmatprep.subr.bf16.mxu0 0
    %3979 = vmatpush2.bf16.msra.mxu0 0
    %3980 = vmatprep.subr.bf16.mxu0 0
    %3981 = vmatpush2.bf16.msra.mxu0 0
    %3982 = vmatprep.subr.bf16.mxu0 0
    %3983 = vmatpush2.bf16.msra.mxu0 0
    %3984 = vmatprep.subr.bf16.mxu0 0
    %3985 = vmatpush2.bf16.msra.mxu0 0
    %3986 = vmatprep.mubr.bf16.mxu0 0
    %3987 = vmatmul.mubr.bf16.gmra.mxu0 %v3851
    %v3988 = vpop.f32.mrf.mxu0
    %v3989 = vadd.f32 %v3904, %v3988
    %v3990 = vpop.f32.mrf.mxu0
    %v3991 = vpop.f32.mrf.mxu0
    %v3992 = vadd.f32 %v3904, %v3991
    %v3993 = vpop.f32.mrf.mxu0
    %3994 = vmatprep.mubr.bf16.mxu0 0
    %3995 = vmatmul.mubr.bf16.gmra.mxu0 %v3852
    %v3996 = vpop.f32.mrf.mxu0
    %v3997 = vadd.f32 %v3904, %v3996
    %v3998 = vpop.f32.mrf.mxu0
    %v3999 = vpop.f32.mrf.mxu0
    %v4000 = vadd.f32 %v3904, %v3999
    %v4001 = vpop.f32.mrf.mxu0
    %4002 = vmatprep.mubr.bf16.mxu0 0
    %4003 = vmatmul.mubr.bf16.gmra.mxu0 %v3853
    %v4004 = vpop.f32.mrf.mxu0
    %v4005 = vadd.f32 %v3904, %v4004
    %v4006 = vpop.f32.mrf.mxu0
    %v4007 = vpop.f32.mrf.mxu0
    %v4008 = vadd.f32 %v3904, %v4007
    %v4009 = vpop.f32.mrf.mxu0
    %4010 = vmatprep.mubr.bf16.mxu0 0
    %4011 = vmatmul.mubr.bf16.gmra.mxu0 %v3854
    %v4012 = vpop.f32.mrf.mxu0
    %v4013 = vadd.f32 %v3904, %v4012
    %v4014 = vpop.f32.mrf.mxu0
    %v4015 = vpop.f32.mrf.mxu0
    %v4016 = vadd.f32 %v3904, %v4015
    %v4017 = vpop.f32.mrf.mxu0
    %4018 = vmatprep.mubr.bf16.mxu0 0
    %4019 = vmatmul.mubr.bf16.gmra.mxu0 %v3855
    %v4020 = vpop.f32.mrf.mxu0
    %v4021 = vadd.f32 %v3904, %v4020
    %v4022 = vpop.f32.mrf.mxu0
    %v4023 = vpop.f32.mrf.mxu0
    %v4024 = vadd.f32 %v3904, %v4023
    %v4025 = vpop.f32.mrf.mxu0
    %4026 = vmatprep.mubr.bf16.mxu0 0
    %4027 = vmatmul.mubr.bf16.gmra.mxu0 %v3856
    %v4028 = vpop.f32.mrf.mxu0
    %v4029 = vadd.f32 %v3904, %v4028
    %v4030 = vpop.f32.mrf.mxu0
    %v4031 = vpop.f32.mrf.mxu0
    %v4032 = vadd.f32 %v3904, %v4031
    %v4033 = vpop.f32.mrf.mxu0
    %4034 = vmatprep.mubr.bf16.mxu0 0
    %4035 = vmatmul.mubr.bf16.gmra.mxu0 %v3857
    %v4036 = vpop.f32.mrf.mxu0
    %v4037 = vadd.f32 %v3904, %v4036
    %v4038 = vpop.f32.mrf.mxu0
    %v4039 = vpop.f32.mrf.mxu0
    %v4040 = vadd.f32 %v3904, %v4039
    %v4041 = vpop.f32.mrf.mxu0
    %4042 = vmatprep.mubr.bf16.mxu0 0
    %4043 = vmatmul.mubr.bf16.gmra.mxu0 %v3858
    %v4044 = vpop.f32.mrf.mxu0
    %v4045 = vadd.f32 %v3904, %v4044
    %v4046 = vpop.f32.mrf.mxu0
    %v4047 = vpop.f32.mrf.mxu0
    %v4048 = vadd.f32 %v3904, %v4047
    %v4049 = vpop.f32.mrf.mxu0
    %4050 = vmatprep.mubr.bf16.mxu0 0
    %4051 = vmatmul.mubr.bf16.gmra.mxu0 %v3859
    %v4052 = vpop.f32.mrf.mxu0
    %v4053 = vadd.f32 %v3904, %v4052
    %v4054 = vpop.f32.mrf.mxu0
    %v4055 = vpop.f32.mrf.mxu0
    %v4056 = vadd.f32 %v3904, %v4055
    %v4057 = vpop.f32.mrf.mxu0
    %4058 = vmatprep.mubr.bf16.mxu0 0
    %4059 = vmatmul.mubr.bf16.gmra.mxu0 %v3860
    %v4060 = vpop.f32.mrf.mxu0
    %v4061 = vadd.f32 %v3904, %v4060
    %v4062 = vpop.f32.mrf.mxu0
    %v4063 = vpop.f32.mrf.mxu0
    %v4064 = vadd.f32 %v3904, %v4063
    %v4065 = vpop.f32.mrf.mxu0
    %4066 = vmatprep.mubr.bf16.mxu0 0
    %4067 = vmatmul.mubr.bf16.gmra.mxu0 %v3861
    %v4068 = vpop.f32.mrf.mxu0
    %v4069 = vadd.f32 %v3904, %v4068
    %v4070 = vpop.f32.mrf.mxu0
    %v4071 = vpop.f32.mrf.mxu0
    %v4072 = vadd.f32 %v3904, %v4071
    %v4073 = vpop.f32.mrf.mxu0
    %4074 = vmatprep.mubr.bf16.mxu0 0
    %4075 = vmatmul.mubr.bf16.gmra.mxu0 %v3862
    %v4076 = vpop.f32.mrf.mxu0
    %v4077 = vadd.f32 %v3904, %v4076
    %v4078 = vpop.f32.mrf.mxu0
    %v4079 = vpop.f32.mrf.mxu0
    %v4080 = vadd.f32 %v3904, %v4079
    %v4081 = vpop.f32.mrf.mxu0
    %4082 = vmatprep.mubr.bf16.mxu0 0
    %4083 = vmatmul.mubr.bf16.gmra.mxu0 %v3863
    %v4084 = vpop.f32.mrf.mxu0
    %v4085 = vadd.f32 %v3904, %v4084
    %v4086 = vpop.f32.mrf.mxu0
    %v4087 = vpop.f32.mrf.mxu0
    %v4088 = vadd.f32 %v3904, %v4087
    %v4089 = vpop.f32.mrf.mxu0
    %4090 = vmatprep.mubr.bf16.mxu0 0
    %4091 = vmatmul.mubr.bf16.gmra.mxu0 %v3864
    %v4092 = vpop.f32.mrf.mxu0
    %v4093 = vadd.f32 %v3904, %v4092
    %v4094 = vpop.f32.mrf.mxu0
    %v4095 = vpop.f32.mrf.mxu0
    %v4096 = vadd.f32 %v3904, %v4095
    %v4097 = vpop.f32.mrf.mxu0
    %4098 = vmatprep.mubr.bf16.mxu0 0
    %4099 = vmatmul.mubr.bf16.gmra.mxu0 %v3865
    %v4100 = vpop.f32.mrf.mxu0
    %v4101 = vadd.f32 %v3904, %v4100
    %v4102 = vpop.f32.mrf.mxu0
    %v4103 = vpop.f32.mrf.mxu0
    %v4104 = vadd.f32 %v3904, %v4103
    %v4105 = vpop.f32.mrf.mxu0
    %4106 = vmatprep.mubr.bf16.mxu0 0
    %4107 = vmatmul.mubr.bf16.gmra.mxu0 %v3866
    %v4108 = vpop.f32.mrf.mxu0
    %v4109 = vadd.f32 %v3904, %v4108
    %v4110 = vpop.f32.mrf.mxu0
    %v4111 = vpop.f32.mrf.mxu0
    %v4112 = vadd.f32 %v3904, %v4111
    %v4113 = vpop.f32.mrf.mxu0
    %4114 = vmatprep.mubr.bf16.mxu0 0
    %4115 = vmatmul.mubr.bf16.gmra.mxu0 %v3867
    %v4116 = vpop.f32.mrf.mxu0
    %v4117 = vadd.f32 %v3904, %v4116
    %v4118 = vpop.f32.mrf.mxu0
    %v4119 = vpop.f32.mrf.mxu0
    %v4120 = vadd.f32 %v3904, %v4119
    %v4121 = vpop.f32.mrf.mxu0
    %4122 = vmatprep.mubr.bf16.mxu0 0
    %4123 = vmatmul.mubr.bf16.gmra.mxu0 %v3868
    %v4124 = vpop.f32.mrf.mxu0
    %v4125 = vadd.f32 %v3904, %v4124
    %v4126 = vpop.f32.mrf.mxu0
    %v4127 = vpop.f32.mrf.mxu0
    %v4128 = vadd.f32 %v3904, %v4127
    %v4129 = vpop.f32.mrf.mxu0
    %4130 = vmatprep.mubr.bf16.mxu0 0
    %4131 = vmatmul.mubr.bf16.gmra.mxu0 %v3869
    %v4132 = vpop.f32.mrf.mxu0
    %v4133 = vadd.f32 %v3904, %v4132
    %v4134 = vpop.f32.mrf.mxu0
    %v4135 = vpop.f32.mrf.mxu0
    %v4136 = vadd.f32 %v3904, %v4135
    %v4137 = vpop.f32.mrf.mxu0
    %4138 = vmatprep.mubr.bf16.mxu0 0
    %4139 = vmatmul.mubr.bf16.gmra.mxu0 %v3870
    %v4140 = vpop.f32.mrf.mxu0
    %v4141 = vadd.f32 %v3904, %v4140
    %v4142 = vpop.f32.mrf.mxu0
    %v4143 = vpop.f32.mrf.mxu0
    %v4144 = vadd.f32 %v3904, %v4143
    %v4145 = vpop.f32.mrf.mxu0
    %4146 = vmatprep.mubr.bf16.mxu0 0
    %4147 = vmatmul.mubr.bf16.gmra.mxu0 %v3871
    %v4148 = vpop.f32.mrf.mxu0
    %v4149 = vadd.f32 %v3904, %v4148
    %v4150 = vpop.f32.mrf.mxu0
    %v4151 = vpop.f32.mrf.mxu0
    %v4152 = vadd.f32 %v3904, %v4151
    %v4153 = vpop.f32.mrf.mxu0
    %4154 = vmatprep.mubr.bf16.mxu0 0
    %4155 = vmatmul.mubr.bf16.gmra.mxu0 %v3872
    %v4156 = vpop.f32.mrf.mxu0
    %v4157 = vadd.f32 %v3904, %v4156
    %v4158 = vpop.f32.mrf.mxu0
    %v4159 = vpop.f32.mrf.mxu0
    %v4160 = vadd.f32 %v3904, %v4159
    %v4161 = vpop.f32.mrf.mxu0
    %4162 = vmatprep.mubr.bf16.mxu0 0
    %4163 = vmatmul.mubr.bf16.gmra.mxu0 %v3873
    %v4164 = vpop.f32.mrf.mxu0
    %v4165 = vadd.f32 %v3904, %v4164
    %v4166 = vpop.f32.mrf.mxu0
    %v4167 = vpop.f32.mrf.mxu0
    %v4168 = vadd.f32 %v3904, %v4167
    %v4169 = vpop.f32.mrf.mxu0
    %4170 = vmatprep.mubr.bf16.mxu0 0
    %4171 = vmatmul.mubr.bf16.gmra.mxu0 %v3874
    %v4172 = vpop.f32.mrf.mxu0
    %v4173 = vadd.f32 %v3904, %v4172
    %v4174 = vpop.f32.mrf.mxu0
    %v4175 = vpop.f32.mrf.mxu0
    %v4176 = vadd.f32 %v3904, %v4175
    %v4177 = vpop.f32.mrf.mxu0
    %4178 = vmatprep.mubr.bf16.mxu0 0
    %4179 = vmatmul.mubr.bf16.gmra.mxu0 %v3875
    %v4180 = vpop.f32.mrf.mxu0
    %v4181 = vadd.f32 %v3904, %v4180
    %v4182 = vpop.f32.mrf.mxu0
    %v4183 = vpop.f32.mrf.mxu0
    %v4184 = vadd.f32 %v3904, %v4183
    %v4185 = vpop.f32.mrf.mxu0
    %4186 = vmatprep.mubr.bf16.mxu0 0
    %4187 = vmatmul.mubr.bf16.gmra.mxu0 %v3876
    %v4188 = vpop.f32.mrf.mxu0
    %v4189 = vadd.f32 %v3904, %v4188
    %v4190 = vpop.f32.mrf.mxu0
    %v4191 = vpop.f32.mrf.mxu0
    %v4192 = vadd.f32 %v3904, %v4191
    %v4193 = vpop.f32.mrf.mxu0
    %4194 = vmatprep.mubr.bf16.mxu0 0
    %4195 = vmatmul.mubr.bf16.gmra.mxu0 %v3877
    %v4196 = vpop.f32.mrf.mxu0
    %v4197 = vadd.f32 %v3904, %v4196
    %v4198 = vpop.f32.mrf.mxu0
    %v4199 = vpop.f32.mrf.mxu0
    %v4200 = vadd.f32 %v3904, %v4199
    %v4201 = vpop.f32.mrf.mxu0
    %4202 = vmatprep.mubr.bf16.mxu0 0
    %4203 = vmatmul.mubr.bf16.gmra.mxu0 %v3878
    %v4204 = vpop.f32.mrf.mxu0
    %v4205 = vadd.f32 %v3904, %v4204
    %v4206 = vpop.f32.mrf.mxu0
    %v4207 = vpop.f32.mrf.mxu0
    %v4208 = vadd.f32 %v3904, %v4207
    %v4209 = vpop.f32.mrf.mxu0
    %4210 = vmatprep.mubr.bf16.mxu0 0
    %4211 = vmatmul.mubr.bf16.gmra.mxu0 %v3879
    %v4212 = vpop.f32.mrf.mxu0
    %v4213 = vadd.f32 %v3904, %v4212
    %v4214 = vpop.f32.mrf.mxu0
    %v4215 = vpop.f32.mrf.mxu0
    %v4216 = vadd.f32 %v3904, %v4215
    %v4217 = vpop.f32.mrf.mxu0
    %4218 = vmatprep.mubr.bf16.mxu0 0
    %4219 = vmatmul.mubr.bf16.gmra.mxu0 %v3880
    %v4220 = vpop.f32.mrf.mxu0
    %v4221 = vadd.f32 %v3904, %v4220
    %v4222 = vpop.f32.mrf.mxu0
    %v4223 = vpop.f32.mrf.mxu0
    %v4224 = vadd.f32 %v3904, %v4223
    %v4225 = vpop.f32.mrf.mxu0
    %4226 = vmatprep.mubr.bf16.mxu0 0
    %4227 = vmatmul.mubr.bf16.gmra.mxu0 %v3881
    %v4228 = vpop.f32.mrf.mxu0
    %v4229 = vadd.f32 %v3904, %v4228
    %v4230 = vpop.f32.mrf.mxu0
    %v4231 = vpop.f32.mrf.mxu0
    %v4232 = vadd.f32 %v3904, %v4231
    %v4233 = vpop.f32.mrf.mxu0
    %4234 = vmatprep.mubr.bf16.mxu0 0
    %4235 = vmatmul.mubr.bf16.gmra.mxu0 %v3882
    %v4236 = vpop.f32.mrf.mxu0
    %v4237 = vadd.f32 %v3904, %v4236
    %v4238 = vpop.f32.mrf.mxu0
    %v4239 = vpop.f32.mrf.mxu0
    %v4240 = vadd.f32 %v3904, %v4239
    %v4241 = vpop.f32.mrf.mxu0
    %4242 = vdwg.mxu0
    %v4243 = vpack.c.bf16 %v3992, %v3989
    %v4244 = vpack.c.bf16 %v4000, %v3997
    %v4245 = vpack.c.bf16 %v4008, %v4005
    %v4246 = vpack.c.bf16 %v4016, %v4013
    %v4247 = vpack.c.bf16 %v4024, %v4021
    %v4248 = vpack.c.bf16 %v4032, %v4029
    %v4249 = vpack.c.bf16 %v4040, %v4037
    %v4250 = vpack.c.bf16 %v4048, %v4045
    %v4251 = vpack.c.bf16 %v4056, %v4053
    %v4252 = vpack.c.bf16 %v4064, %v4061
    %v4253 = vpack.c.bf16 %v4072, %v4069
    %v4254 = vpack.c.bf16 %v4080, %v4077
    %v4255 = vpack.c.bf16 %v4088, %v4085
    %v4256 = vpack.c.bf16 %v4096, %v4093
    %v4257 = vpack.c.bf16 %v4104, %v4101
    %v4258 = vpack.c.bf16 %v4112, %v4109
    %v4259 = vpack.c.bf16 %v4120, %v4117
    %v4260 = vpack.c.bf16 %v4128, %v4125
    %v4261 = vpack.c.bf16 %v4136, %v4133
    %v4262 = vpack.c.bf16 %v4144, %v4141
    %v4263 = vpack.c.bf16 %v4152, %v4149
    %v4264 = vpack.c.bf16 %v4160, %v4157
    %v4265 = vpack.c.bf16 %v4168, %v4165
    %v4266 = vpack.c.bf16 %v4176, %v4173
    %v4267 = vpack.c.bf16 %v4184, %v4181
    %v4268 = vpack.c.bf16 %v4192, %v4189
    %v4269 = vpack.c.bf16 %v4200, %v4197
    %v4270 = vpack.c.bf16 %v4208, %v4205
    %v4271 = vpack.c.bf16 %v4216, %v4213
    %v4272 = vpack.c.bf16 %v4224, %v4221
    %v4273 = vpack.c.bf16 %v4232, %v4229
    %v4274 = vpack.c.bf16 %v4240, %v4237
    %v4307 = vunpack.c.l.b16 %v4243
    %v4308 = vunpack.c.h.b16 %v4243
    %v4309 = vunpack.c.l.b16 %v4244
    %v4310 = vunpack.c.h.b16 %v4244
    %v4311 = vunpack.c.l.b16 %v4245
    %v4312 = vunpack.c.h.b16 %v4245
    %v4313 = vunpack.c.l.b16 %v4246
    %v4314 = vunpack.c.h.b16 %v4246
    %v4315 = vunpack.c.l.b16 %v4247
    %v4316 = vunpack.c.h.b16 %v4247
    %v4317 = vunpack.c.l.b16 %v4248
    %v4318 = vunpack.c.h.b16 %v4248
    %v4319 = vunpack.c.l.b16 %v4249
    %v4320 = vunpack.c.h.b16 %v4249
    %v4321 = vunpack.c.l.b16 %v4250
    %v4322 = vunpack.c.h.b16 %v4250
    %v4323 = vunpack.c.l.b16 %v4251
    %v4324 = vunpack.c.h.b16 %v4251
    %v4325 = vunpack.c.l.b16 %v4252
    %v4326 = vunpack.c.h.b16 %v4252
    %v4327 = vunpack.c.l.b16 %v4253
    %v4328 = vunpack.c.h.b16 %v4253
    %v4329 = vunpack.c.l.b16 %v4254
    %v4330 = vunpack.c.h.b16 %v4254
    %v4331 = vunpack.c.l.b16 %v4255
    %v4332 = vunpack.c.h.b16 %v4255
    %v4333 = vunpack.c.l.b16 %v4256
    %v4334 = vunpack.c.h.b16 %v4256
    %v4335 = vunpack.c.l.b16 %v4257
    %v4336 = vunpack.c.h.b16 %v4257
    %v4337 = vunpack.c.l.b16 %v4258
    %v4338 = vunpack.c.h.b16 %v4258
    %v4339 = vunpack.c.l.b16 %v4259
    %v4340 = vunpack.c.h.b16 %v4259
    %v4341 = vunpack.c.l.b16 %v4260
    %v4342 = vunpack.c.h.b16 %v4260
    %v4343 = vunpack.c.l.b16 %v4261
    %v4344 = vunpack.c.h.b16 %v4261
    %v4345 = vunpack.c.l.b16 %v4262
    %v4346 = vunpack.c.h.b16 %v4262
    %v4347 = vunpack.c.l.b16 %v4263
    %v4348 = vunpack.c.h.b16 %v4263
    %v4349 = vunpack.c.l.b16 %v4264
    %v4350 = vunpack.c.h.b16 %v4264
    %v4351 = vunpack.c.l.b16 %v4265
    %v4352 = vunpack.c.h.b16 %v4265
    %v4353 = vunpack.c.l.b16 %v4266
    %v4354 = vunpack.c.h.b16 %v4266
    %v4355 = vunpack.c.l.b16 %v4267
    %v4356 = vunpack.c.h.b16 %v4267
    %v4357 = vunpack.c.l.b16 %v4268
    %v4358 = vunpack.c.h.b16 %v4268
    %v4359 = vunpack.c.l.b16 %v4269
    %v4360 = vunpack.c.h.b16 %v4269
    %v4361 = vunpack.c.l.b16 %v4270
    %v4362 = vunpack.c.h.b16 %v4270
    %v4363 = vunpack.c.l.b16 %v4271
    %v4364 = vunpack.c.h.b16 %v4271
    %v4365 = vunpack.c.l.b16 %v4272
    %v4366 = vunpack.c.h.b16 %v4272
    %v4367 = vunpack.c.l.b16 %v4273
    %v4368 = vunpack.c.h.b16 %v4273
    %v4369 = vunpack.c.l.b16 %v4274
    %v4370 = vunpack.c.h.b16 %v4274
    %v4371 = vpack.c.b16 %v4307, %v4307
    %v4372 = vpack.c.b16 %v4308, %v4308
    %v4373 = vpack.c.b16 %v4309, %v4309
    %v4374 = vpack.c.b16 %v4310, %v4310
    %v4375 = vpack.c.b16 %v4311, %v4311
    %v4376 = vpack.c.b16 %v4312, %v4312
    %v4377 = vpack.c.b16 %v4313, %v4313
    %v4378 = vpack.c.b16 %v4314, %v4314
    %v4379 = vpack.c.b16 %v4315, %v4315
    %v4380 = vpack.c.b16 %v4316, %v4316
    %v4381 = vpack.c.b16 %v4317, %v4317
    %v4382 = vpack.c.b16 %v4318, %v4318
    %v4383 = vpack.c.b16 %v4319, %v4319
    %v4384 = vpack.c.b16 %v4320, %v4320
    %v4385 = vpack.c.b16 %v4321, %v4321
    %v4386 = vpack.c.b16 %v4322, %v4322
    %v4387 = vpack.c.b16 %v4323, %v4323
    %v4388 = vpack.c.b16 %v4324, %v4324
    %v4389 = vpack.c.b16 %v4325, %v4325
    %v4390 = vpack.c.b16 %v4326, %v4326
    %v4391 = vpack.c.b16 %v4327, %v4327
    %v4392 = vpack.c.b16 %v4328, %v4328
    %v4393 = vpack.c.b16 %v4329, %v4329
    %v4394 = vpack.c.b16 %v4330, %v4330
    %v4395 = vpack.c.b16 %v4331, %v4331
    %v4396 = vpack.c.b16 %v4332, %v4332
    %v4397 = vpack.c.b16 %v4333, %v4333
    %v4398 = vpack.c.b16 %v4334, %v4334
    %v4399 = vpack.c.b16 %v4335, %v4335
    %v4400 = vpack.c.b16 %v4336, %v4336
    %v4401 = vpack.c.b16 %v4337, %v4337
    %v4402 = vpack.c.b16 %v4338, %v4338
    %v4403 = vpack.c.b16 %v4339, %v4339
    %v4404 = vpack.c.b16 %v4340, %v4340
    %v4405 = vpack.c.b16 %v4341, %v4341
    %v4406 = vpack.c.b16 %v4342, %v4342
    %v4407 = vpack.c.b16 %v4343, %v4343
    %v4408 = vpack.c.b16 %v4344, %v4344
    %v4409 = vpack.c.b16 %v4345, %v4345
    %v4410 = vpack.c.b16 %v4346, %v4346
    %v4411 = vpack.c.b16 %v4347, %v4347
    %v4412 = vpack.c.b16 %v4348, %v4348
    %v4413 = vpack.c.b16 %v4349, %v4349
    %v4414 = vpack.c.b16 %v4350, %v4350
    %v4415 = vpack.c.b16 %v4351, %v4351
    %v4416 = vpack.c.b16 %v4352, %v4352
    %v4417 = vpack.c.b16 %v4353, %v4353
    %v4418 = vpack.c.b16 %v4354, %v4354
    %v4419 = vpack.c.b16 %v4355, %v4355
    %v4420 = vpack.c.b16 %v4356, %v4356
    %v4421 = vpack.c.b16 %v4357, %v4357
    %v4422 = vpack.c.b16 %v4358, %v4358
    %v4423 = vpack.c.b16 %v4359, %v4359
    %v4424 = vpack.c.b16 %v4360, %v4360
    %v4425 = vpack.c.b16 %v4361, %v4361
    %v4426 = vpack.c.b16 %v4362, %v4362
    %v4427 = vpack.c.b16 %v4363, %v4363
    %v4428 = vpack.c.b16 %v4364, %v4364
    %v4429 = vpack.c.b16 %v4365, %v4365
    %v4430 = vpack.c.b16 %v4366, %v4366
    %v4431 = vpack.c.b16 %v4367, %v4367
    %v4432 = vpack.c.b16 %v4368, %v4368
    %v4433 = vpack.c.b16 %v4369, %v4369
    %v4434 = vpack.c.b16 %v4370, %v4370
    %4499 = vst [vmem:[#allocation11] sm:$0xf] %v4371
    %4500 = vst [vmem:[#allocation11 + $0x4] sm:$0xf] %v4372
    %4501 = vst [vmem:[#allocation11 + $0x8] sm:$0xf] %v4373
    %4502 = vst [vmem:[#allocation11 + $0xc] sm:$0xf] %v4374
    %4503 = vst [vmem:[#allocation11 + $0x10] sm:$0xf] %v4375
    %4504 = vst [vmem:[#allocation11 + $0x14] sm:$0xf] %v4376
    %4505 = vst [vmem:[#allocation11 + $0x18] sm:$0xf] %v4377
    %4506 = vst [vmem:[#allocation11 + $0x1c] sm:$0xf] %v4378
    %4507 = vst [vmem:[#allocation11 + $0x20] sm:$0xf] %v4379
    %4508 = vst [vmem:[#allocation11 + $0x24] sm:$0xf] %v4380
    %4509 = vst [vmem:[#allocation11 + $0x28] sm:$0xf] %v4381
    %4510 = vst [vmem:[#allocation11 + $0x2c] sm:$0xf] %v4382
    %4511 = vst [vmem:[#allocation11 + $0x30] sm:$0xf] %v4383
    %4512 = vst [vmem:[#allocation11 + $0x34] sm:$0xf] %v4384
    %4513 = vst [vmem:[#allocation11 + $0x38] sm:$0xf] %v4385
    %4514 = vst [vmem:[#allocation11 + $0x3c] sm:$0xf] %v4386
    %4515 = vst [vmem:[#allocation11 + $0x40] sm:$0xf] %v4387
    %4516 = vst [vmem:[#allocation11 + $0x44] sm:$0xf] %v4388
    %4517 = vst [vmem:[#allocation11 + $0x48] sm:$0xf] %v4389
    %4518 = vst [vmem:[#allocation11 + $0x4c] sm:$0xf] %v4390
    %4519 = vst [vmem:[#allocation11 + $0x50] sm:$0xf] %v4391
    %4520 = vst [vmem:[#allocation11 + $0x54] sm:$0xf] %v4392
    %4521 = vst [vmem:[#allocation11 + $0x58] sm:$0xf] %v4393
    %4522 = vst [vmem:[#allocation11 + $0x5c] sm:$0xf] %v4394
    %4523 = vst [vmem:[#allocation11 + $0x60] sm:$0xf] %v4395
    %4524 = vst [vmem:[#allocation11 + $0x64] sm:$0xf] %v4396
    %4525 = vst [vmem:[#allocation11 + $0x68] sm:$0xf] %v4397
    %4526 = vst [vmem:[#allocation11 + $0x6c] sm:$0xf] %v4398
    %4527 = vst [vmem:[#allocation11 + $0x70] sm:$0xf] %v4399
    %4528 = vst [vmem:[#allocation11 + $0x74] sm:$0xf] %v4400
    %4529 = vst [vmem:[#allocation11 + $0x78] sm:$0xf] %v4401
    %4530 = vst [vmem:[#allocation11 + $0x7c] sm:$0xf] %v4402
    %4531 = vst [vmem:[#allocation11 + $0x80] sm:$0xf] %v4403
    %4532 = vst [vmem:[#allocation11 + $0x84] sm:$0xf] %v4404
    %4533 = vst [vmem:[#allocation11 + $0x88] sm:$0xf] %v4405
    %4534 = vst [vmem:[#allocation11 + $0x8c] sm:$0xf] %v4406
    %4535 = vst [vmem:[#allocation11 + $0x90] sm:$0xf] %v4407
    %4536 = vst [vmem:[#allocation11 + $0x94] sm:$0xf] %v4408
    %4537 = vst [vmem:[#allocation11 + $0x98] sm:$0xf] %v4409
    %4538 = vst [vmem:[#allocation11 + $0x9c] sm:$0xf] %v4410
    %4539 = vst [vmem:[#allocation11 + $0xa0] sm:$0xf] %v4411
    %4540 = vst [vmem:[#allocation11 + $0xa4] sm:$0xf] %v4412
    %4541 = vst [vmem:[#allocation11 + $0xa8] sm:$0xf] %v4413
    %4542 = vst [vmem:[#allocation11 + $0xac] sm:$0xf] %v4414
    %4543 = vst [vmem:[#allocation11 + $0xb0] sm:$0xf] %v4415
    %4544 = vst [vmem:[#allocation11 + $0xb4] sm:$0xf] %v4416
    %4545 = vst [vmem:[#allocation11 + $0xb8] sm:$0xf] %v4417
    %4546 = vst [vmem:[#allocation11 + $0xbc] sm:$0xf] %v4418
    %4547 = vst [vmem:[#allocation11 + $0xc0] sm:$0xf] %v4419
    %4548 = vst [vmem:[#allocation11 + $0xc4] sm:$0xf] %v4420
    %4549 = vst [vmem:[#allocation11 + $0xc8] sm:$0xf] %v4421
    %4550 = vst [vmem:[#allocation11 + $0xcc] sm:$0xf] %v4422
    %4551 = vst [vmem:[#allocation11 + $0xd0] sm:$0xf] %v4423
    %4552 = vst [vmem:[#allocation11 + $0xd4] sm:$0xf] %v4424
    %4553 = vst [vmem:[#allocation11 + $0xd8] sm:$0xf] %v4425
    %4554 = vst [vmem:[#allocation11 + $0xdc] sm:$0xf] %v4426
    %4555 = vst [vmem:[#allocation11 + $0xe0] sm:$0xf] %v4427
    %4556 = vst [vmem:[#allocation11 + $0xe4] sm:$0xf] %v4428
    %4557 = vst [vmem:[#allocation11 + $0xe8] sm:$0xf] %v4429
    %4558 = vst [vmem:[#allocation11 + $0xec] sm:$0xf] %v4430
    %4559 = vst [vmem:[#allocation11 + $0xf0] sm:$0xf] %v4431
    %4560 = vst [vmem:[#allocation11 + $0xf4] sm:$0xf] %v4432
    %4561 = vst [vmem:[#allocation11 + $0xf8] sm:$0xf] %v4433
    %4562 = vst [vmem:[#allocation11 + $0xfc] sm:$0xf] %v4434
    // Predicated region
    $region46: #{tpu_custom_call.1} parent=1 // pred_check
      _
    $region47: #{tpu_custom_call.1} parent=1 // pred_check_branch
      %4564 = sbr.rel (0) target = $region49
    $region48: #{tpu_custom_call.1} parent=1 // pred_region
      %s4566 = ssub.s32 4096, 4096
      %4567 = vsyncadd [#allocation5], %s4566
      %s4568 = sshll.u32 [#allocation11], 4
      %s4569 = int_to_ptr.vmem [resolvable:$true] %s4568
      %4574 = dma.vmem_to_hbm [thread:$0]  %s4569, 4096, %s7, [#allocation5], 64, 64, 4
    $region49: #{tpu_custom_call.1} parent=1 // pred_fallthru
      _
    // Predicated region
    $region50: #{tpu_custom_call.1} parent=1 // pred_check
      _
    $region51: #{tpu_custom_call.1} parent=1 // pred_check_branch
      %4576 = sbr.rel (0) target = $region53
    $region52: #{tpu_custom_call.1} parent=1 // pred_region
      %4577 = dma.done [#allocation5], 4096
    $region53: #{tpu_custom_call.1} parent=1 // pred_fallthru
      _
    %4578 = vsyncpa [#allocation4], 1
    %4579 = vsyncpa [#allocation7], 1
    %4580 = vsyncpa [#allocation10], 1
    %4581 = vsyncpa [#allocation5], 1

</llo_original>
